<compile_context>
chip_gen: v7x
topology: tpu7x:2x2x1
jax: 0.10.0
libtpu: 0.0.40
codegen_flags: <defaults>
</compile_context>

<pallas_src>
import jax
import jax.numpy as jnp
from jax.experimental import pallas as pl
from jax.experimental.pallas import tpu as pltpu

EPS = 1e-5  # PyTorch BatchNorm2d default eps


# ----------------------------------------------------------------------------
# Pallas kernel: whole block fused, lane-dense layout (rows = N*H, lanes = W*C)
# ----------------------------------------------------------------------------
def _make_first_block_kernel(WCin, WP, inv_cnt, with_s0):
    def kernel(*refs):
        if with_s0:
            (x_ref, g1_ref, b1_ref, t1_ref, w1_ref,
             g2_ref, b2_ref, t2_ref,
             sm1_ref, s0_ref, sp1_ref, mstack_hbm,
             out_ref, fmap_ref, mv_ref, dma_sem) = refs
        else:
            (x_ref, g1_ref, b1_ref, t1_ref, w1_ref,
             g2_ref, b2_ref, t2_ref,
             sm1_ref, sp1_ref, mstack_hbm,
             out_ref, fmap_ref, mv_ref, dma_sem) = refs
            s0_ref = None

        # Prefetch the largest operand (stacked ASL/conv2/shortcut weights)
        # from HBM now; wait only right before the final matmuls so the DMA
        # overlaps BN1 / conv1 / BN2 compute.
        mcp = pltpu.make_async_copy(mstack_hbm, mv_ref, dma_sem)
        mcp.start()

        xd = x_ref[...]                                  # (N*H, W*Cin) f32

        # ---- BN1 (training-mode batch stats) + ReLU, reduce-then-pool ----
        s1 = jnp.sum(xd, axis=0, keepdims=True)          # (1, W*Cin)
        m1 = inv_cnt * jnp.dot(s1, t1_ref[...],
                               preferred_element_type=jnp.float32)
        xc1 = xd - m1                                    # reused below
        q1 = jnp.sum(xc1 * xc1, axis=0, keepdims=True)
        v1 = inv_cnt * jnp.dot(q1, t1_ref[...],
                               preferred_element_type=jnp.float32)
        h1 = jnp.maximum(
            xc1 * (g1_ref[...] * jax.lax.rsqrt(v1 + EPS)) + b1_ref[...], 0.0)

        # ---- conv1 (1x1, groups=2): block-diagonal bf16 matmul -------------
        fmapd = jnp.dot(h1.astype(jnp.bfloat16), w1_ref[...],
                        preferred_element_type=jnp.float32)   # (N*H, W*P) f32
        fmap_ref[...] = fmapd                            # lane-dense store

        # ---- BN2 (batch stats) + ReLU, reduce-then-pool --------------------
        s2 = jnp.sum(fmapd, axis=0, keepdims=True)
        m2 = inv_cnt * jnp.dot(s2, t2_ref[...],
                               preferred_element_type=jnp.float32)
        xc2 = fmapd - m2
        q2 = jnp.sum(xc2 * xc2, axis=0, keepdims=True)
        v2 = inv_cnt * jnp.dot(q2, t2_ref[...],
                               preferred_element_type=jnp.float32)
        h2 = jnp.maximum(
            xc2 * (g2_ref[...] * jax.lax.rsqrt(v2 + EPS)) + b2_ref[...], 0.0)

        # ---- ASL + conv2 (+ stride) + shortcut ------------------------------
        h2b = h2.astype(jnp.bfloat16)
        xdb = xd.astype(jnp.bfloat16)
        # dh = -1 / +1 row-shifted copies with per-image zero boundaries via
        # tiny exact 0/1 block-diagonal matrices (MXU).
        # TODO(synk): replace with pltpu.roll(+-1, axis=0) + boundary masks in
        #             the production row-tiled variant (linear, not quadratic,
        #             scaling in N*H).
        hm1 = jnp.dot(sm1_ref[...], h2b,
                      preferred_element_type=jnp.float32).astype(jnp.bfloat16)
        hp1 = jnp.dot(sp1_ref[...], h2b,
                      preferred_element_type=jnp.float32).astype(jnp.bfloat16)
        if s0_ref is None:        # stride == 1: s_0 is the identity -> skip it
            h0, xs = h2b, xdb
        else:
            h0 = jnp.dot(s0_ref[...], h2b,
                         preferred_element_type=jnp.float32).astype(jnp.bfloat16)
            xs = jnp.dot(s0_ref[...], xdb,
                         preferred_element_type=jnp.float32).astype(jnp.bfloat16)

        # Four accumulating bf16 matmuls into one f32 accumulator (no lane
        # concatenate).  RHS row blocks fold the W-axis shift, the ASL bilinear
        # weights, conv2, the W stride and the shortcut 1x1 conv.
        mcp.wait()
        out = jnp.dot(hm1, mv_ref[0 * WP:1 * WP, :],
                      preferred_element_type=jnp.float32)
        out = out + jnp.dot(h0, mv_ref[1 * WP:2 * WP, :],
                            preferred_element_type=jnp.float32)
        out = out + jnp.dot(hp1, mv_ref[2 * WP:3 * WP, :],
                            preferred_element_type=jnp.float32)
        out = out + jnp.dot(xs, mv_ref[3 * WP:3 * WP + WCin, :],
                            preferred_element_type=jnp.float32)
        out_ref[...] = out

    return kernel


# ----------------------------------------------------------------------------
# Wrapper: layout conversion + operand packing + pallas_call
# ----------------------------------------------------------------------------
def pack_kernel_operands(params, N, Cin, P, H, W, stride):
    Ho = (H - 1) // stride + 1
    Wo = (W - 1) // stride + 1
    inv_cnt = 1.0 / float(N * H * W)
    eyeN = jnp.eye(N, dtype=jnp.float32)
    eyeW = jnp.eye(W, dtype=jnp.float32)

    # W-tiled per-channel BN affine params (lane layout: l = w*C + c), f32.
    g1_t = jnp.tile(params["g1"], (1, W))                    # (1, W*Cin)
    b1_t = jnp.tile(params["b1"], (1, W))
    g2_t = jnp.tile(params["g2"], (1, W))                    # (1, W*P)
    b2_t = jnp.tile(params["b2"], (1, W))

    # Exact 0/1 channel pool-and-rebroadcast matrices (bf16-exact); the 1/cnt
    # scaling is applied in f32 inside the kernel.
    t1 = jnp.tile(jnp.eye(Cin, dtype=jnp.float32), (W, W)).astype(jnp.bfloat16)
    t2 = jnp.tile(jnp.eye(P, dtype=jnp.float32), (W, W)).astype(jnp.bfloat16)

    # conv1 (1x1 grouped conv) as a block-diagonal dense matmul over lanes.
    w1_big = jnp.kron(eyeW, params["w1"]).astype(jnp.bfloat16)   # (W*Cin, W*P)

    # Row (H-axis) shift / stride 0/1 selection matrices, block-diag over N.
    def row_shift(dh):
        ho = jnp.arange(Ho)
        src = ho * stride + dh
        valid = ((src >= 0) & (src < H)).astype(jnp.float32)
        base = jnp.zeros((Ho, H), jnp.float32)
        base = base.at[ho, jnp.clip(src, 0, H - 1)].set(valid)
        return jnp.kron(eyeN, base).astype(jnp.bfloat16)     # (N*Ho, N*H)

    s_m1, s_p1 = row_shift(-1), row_shift(1)
    s_0 = None if stride == 1 else row_shift(0)              # identity at s=1

    # W-axis shift + ASL per-channel bilinear weight + conv2 (+ W stride) per
    # dh, plus the shortcut 1x1 conv as the final row block; stacked so a
    # single async copy prefetches everything the final matmuls need.
    def col_shift(dw):
        wo = jnp.arange(Wo)
        src = wo * stride + dw
        valid = ((src >= 0) & (src < W)).astype(jnp.float32)
        sel = jnp.zeros((W, Wo), jnp.float32)
        return sel.at[jnp.clip(src, 0, W - 1), wo].set(valid)

    m_parts = []
    for dh in (-1, 0, 1):
        M = jnp.zeros((W * P, Wo * P), jnp.float32)
        for dw in (-1, 0, 1):
            k = (dh + 1) * 3 + (dw + 1)
            blk = params["aslw"][k][:, None] * params["w2"]  # (P, P)
            M = M + jnp.kron(col_shift(dw), blk)
        m_parts.append(M)
    msc = jnp.kron(col_shift(0), params["wsc"])              # (W*Cin, Wo*P)
    mstack = jnp.concatenate(m_parts + [msc], axis=0).astype(jnp.bfloat16)

    ops = dict(g1_t=g1_t, b1_t=b1_t, t1=t1, w1_big=w1_big,
               g2_t=g2_t, b2_t=b2_t, t2=t2,
               s_m1=s_m1, s_0=s_0, s_p1=s_p1, mstack=mstack)
    return ops, Ho, Wo, inv_cnt


def first_block_forward(x_nchw, params, stride=1):
    """x_nchw: (N, Cin, H, W) float32 -> (out NCHW, fmap NCHW)."""
    N, Cin, H, W = x_nchw.shape
    P = params["w1"].shape[1]
    ops, Ho, Wo, inv_cnt = pack_kernel_operands(params, N, Cin, P, H, W, stride)
    WCin, WP, WoP = W * Cin, W * P, Wo * P
    with_s0 = stride != 1
    kernel = _make_first_block_kernel(WCin, WP, inv_cnt, with_s0)

    # Lane-dense input slab: rows = N*H, lanes = W*Cin (channels fastest).
    xd = jnp.transpose(x_nchw, (0, 2, 3, 1)).reshape(N * H, WCin)
    xd = xd.astype(jnp.float32)

    vmem = pl.BlockSpec(memory_space=pltpu.MemorySpace.VMEM)
    anyspec = pl.BlockSpec(memory_space=pl.ANY)   # manual prefetch from HBM

    operands = [xd, ops["g1_t"], ops["b1_t"], ops["t1"], ops["w1_big"],
                ops["g2_t"], ops["b2_t"], ops["t2"], ops["s_m1"]]
    if with_s0:
        operands.append(ops["s_0"])
    operands += [ops["s_p1"], ops["mstack"]]
    in_specs = [vmem] * (len(operands) - 1) + [anyspec]

    outd, fmapd = pl.pallas_call(
        kernel,
        out_shape=(jax.ShapeDtypeStruct((N * Ho, WoP), jnp.float32),
                   jax.ShapeDtypeStruct((N * H, WP), jnp.float32)),
        in_specs=in_specs,
        out_specs=(vmem, vmem),
        scratch_shapes=[pltpu.VMEM((3 * WP + WCin, WoP), jnp.bfloat16),
                        pltpu.SemaphoreType.DMA],
        compiler_params=pltpu.CompilerParams(
            vmem_limit_bytes=32 * 1024 * 1024),
    )(*operands)

    out = jnp.transpose(outd.reshape(N, Ho, Wo, P), (0, 3, 1, 2))
    fmap = jnp.transpose(fmapd.reshape(N, H, W, P), (0, 3, 1, 2))
    return out, fmap


# ----------------------------------------------------------------------------
# Parameter construction (deterministic, plain-JAX glue)
# ----------------------------------------------------------------------------
def grouped_1x1_dense(key, cin, cout, groups):
    """PyTorch Conv2d(cin, cout, 1, groups=groups) weight expanded to an
    exactly-equivalent dense (cin, cout) matmul matrix."""
    w = 0.1 * jax.random.normal(key, (cout, cin // groups), jnp.float32)
    dense = jnp.zeros((cin, cout), jnp.float32)
    cin_g, cout_g = cin // groups, cout // groups
    for g in range(groups):
        dense = dense.at[g * cin_g:(g + 1) * cin_g,
                         g * cout_g:(g + 1) * cout_g].set(
            w[g * cout_g:(g + 1) * cout_g, :].T)
    return dense


def asl_neighborhood_weights(theta):
    """theta: (P, 2) shifts in (-1, 1). Returns (9, P) bilinear weights so that
    out[h,w,c] = sum_k W[k(dh,dw), c] * x_zeropad[h+dh, w+dw, c]."""
    a, b = theta[:, 0], theta[:, 1]
    ia, ib = jnp.floor(a), jnp.floor(b)
    fa, fb = a - ia, b - ib
    offs = jnp.array([-1.0, 0.0, 1.0], jnp.float32)
    wh = (jnp.where(offs[None, :] == ia[:, None], (1.0 - fa)[:, None], 0.0)
          + jnp.where(offs[None, :] == ia[:, None] + 1.0, fa[:, None], 0.0))
    ww = (jnp.where(offs[None, :] == ib[:, None], (1.0 - fb)[:, None], 0.0)
          + jnp.where(offs[None, :] == ib[:, None] + 1.0, fb[:, None], 0.0))
    w = wh[:, :, None] * ww[:, None, :]                      # (P, 3, 3)
    return w.reshape(w.shape[0], 9).T.astype(jnp.float32)    # (9, P)


def init_params(key, in_planes, planes, stride):
    ks = jax.random.split(key, 8)
    g1 = 1.0 + 0.1 * jax.random.normal(ks[0], (1, in_planes), jnp.float32)
    b1 = 0.1 * jax.random.normal(ks[1], (1, in_planes), jnp.float32)
    w1 = grouped_1x1_dense(ks[2], in_planes, planes, groups=2)
    g2 = 1.0 + 0.1 * jax.random.normal(ks[3], (1, planes), jnp.float32)
    b2 = 0.1 * jax.random.normal(ks[4], (1, planes), jnp.float32)
    theta = jax.random.uniform(ks[5], (planes, 2), jnp.float32, -0.9, 0.9)
    aslw = asl_neighborhood_weights(theta)
    w2 = grouped_1x1_dense(ks[6], planes, planes, groups=3)
    if stride != 1 or in_planes != planes:
        wsc = 0.1 * jax.random.normal(ks[7], (in_planes, planes), jnp.float32)
    else:
        wsc = jnp.eye(in_planes, dtype=jnp.float32)          # identity shortcut
    return dict(g1=g1, b1=b1, w1=w1, g2=g2, b2=b2, aslw=aslw, w2=w2, wsc=wsc)


# ----------------------------------------------------------------------------
# Pure-JAX reference (same math, straightforward high-precision formulation)
# ----------------------------------------------------------------------------
def first_block_reference(x_nchw, params, stride=1):
    mm = lambda a, b: jnp.matmul(a, b, precision="highest")
    N, Cin, H, W = x_nchw.shape
    P = params["w1"].shape[1]
    x = jnp.transpose(x_nchw, (0, 2, 3, 1)).astype(jnp.float32)
    x2d = x.reshape(-1, Cin)
    m1 = x2d.mean(0, keepdims=True)
    v1 = ((x2d - m1) ** 2).mean(0, keepdims=True)
    h1 = jnp.maximum((x2d - m1) * jax.lax.rsqrt(v1 + EPS) * params["g1"]
                     + params["b1"], 0.0)
    fmap2d = mm(h1, params["w1"])
    m2 = fmap2d.mean(0, keepdims=True)
    v2 = ((fmap2d - m2) ** 2).mean(0, keepdims=True)
    h2 = jnp.maximum((fmap2d - m2) * jax.lax.rsqrt(v2 + EPS) * params["g2"]
                     + params["b2"], 0.0).reshape(N, H, W, P)
    pad = jnp.pad(h2, ((0, 0), (1, 1), (1, 1), (0, 0)))
    acc = jnp.zeros_like(h2)
    k = 0
    for dh in (-1, 0, 1):
        for dw in (-1, 0, 1):
            acc = acc + pad[:, 1 + dh:1 + dh + H, 1 + dw:1 + dw + W, :] \
                  * params["aslw"][k]
            k += 1
    if stride != 1:
        acc = acc[:, ::stride, ::stride, :]
        xs = x[:, ::stride, ::stride, :]
    else:
        xs = x
    Ho, Wo = acc.shape[1], acc.shape[2]
    out = (mm(acc.reshape(-1, P), params["w2"])
           + mm(xs.reshape(-1, Cin), params["wsc"])).reshape(N, Ho, Wo, P)
    return (jnp.transpose(out, (0, 3, 1, 2)),
            jnp.transpose(fmap2d.reshape(N, H, W, P), (0, 3, 1, 2)))


if __name__ == "__main__":
    # Channels must satisfy groups=2 (conv1) and groups=3 (conv2) -> P % 6 == 0.
    # Chosen so W*Cin = 128 and W*P = 384 (fully lane-dense layout).
    N, Cin, P, H, W, stride = 2, 8, 24, 16, 16, 1
    key = jax.random.PRNGKey(0)
    kx, kp = jax.random.split(key)
    x = jax.random.normal(kx, (N, Cin, H, W), jnp.float32)   # NCHW like PyTorch
    params = init_params(kp, Cin, P, stride)

    out, fmap = first_block_forward(x, params, stride)
    jax.block_until_ready((out, fmap))

    out_r, fmap_r = first_block_reference(x, params, stride)
    assert out.shape == (N, P, H, W) and fmap.shape == (N, P, H, W)
    # Tolerance accounts for bf16 MXU matmul operands (with f32 accumulation)
    # in the kernel vs the "highest"-precision f32 reference matmuls.
    assert jnp.allclose(out, out_r, atol=2e-2, rtol=2e-2), \
        float(jnp.max(jnp.abs(out - out_r)))
    assert jnp.allclose(fmap, fmap_r, atol=2e-2, rtol=2e-2), \
        float(jnp.max(jnp.abs(fmap - fmap_r)))
    print("KERNEL_OK")
</pallas_src>

<mosaic_0001>
module attributes {stable_mosaic.version = 11 : i64} {
  func.func @kernel(%arg0: memref<32x128xf32, #tpu.memory_space<vmem>>, %arg1: memref<1x128xf32, #tpu.memory_space<vmem>>, %arg2: memref<1x128xf32, #tpu.memory_space<vmem>>, %arg3: memref<128x128xbf16, #tpu.memory_space<vmem>>, %arg4: memref<128x384xbf16, #tpu.memory_space<vmem>>, %arg5: memref<1x384xf32, #tpu.memory_space<vmem>>, %arg6: memref<1x384xf32, #tpu.memory_space<vmem>>, %arg7: memref<384x384xbf16, #tpu.memory_space<vmem>>, %arg8: memref<32x32xbf16, #tpu.memory_space<vmem>>, %arg9: memref<32x32xbf16, #tpu.memory_space<vmem>>, %arg10: memref<1280x384xbf16, #tpu.memory_space<any>>, %arg11: memref<32x384xf32, #tpu.memory_space<vmem>>, %arg12: memref<32x384xf32, #tpu.memory_space<vmem>>, %arg13: memref<1280x384xbf16, #tpu.memory_space<vmem>>, %arg14: memref<!tpu.dma_semaphore, #tpu.memory_space<semaphore_mem>>) attributes {dimension_semantics = [], scalar_prefetch = 0 : i64, scratch_operands = 2 : i64, tpu.core_type = #tpu.core_type<tc>} {
    tpu.enqueue_dma source(%arg10 : memref<1280x384xbf16, #tpu.memory_space<any>>) target(%arg13 : memref<1280x384xbf16, #tpu.memory_space<vmem>>) target_semaphore(%arg14 : memref<!tpu.dma_semaphore, #tpu.memory_space<semaphore_mem>>)
    %c0 = arith.constant 0 : index
    %c0_0 = arith.constant 0 : index
    %0 = vector.load %arg0[%c0, %c0_0] : memref<32x128xf32, #tpu.memory_space<vmem>>, vector<32x128xf32>
    %cst = arith.constant dense<0.000000e+00> : vector<128xf32>
    %1 = vector.multi_reduction <add>, %0, %cst [0] : vector<32x128xf32> to vector<128xf32>
    %2 = vector.shape_cast %1 : vector<128xf32> to vector<1x128xf32>
    %c0_1 = arith.constant 0 : index
    %c0_2 = arith.constant 0 : index
    %3 = vector.load %arg3[%c0_1, %c0_2] : memref<128x128xbf16, #tpu.memory_space<vmem>>, vector<128x128xbf16>
    %cst_3 = arith.constant dense<0.000000e+00> : vector<1x128xf32>
    %4 = tpu.matmul %2, %3, %cst_3 {dimension_numbers = #tpu.dot_dimension_numbers<[1], [0], [0], [1], [0, 0, 1, 1], [], []>} : vector<1x128xf32>, vector<128x128xbf16>, vector<1x128xf32> -> vector<1x128xf32>
    %cst_4 = arith.constant 0.001953125 : f32
    %5 = vector.broadcast %cst_4 : f32 to vector<1x128xf32>
    %6 = arith.mulf %5, %4 : vector<1x128xf32>
    %7 = vector.broadcast %6 : vector<1x128xf32> to vector<32x128xf32>
    %8 = arith.subf %0, %7 : vector<32x128xf32>
    %9 = arith.mulf %8, %8 : vector<32x128xf32>
    %cst_5 = arith.constant dense<0.000000e+00> : vector<128xf32>
    %10 = vector.multi_reduction <add>, %9, %cst_5 [0] : vector<32x128xf32> to vector<128xf32>
    %11 = vector.shape_cast %10 : vector<128xf32> to vector<1x128xf32>
    %c0_6 = arith.constant 0 : index
    %c0_7 = arith.constant 0 : index
    %12 = vector.load %arg3[%c0_6, %c0_7] : memref<128x128xbf16, #tpu.memory_space<vmem>>, vector<128x128xbf16>
    %cst_8 = arith.constant dense<0.000000e+00> : vector<1x128xf32>
    %13 = tpu.matmul %11, %12, %cst_8 {dimension_numbers = #tpu.dot_dimension_numbers<[1], [0], [0], [1], [0, 0, 1, 1], [], []>} : vector<1x128xf32>, vector<128x128xbf16>, vector<1x128xf32> -> vector<1x128xf32>
    %cst_9 = arith.constant 0.001953125 : f32
    %14 = vector.broadcast %cst_9 : f32 to vector<1x128xf32>
    %15 = arith.mulf %14, %13 : vector<1x128xf32>
    %c0_10 = arith.constant 0 : index
    %c0_11 = arith.constant 0 : index
    %16 = vector.load %arg1[%c0_10, %c0_11] : memref<1x128xf32, #tpu.memory_space<vmem>>, vector<1x128xf32>
    %cst_12 = arith.constant 9.99999974E-6 : f32
    %17 = vector.broadcast %cst_12 : f32 to vector<1x128xf32>
    %18 = arith.addf %15, %17 : vector<1x128xf32>
    %19 = math.rsqrt %18 : vector<1x128xf32>
    %20 = arith.mulf %16, %19 : vector<1x128xf32>
    %21 = vector.broadcast %20 : vector<1x128xf32> to vector<32x128xf32>
    %22 = arith.mulf %8, %21 : vector<32x128xf32>
    %c0_13 = arith.constant 0 : index
    %c0_14 = arith.constant 0 : index
    %23 = vector.load %arg2[%c0_13, %c0_14] : memref<1x128xf32, #tpu.memory_space<vmem>>, vector<1x128xf32>
    %24 = vector.broadcast %23 : vector<1x128xf32> to vector<32x128xf32>
    %25 = arith.addf %22, %24 : vector<32x128xf32>
    %cst_15 = arith.constant 0.000000e+00 : f32
    %26 = vector.broadcast %cst_15 : f32 to vector<32x128xf32>
    %27 = arith.maximumf %25, %26 : vector<32x128xf32>
    %28 = arith.truncf %27 : vector<32x128xf32> to vector<32x128xbf16>
    %c0_16 = arith.constant 0 : index
    %c0_17 = arith.constant 0 : index
    %29 = vector.load %arg4[%c0_16, %c0_17] : memref<128x384xbf16, #tpu.memory_space<vmem>>, vector<128x384xbf16>
    %cst_18 = arith.constant dense<0.000000e+00> : vector<32x384xf32>
    %30 = tpu.matmul %28, %29, %cst_18 {dimension_numbers = #tpu.dot_dimension_numbers<[1], [0], [0], [1], [0, 0, 1, 1], [], []>} : vector<32x128xbf16>, vector<128x384xbf16>, vector<32x384xf32> -> vector<32x384xf32>
    %c0_19 = arith.constant 0 : index
    %c0_20 = arith.constant 0 : index
    %31 = vector.load %arg12[%c0_19, %c0_20] : memref<32x384xf32, #tpu.memory_space<vmem>>, vector<32x384xf32>
    tpu.vector_store %arg12[%c0_19, %c0_20], %30 {strides = array<i32>} : memref<32x384xf32, #tpu.memory_space<vmem>>, vector<32x384xf32>,
    %cst_21 = arith.constant dense<0.000000e+00> : vector<384xf32>
    %32 = vector.multi_reduction <add>, %30, %cst_21 [0] : vector<32x384xf32> to vector<384xf32>
    %33 = vector.shape_cast %32 : vector<384xf32> to vector<1x384xf32>
    %c0_22 = arith.constant 0 : index
    %c0_23 = arith.constant 0 : index
    %34 = vector.load %arg7[%c0_22, %c0_23] : memref<384x384xbf16, #tpu.memory_space<vmem>>, vector<384x384xbf16>
    %cst_24 = arith.constant dense<0.000000e+00> : vector<1x384xf32>
    %35 = tpu.matmul %33, %34, %cst_24 {dimension_numbers = #tpu.dot_dimension_numbers<[1], [0], [0], [1], [0, 0, 1, 1], [], []>} : vector<1x384xf32>, vector<384x384xbf16>, vector<1x384xf32> -> vector<1x384xf32>
    %cst_25 = arith.constant 0.001953125 : f32
    %36 = vector.broadcast %cst_25 : f32 to vector<1x384xf32>
    %37 = arith.mulf %36, %35 : vector<1x384xf32>
    %38 = vector.broadcast %37 : vector<1x384xf32> to vector<32x384xf32>
    %39 = arith.subf %30, %38 : vector<32x384xf32>
    %40 = arith.mulf %39, %39 : vector<32x384xf32>
    %cst_26 = arith.constant dense<0.000000e+00> : vector<384xf32>
    %41 = vector.multi_reduction <add>, %40, %cst_26 [0] : vector<32x384xf32> to vector<384xf32>
    %42 = vector.shape_cast %41 : vector<384xf32> to vector<1x384xf32>
    %c0_27 = arith.constant 0 : index
    %c0_28 = arith.constant 0 : index
    %43 = vector.load %arg7[%c0_27, %c0_28] : memref<384x384xbf16, #tpu.memory_space<vmem>>, vector<384x384xbf16>
    %cst_29 = arith.constant dense<0.000000e+00> : vector<1x384xf32>
    %44 = tpu.matmul %42, %43, %cst_29 {dimension_numbers = #tpu.dot_dimension_numbers<[1], [0], [0], [1], [0, 0, 1, 1], [], []>} : vector<1x384xf32>, vector<384x384xbf16>, vector<1x384xf32> -> vector<1x384xf32>
    %cst_30 = arith.constant 0.001953125 : f32
    %45 = vector.broadcast %cst_30 : f32 to vector<1x384xf32>
    %46 = arith.mulf %45, %44 : vector<1x384xf32>
    %c0_31 = arith.constant 0 : index
    %c0_32 = arith.constant 0 : index
    %47 = vector.load %arg5[%c0_31, %c0_32] : memref<1x384xf32, #tpu.memory_space<vmem>>, vector<1x384xf32>
    %cst_33 = arith.constant 9.99999974E-6 : f32
    %48 = vector.broadcast %cst_33 : f32 to vector<1x384xf32>
    %49 = arith.addf %46, %48 : vector<1x384xf32>
    %50 = math.rsqrt %49 : vector<1x384xf32>
    %51 = arith.mulf %47, %50 : vector<1x384xf32>
    %52 = vector.broadcast %51 : vector<1x384xf32> to vector<32x384xf32>
    %53 = arith.mulf %39, %52 : vector<32x384xf32>
    %c0_34 = arith.constant 0 : index
    %c0_35 = arith.constant 0 : index
    %54 = vector.load %arg6[%c0_34, %c0_35] : memref<1x384xf32, #tpu.memory_space<vmem>>, vector<1x384xf32>
    %55 = vector.broadcast %54 : vector<1x384xf32> to vector<32x384xf32>
    %56 = arith.addf %53, %55 : vector<32x384xf32>
    %cst_36 = arith.constant 0.000000e+00 : f32
    %57 = vector.broadcast %cst_36 : f32 to vector<32x384xf32>
    %58 = arith.maximumf %56, %57 : vector<32x384xf32>
    %59 = arith.truncf %58 : vector<32x384xf32> to vector<32x384xbf16>
    %60 = arith.truncf %0 : vector<32x128xf32> to vector<32x128xbf16>
    %c0_37 = arith.constant 0 : index
    %c0_38 = arith.constant 0 : index
    %61 = vector.load %arg8[%c0_37, %c0_38] : memref<32x32xbf16, #tpu.memory_space<vmem>>, vector<32x32xbf16>
    %cst_39 = arith.constant dense<0.000000e+00> : vector<32x384xf32>
    %62 = tpu.matmul %61, %59, %cst_39 {dimension_numbers = #tpu.dot_dimension_numbers<[1], [0], [0], [1], [0, 0, 1, 1], [], []>} : vector<32x32xbf16>, vector<32x384xbf16>, vector<32x384xf32> -> vector<32x384xf32>
    %63 = arith.truncf %62 : vector<32x384xf32> to vector<32x384xbf16>
    %c0_40 = arith.constant 0 : index
    %c0_41 = arith.constant 0 : index
    %64 = vector.load %arg9[%c0_40, %c0_41] : memref<32x32xbf16, #tpu.memory_space<vmem>>, vector<32x32xbf16>
    %cst_42 = arith.constant dense<0.000000e+00> : vector<32x384xf32>
    %65 = tpu.matmul %64, %59, %cst_42 {dimension_numbers = #tpu.dot_dimension_numbers<[1], [0], [0], [1], [0, 0, 1, 1], [], []>} : vector<32x32xbf16>, vector<32x384xbf16>, vector<32x384xf32> -> vector<32x384xf32>
    %66 = arith.truncf %65 : vector<32x384xf32> to vector<32x384xbf16>
    tpu.wait_dma2 semaphore(%arg14 : memref<!tpu.dma_semaphore, #tpu.memory_space<semaphore_mem>>) src(%arg10 : memref<1280x384xbf16, #tpu.memory_space<any>>) dst(%arg13 : memref<1280x384xbf16, #tpu.memory_space<vmem>>)
    %c0_43 = arith.constant 0 : index
    %c0_44 = arith.constant 0 : index
    %67 = vector.load %arg13[%c0_43, %c0_44] : memref<1280x384xbf16, #tpu.memory_space<vmem>>, vector<384x384xbf16>
    %cst_45 = arith.constant dense<0.000000e+00> : vector<32x384xf32>
    %68 = tpu.matmul %63, %67, %cst_45 {dimension_numbers = #tpu.dot_dimension_numbers<[1], [0], [0], [1], [0, 0, 1, 1], [], []>} : vector<32x384xbf16>, vector<384x384xbf16>, vector<32x384xf32> -> vector<32x384xf32>
    %c384 = arith.constant 384 : index
    %c0_46 = arith.constant 0 : index
    %69 = vector.load %arg13[%c384, %c0_46] : memref<1280x384xbf16, #tpu.memory_space<vmem>>, vector<384x384xbf16>
    %cst_47 = arith.constant dense<0.000000e+00> : vector<32x384xf32>
    %70 = tpu.matmul %59, %69, %cst_47 {dimension_numbers = #tpu.dot_dimension_numbers<[1], [0], [0], [1], [0, 0, 1, 1], [], []>} : vector<32x384xbf16>, vector<384x384xbf16>, vector<32x384xf32> -> vector<32x384xf32>
    %71 = arith.addf %68, %70 : vector<32x384xf32>
    %c768 = arith.constant 768 : index
    %c0_48 = arith.constant 0 : index
    %72 = vector.load %arg13[%c768, %c0_48] : memref<1280x384xbf16, #tpu.memory_space<vmem>>, vector<384x384xbf16>
    %cst_49 = arith.constant dense<0.000000e+00> : vector<32x384xf32>
    %73 = tpu.matmul %66, %72, %cst_49 {dimension_numbers = #tpu.dot_dimension_numbers<[1], [0], [0], [1], [0, 0, 1, 1], [], []>} : vector<32x384xbf16>, vector<384x384xbf16>, vector<32x384xf32> -> vector<32x384xf32>
    %74 = arith.addf %71, %73 : vector<32x384xf32>
    %c1152 = arith.constant 1152 : index
    %c0_50 = arith.constant 0 : index
    %75 = vector.load %arg13[%c1152, %c0_50] : memref<1280x384xbf16, #tpu.memory_space<vmem>>, vector<128x384xbf16>
    %cst_51 = arith.constant dense<0.000000e+00> : vector<32x384xf32>
    %76 = tpu.matmul %60, %75, %cst_51 {dimension_numbers = #tpu.dot_dimension_numbers<[1], [0], [0], [1], [0, 0, 1, 1], [], []>} : vector<32x128xbf16>, vector<128x384xbf16>, vector<32x384xf32> -> vector<32x384xf32>
    %77 = arith.addf %74, %76 : vector<32x384xf32>
    %c0_52 = arith.constant 0 : index
    %c0_53 = arith.constant 0 : index
    %78 = vector.load %arg11[%c0_52, %c0_53] : memref<32x384xf32, #tpu.memory_space<vmem>>, vector<32x384xf32>
    tpu.vector_store %arg11[%c0_52, %c0_53], %77 {strides = array<i32>} : memref<32x384xf32, #tpu.memory_space<vmem>>, vector<32x384xf32>,
    return
  }
}

</mosaic_0001>

<llo_original>
// kernel: tpu_custom_call.1
$region0: #{tpu_custom_call.1}
  #allocation0 [shape = 'u32[]', space=smem, size = 0x4, offset = 0x4, fixed_abs, tag = 'smem constant byte address 0x4 - core index']
  #allocation1 [shape = 'u32[144,128]{1,0:T(1,128)}', space=vmem, size = 0x12000, scoped, tag = 'internal scratch']
  #allocation2 [shape = 'bf16[1280,384]{1,0:T(16,128)(2,1)}', space=vmem, size = 0xf0000, scoped, tag = 'scratch operand']
  #allocation3 [shape = 's32[1]{0}', space=sflag, size = 0x4, scoped, tag = 'scratch operand']
  #allocation18 [shape = 's32[]', space=sflag, size = 0x4, offset = 0, fixed_abs, tag = 'sflag constant byte address 0x0 - dummy sync flag']
  %s0 = inlined_call_operand.hbm [shape: f32[32,128], index: 0, kind: input, shape index: {}]
  %s1 = inlined_call_operand.vmem [shape: f32[1,128], index: 1, kind: input, shape index: {}]
  %s2 = inlined_call_operand.vmem [shape: f32[1,128], index: 2, kind: input, shape index: {}]
  %s3 = inlined_call_operand.hbm [shape: bf16[128,128], index: 3, kind: input, shape index: {}]
  %s4 = inlined_call_operand.hbm [shape: bf16[128,384], index: 4, kind: input, shape index: {}]
  %s5 = inlined_call_operand.hbm [shape: f32[1,384], index: 5, kind: input, shape index: {}]
  %s6 = inlined_call_operand.hbm [shape: f32[1,384], index: 6, kind: input, shape index: {}]
  %s7 = inlined_call_operand.hbm [shape: bf16[384,384], index: 7, kind: input, shape index: {}]
  %s8 = inlined_call_operand.vmem [shape: bf16[32,32], index: 8, kind: input, shape index: {}]
  %s9 = inlined_call_operand.vmem [shape: bf16[32,32], index: 9, kind: input, shape index: {}]
  %s10 = inlined_call_operand.hbm [shape: bf16[1280,384], index: 10, kind: input, shape index: {}]
  %s11 = inlined_call_operand.hbm [shape: f32[32,384], index: 11, kind: output, shape index: {0}]
  %s12 = inlined_call_operand.hbm [shape: f32[32,384], index: 12, kind: output, shape index: {1}]
  %13 = xla_tuple %s11, %s12
  %s14 = sld [smem:[#allocation0]]
  $region82: #{tpu_custom_call.1} parent=0
    _
  %s16 = ssub.s32 1, %s14
  %s17 = scalar_select 0, %s16, %s14
  $region1: #{tpu_custom_call.1} parent=0
    #allocation4 [shape = 'u8[16384]{0}', space=vmem, size = 0x4000, scoped, tag = 'input window, operand 0, single buffered']
    #allocation5 [shape = 's32[1]{0}', space=sflag, size = 0x4, scoped, tag = 'scoped memory for tpu_custom_call.1']
    #allocation6 [shape = 's32[1]{0}', space=sflag, size = 0x4, scoped, tag = 'scoped memory for tpu_custom_call.1']
    #allocation7 [shape = 'u8[32768]{0}', space=vmem, size = 0x8000, scoped, tag = 'input window, operand 3, single buffered']
    #allocation8 [shape = 's32[1]{0}', space=sflag, size = 0x4, scoped, tag = 'scoped memory for tpu_custom_call.1']
    #allocation9 [shape = 'u8[98304]{0}', space=vmem, size = 0x18000, scoped, tag = 'input window, operand 4, single buffered']
    #allocation10 [shape = 'u8[1536]{0}', space=vmem, size = 0x800, scoped, tag = 'input window, operand 5, single buffered']
    #allocation11 [shape = 's32[1]{0}', space=sflag, size = 0x4, scoped, tag = 'scoped memory for tpu_custom_call.1']
    #allocation12 [shape = 'u8[1536]{0}', space=vmem, size = 0x800, scoped, tag = 'input window, operand 6, single buffered']
    #allocation13 [shape = 'u8[294912]{0}', space=vmem, size = 0x48000, scoped, tag = 'input window, operand 7, single buffered']
    #allocation14 [shape = 's32[1]{0}', space=sflag, size = 0x4, scoped, tag = 'scoped memory for tpu_custom_call.1']
    #allocation15 [shape = 'u8[49152]{0}', space=vmem, size = 0xc000, scoped, tag = 'output window, operand 0, single buffered']
    #allocation16 [shape = 'u8[49152]{0}', space=vmem, size = 0xc000, scoped, tag = 'output window, operand 1, single buffered']
    #allocation17 [shape = 's32[1]{0}', space=sflag, size = 0x4, scoped, tag = 'scoped memory for tpu_custom_call.1']
    #allocation19 [shape = 'u32[9]{0}', space=smem, size = 0x24, scoped, tag = 'DMA stride descriptor']
    %18 = vsyncpa [#allocation5], 0
    %19 = vsyncpa [#allocation8], 0
    %20 = vsyncpa [#allocation11], 0
    %21 = vsyncpa [#allocation14], 0
    %22 = vsyncpa [#allocation6], 0
    %23 = vsyncpa [#allocation17], 0
    // Predicated region
    $region2: #{tpu_custom_call.1} parent=1 // pred_check
      _
    $region3: #{tpu_custom_call.1} parent=1 // pred_check_branch
      %25 = sbr.rel (0) target = $region5
    $region4: #{tpu_custom_call.1} parent=1 // pred_region
      %s27 = ssub.s32 512, 512
      %28 = vsyncadd [#allocation5], %s27
      %s29 = sshll.u32 [#allocation4], 4
      %s30 = int_to_ptr.vmem [resolvable:$true] %s29
      %35 = dma.hbm_to_vmem [thread:$0]  %s0, 512, %s30, [#allocation5], 128, 128, 8
    $region5: #{tpu_custom_call.1} parent=1 // pred_fallthru
      _
    // Predicated region
    $region6: #{tpu_custom_call.1} parent=1 // pred_check
      _
    $region7: #{tpu_custom_call.1} parent=1 // pred_check_branch
      %37 = sbr.rel (0) target = $region9
    $region8: #{tpu_custom_call.1} parent=1 // pred_region
      _
    $region9: #{tpu_custom_call.1} parent=1 // pred_fallthru
      _
    // Predicated region
    $region10: #{tpu_custom_call.1} parent=1 // pred_check
      _
    $region11: #{tpu_custom_call.1} parent=1 // pred_check_branch
      %39 = sbr.rel (0) target = $region13
    $region12: #{tpu_custom_call.1} parent=1 // pred_region
      _
    $region13: #{tpu_custom_call.1} parent=1 // pred_fallthru
      _
    // Predicated region
    $region14: #{tpu_custom_call.1} parent=1 // pred_check
      _
    $region15: #{tpu_custom_call.1} parent=1 // pred_check_branch
      %41 = sbr.rel (0) target = $region17
    $region16: #{tpu_custom_call.1} parent=1 // pred_region
      %s43 = ssub.s32 1024, 1024
      %44 = vsyncadd [#allocation8], %s43
      %s45 = sshll.u32 [#allocation7], 4
      %s46 = int_to_ptr.vmem [resolvable:$true] %s45
      %51 = dma.hbm_to_vmem [thread:$0]  %s3, 1024, %s46, [#allocation8], 64, 64, 4
    $region17: #{tpu_custom_call.1} parent=1 // pred_fallthru
      _
    // Predicated region
    $region18: #{tpu_custom_call.1} parent=1 // pred_check
      _
    $region19: #{tpu_custom_call.1} parent=1 // pred_check_branch
      %53 = sbr.rel (0) target = $region21
    $region20: #{tpu_custom_call.1} parent=1 // pred_region
      %s55 = ssub.s32 3072, 3072
      %56 = vsyncadd [#allocation8], %s55
      %s57 = sshll.u32 [#allocation9], 4
      %s58 = int_to_ptr.vmem [resolvable:$true] %s57
      %63 = dma.hbm_to_vmem [thread:$0]  %s4, 3072, %s58, [#allocation8], 192, 192, 12
    $region21: #{tpu_custom_call.1} parent=1 // pred_fallthru
      _
    // Predicated region
    $region22: #{tpu_custom_call.1} parent=1 // pred_check
      _
    $region23: #{tpu_custom_call.1} parent=1 // pred_check_branch
      %65 = sbr.rel (0) target = $region25
    $region24: #{tpu_custom_call.1} parent=1 // pred_region
      %s67 = ssub.s32 48, 48
      %68 = vsyncadd [#allocation11], %s67
      %s70 = sshll.u32 [#allocation10], 4
      %s71 = int_to_ptr.vmem [resolvable:$true] %s70
      %73 = dma.hbm_to_vmem [thread:$0]  %s5, 48, %s71, [#allocation11]
    $region25: #{tpu_custom_call.1} parent=1 // pred_fallthru
      _
    // Predicated region
    $region26: #{tpu_custom_call.1} parent=1 // pred_check
      _
    $region27: #{tpu_custom_call.1} parent=1 // pred_check_branch
      %75 = sbr.rel (0) target = $region29
    $region28: #{tpu_custom_call.1} parent=1 // pred_region
      %s77 = ssub.s32 48, 48
      %78 = vsyncadd [#allocation11], %s77
      %s80 = sshll.u32 [#allocation12], 4
      %s81 = int_to_ptr.vmem [resolvable:$true] %s80
      %83 = dma.hbm_to_vmem [thread:$0]  %s6, 48, %s81, [#allocation11]
    $region29: #{tpu_custom_call.1} parent=1 // pred_fallthru
      _
    // Predicated region
    $region30: #{tpu_custom_call.1} parent=1 // pred_check
      _
    $region31: #{tpu_custom_call.1} parent=1 // pred_check_branch
      %85 = sbr.rel (0) target = $region33
    $region32: #{tpu_custom_call.1} parent=1 // pred_region
      %s87 = ssub.s32 9216, 9216
      %88 = vsyncadd [#allocation14], %s87
      %s89 = sshll.u32 [#allocation13], 4
      %s90 = int_to_ptr.vmem [resolvable:$true] %s89
      %95 = dma.hbm_to_vmem [thread:$0]  %s7, 9216, %s90, [#allocation14], 192, 192, 12
    $region33: #{tpu_custom_call.1} parent=1 // pred_fallthru
      _
    // Predicated region
    $region34: #{tpu_custom_call.1} parent=1 // pred_check
      _
    $region35: #{tpu_custom_call.1} parent=1 // pred_check_branch
      %97 = sbr.rel (0) target = $region37
    $region36: #{tpu_custom_call.1} parent=1 // pred_region
      _
    $region37: #{tpu_custom_call.1} parent=1 // pred_fallthru
      _
    // Predicated region
    $region38: #{tpu_custom_call.1} parent=1 // pred_check
      _
    $region39: #{tpu_custom_call.1} parent=1 // pred_check_branch
      %99 = sbr.rel (0) target = $region41
    $region40: #{tpu_custom_call.1} parent=1 // pred_region
      _
    $region41: #{tpu_custom_call.1} parent=1 // pred_fallthru
      _
    // Predicated region
    $region42: #{tpu_custom_call.1} parent=1 // pred_check
      _
    $region43: #{tpu_custom_call.1} parent=1 // pred_check_branch
      %101 = sbr.rel (0) target = $region45
    $region44: #{tpu_custom_call.1} parent=1 // pred_region
      %102 = dma.done [#allocation5], 512
    $region45: #{tpu_custom_call.1} parent=1 // pred_fallthru
      _
    // Predicated region
    $region46: #{tpu_custom_call.1} parent=1 // pred_check
      _
    $region47: #{tpu_custom_call.1} parent=1 // pred_check_branch
      %104 = sbr.rel (0) target = $region49
    $region48: #{tpu_custom_call.1} parent=1 // pred_region
      %105 = dma.done [#allocation8], 1024
    $region49: #{tpu_custom_call.1} parent=1 // pred_fallthru
      _
    // Predicated region
    $region50: #{tpu_custom_call.1} parent=1 // pred_check
      _
    $region51: #{tpu_custom_call.1} parent=1 // pred_check_branch
      %107 = sbr.rel (0) target = $region53
    $region52: #{tpu_custom_call.1} parent=1 // pred_region
      %108 = dma.done [#allocation8], 3072
    $region53: #{tpu_custom_call.1} parent=1 // pred_fallthru
      _
    // Predicated region
    $region54: #{tpu_custom_call.1} parent=1 // pred_check
      _
    $region55: #{tpu_custom_call.1} parent=1 // pred_check_branch
      %110 = sbr.rel (0) target = $region57
    $region56: #{tpu_custom_call.1} parent=1 // pred_region
      %111 = dma.done [#allocation11], 48
    $region57: #{tpu_custom_call.1} parent=1 // pred_fallthru
      _
    // Predicated region
    $region58: #{tpu_custom_call.1} parent=1 // pred_check
      _
    $region59: #{tpu_custom_call.1} parent=1 // pred_check_branch
      %113 = sbr.rel (0) target = $region61
    $region60: #{tpu_custom_call.1} parent=1 // pred_region
      %114 = dma.done [#allocation11], 48
    $region61: #{tpu_custom_call.1} parent=1 // pred_fallthru
      _
    // Predicated region
    $region62: #{tpu_custom_call.1} parent=1 // pred_check
      _
    $region63: #{tpu_custom_call.1} parent=1 // pred_check_branch
      %116 = sbr.rel (0) target = $region65
    $region64: #{tpu_custom_call.1} parent=1 // pred_region
      %117 = dma.done [#allocation14], 9216
    $region65: #{tpu_custom_call.1} parent=1 // pred_fallthru
      _
    %s120 = sshll.u32 1, 14
    %s121 = sxor.u32 4294967295, %s120
    %s123 = sld [smem:[#allocation0]]
    %s124 = sadd.s32 2, %s123
    %s126 = sshll.u32 7, 26
    %s127 = sxor.u32 4294967295, %s126
    %s128 = sand.u32 0, %s127
    %s129 = sshll.u32 %s124, 26
    %s130 = sor.u32 %s128, %s129
    %s131 = sshll.u32 [#allocation2], 4
    %s132 = int_to_ptr.vmem [resolvable:$true] %s131
    %135 = sst [smem:[#allocation19]] 384
    %s136 = scalar_lea.smem [#allocation19], 1
    %137 = sst [smem:[%s136]] 384
    %s138 = scalar_lea.smem [#allocation19], 2
    %139 = sst [smem:[%s138]] 3
    %s140 = scalar_lea.smem [#allocation19], 3
    %141 = sst [smem:[%s140]] 64
    %s142 = scalar_lea.smem [#allocation19], 4
    %143 = sst [smem:[%s142]] 128
    %s144 = scalar_lea.smem [#allocation19], 5
    %145 = sst [smem:[%s144]] 2
    %s146 = scalar_lea.smem [#allocation19], 6
    %147 = sst [smem:[%s146]] 192
    %s148 = scalar_lea.smem [#allocation19], 7
    %149 = sst [smem:[%s148]] 64
    %s150 = scalar_lea.smem [#allocation19], 8
    %151 = sst [smem:[%s150]] 4
    %153 = dma.general %s10, 30720, %s132, [#allocation3], [#allocation18], [#allocation19], %s130, 0
    %v154 = vld [vmem:[#allocation4] sm:$0xff]
    %v155 = vld [vmem:[#allocation4 + $0x8] sm:$0xff]
    %v156 = vld [vmem:[#allocation4 + $0x10] sm:$0xff]
    %v157 = vld [vmem:[#allocation4 + $0x18] sm:$0xff]
    %v158 = vadd.f32 %v154, %v155
    %v159 = vadd.f32 %v158, %v156
    %v160 = vadd.f32 %v159, %v157
    %v161 = vrot.slane %v160, 4
    %v162 = vadd.f32 %v160, %v161
    %v163 = vrot.slane %v162, 2
    %v164 = vadd.f32 %v162, %v163
    %v165 = vrot.slane %v164, 1
    %v166 = vadd.f32 %v164, %v165
    %v167 = vld [vmem:[#allocation7] sm:$0xf]
    %v168 = vld [vmem:[#allocation7 + $0x4] sm:$0xf]
    %v169 = vld [vmem:[#allocation7 + $0x8] sm:$0xf]
    %v170 = vld [vmem:[#allocation7 + $0xc] sm:$0xf]
    %v171 = vld [vmem:[#allocation7 + $0x10] sm:$0xf]
    %v172 = vld [vmem:[#allocation7 + $0x14] sm:$0xf]
    %v173 = vld [vmem:[#allocation7 + $0x18] sm:$0xf]
    %v174 = vld [vmem:[#allocation7 + $0x1c] sm:$0xf]
    %v175 = vld [vmem:[#allocation7 + $0x20] sm:$0xf]
    %v176 = vld [vmem:[#allocation7 + $0x24] sm:$0xf]
    %v177 = vld [vmem:[#allocation7 + $0x28] sm:$0xf]
    %v178 = vld [vmem:[#allocation7 + $0x2c] sm:$0xf]
    %v179 = vld [vmem:[#allocation7 + $0x30] sm:$0xf]
    %v180 = vld [vmem:[#allocation7 + $0x34] sm:$0xf]
    %v181 = vld [vmem:[#allocation7 + $0x38] sm:$0xf]
    %v182 = vld [vmem:[#allocation7 + $0x3c] sm:$0xf]
    %v199 = vunpack.c.l.b16 %v167
    %v200 = vunpack.c.l.b16 %v168
    %v201 = vunpack.c.l.b16 %v169
    %v202 = vunpack.c.l.b16 %v170
    %v203 = vunpack.c.l.b16 %v171
    %v204 = vunpack.c.l.b16 %v172
    %v205 = vunpack.c.l.b16 %v173
    %v206 = vunpack.c.l.b16 %v174
    %v207 = vunpack.c.l.b16 %v175
    %v208 = vunpack.c.l.b16 %v176
    %v209 = vunpack.c.l.b16 %v177
    %v210 = vunpack.c.l.b16 %v178
    %v211 = vunpack.c.l.b16 %v179
    %v212 = vunpack.c.l.b16 %v180
    %v213 = vunpack.c.l.b16 %v181
    %v214 = vunpack.c.l.b16 %v182
    %v215 = vpack.c.b16 %v200, %v199
    %v216 = vpack.c.b16 %v202, %v201
    %v217 = vpack.c.b16 %v204, %v203
    %v218 = vpack.c.b16 %v206, %v205
    %v219 = vpack.c.b16 %v208, %v207
    %v220 = vpack.c.b16 %v210, %v209
    %v221 = vpack.c.b16 %v212, %v211
    %v222 = vpack.c.b16 %v214, %v213
    %231 = vmatprep.subr.bf16.mxu0 0
    %232 = vmatpush1.bf16.msra.mxu0 %v215
    %233 = vmatprep.subr.bf16.mxu0 0
    %234 = vmatpush1.bf16.msra.mxu0 %v216
    %235 = vmatprep.subr.bf16.mxu0 0
    %236 = vmatpush1.bf16.msra.mxu0 %v217
    %237 = vmatprep.subr.bf16.mxu0 0
    %238 = vmatpush1.bf16.msra.mxu0 %v218
    %239 = vmatprep.subr.bf16.mxu0 0
    %240 = vmatpush1.bf16.msra.mxu0 %v219
    %241 = vmatprep.subr.bf16.mxu0 0
    %242 = vmatpush1.bf16.msra.mxu0 %v220
    %243 = vmatprep.subr.bf16.mxu0 0
    %244 = vmatpush1.bf16.msra.mxu0 %v221
    %245 = vmatprep.subr.bf16.mxu0 0
    %246 = vmatpush1.bf16.msra.mxu0 %v222
    %247 = vmatprep.subr.bf16.mxu0 0
    %248 = vmatpush1.bf16.msra.mxu0 0
    %249 = vmatprep.subr.bf16.mxu0 0
    %250 = vmatpush1.bf16.msra.mxu0 0
    %251 = vmatprep.subr.bf16.mxu0 0
    %252 = vmatpush1.bf16.msra.mxu0 0
    %253 = vmatprep.subr.bf16.mxu0 0
    %254 = vmatpush1.bf16.msra.mxu0 0
    %255 = vmatprep.subr.bf16.mxu0 0
    %256 = vmatpush1.bf16.msra.mxu0 0
    %257 = vmatprep.subr.bf16.mxu0 0
    %258 = vmatpush1.bf16.msra.mxu0 0
    %259 = vmatprep.subr.bf16.mxu0 0
    %260 = vmatpush1.bf16.msra.mxu0 0
    %261 = vmatprep.subr.bf16.mxu0 0
    %262 = vmatpush1.bf16.msra.mxu0 0
    %263 = vmatprep.mubr.f32.mxu0 0.0
    %264 = vmatmul.mubr.f32.gmra.mrb[0].mxu0 %v166
    %v265 = vpop.f32.mrb[0].mxu0
    %v266 = vadd.f32 0.0, %v265
    %v267 = vpop.f32.mrb[0].mxu0
    %268 = vdwg.mxu0
    %v269 = vmul.f32 %v266, 0.001953125
    %v270 = vlaneseq
    %v271 = vshrl.u32 %v270, 7
    %v272 = vsub.s32 0, %v271
    %v273 = vrot.slane %v269, %v272
    %v274 = vsub.f32 %v154, %v273
    %v275 = vsub.f32 %v155, %v273
    %v276 = vsub.f32 %v156, %v273
    %v277 = vsub.f32 %v157, %v273
    %v278 = vmul.f32 %v274, %v274
    %v279 = vmul.f32 %v275, %v275
    %v280 = vmul.f32 %v276, %v276
    %v281 = vmul.f32 %v277, %v277
    %v282 = vadd.f32 %v278, %v279
    %v283 = vadd.f32 %v282, %v280
    %v284 = vadd.f32 %v283, %v281
    %v285 = vrot.slane %v284, 4
    %v286 = vadd.f32 %v284, %v285
    %v287 = vrot.slane %v286, 2
    %v288 = vadd.f32 %v286, %v287
    %v289 = vrot.slane %v288, 1
    %v290 = vadd.f32 %v288, %v289
    %291 = vmatprep.subr.bf16.mxu0 0
    %292 = vmatpush1.bf16.msra.mxu0 %v215
    %293 = vmatprep.subr.bf16.mxu0 0
    %294 = vmatpush1.bf16.msra.mxu0 %v216
    %295 = vmatprep.subr.bf16.mxu0 0
    %296 = vmatpush1.bf16.msra.mxu0 %v217
    %297 = vmatprep.subr.bf16.mxu0 0
    %298 = vmatpush1.bf16.msra.mxu0 %v218
    %299 = vmatprep.subr.bf16.mxu0 0
    %300 = vmatpush1.bf16.msra.mxu0 %v219
    %301 = vmatprep.subr.bf16.mxu0 0
    %302 = vmatpush1.bf16.msra.mxu0 %v220
    %303 = vmatprep.subr.bf16.mxu0 0
    %304 = vmatpush1.bf16.msra.mxu0 %v221
    %305 = vmatprep.subr.bf16.mxu0 0
    %306 = vmatpush1.bf16.msra.mxu0 %v222
    %307 = vmatprep.subr.bf16.mxu0 0
    %308 = vmatpush1.bf16.msra.mxu0 0
    %309 = vmatprep.subr.bf16.mxu0 0
    %310 = vmatpush1.bf16.msra.mxu0 0
    %311 = vmatprep.subr.bf16.mxu0 0
    %312 = vmatpush1.bf16.msra.mxu0 0
    %313 = vmatprep.subr.bf16.mxu0 0
    %314 = vmatpush1.bf16.msra.mxu0 0
    %315 = vmatprep.subr.bf16.mxu0 0
    %316 = vmatpush1.bf16.msra.mxu0 0
    %317 = vmatprep.subr.bf16.mxu0 0
    %318 = vmatpush1.bf16.msra.mxu0 0
    %319 = vmatprep.subr.bf16.mxu0 0
    %320 = vmatpush1.bf16.msra.mxu0 0
    %321 = vmatprep.subr.bf16.mxu0 0
    %322 = vmatpush1.bf16.msra.mxu0 0
    %323 = vmatprep.mubr.f32.mxu0 0.0
    %324 = vmatmul.mubr.f32.gmra.mrb[0].mxu0 %v290
    %v325 = vpop.f32.mrb[0].mxu0
    %v326 = vadd.f32 0.0, %v325
    %v327 = vpop.f32.mrb[0].mxu0
    %328 = vdwg.mxu0
    %v329 = vmul.f32 %v326, 0.001953125
    %v330 = vld [vmem:[%s1] sm:$0x1]
    %v331 = vadd.f32 %v329, 1e-05
    %v332 = vrsqrt.pop %v331
    %v333 = vmul.f32 %v330, %v332
    %v335 = vlaneseq
    %v336 = vshrl.u32 %v335, 7
    %v337 = vsub.s32 0, %v336
    %v338 = vrot.slane %v333, %v337
    %v340 = vmul.f32 %v274, %v338
    %v341 = vmul.f32 %v275, %v338
    %v342 = vmul.f32 %v276, %v338
    %v343 = vmul.f32 %v277, %v338
    %v344 = vld [vmem:[%s2] sm:$0x1]
    %v346 = vlaneseq
    %v347 = vshrl.u32 %v346, 7
    %v348 = vsub.s32 0, %v347
    %v349 = vrot.slane %v344, %v348
    %v351 = vadd.f32 %v340, %v349
    %v352 = vadd.f32 %v341, %v349
    %v353 = vadd.f32 %v342, %v349
    %v354 = vadd.f32 %v343, %v349
    %v355 = vmax.f32 %v351, 0.0
    %v356 = vmax.f32 %v352, 0.0
    %v357 = vmax.f32 %v353, 0.0
    %v358 = vmax.f32 %v354, 0.0
    %v359 = vpack.c.bf16 %v356, %v355
    %v360 = vpack.c.bf16 %v358, %v357
    %v361 = vld [vmem:[#allocation9] sm:$0xff]
    %v362 = vld [vmem:[#allocation9 + $0x8] sm:$0xf]
    %v363 = vld [vmem:[#allocation9 + $0xc] sm:$0xff]
    %v364 = vld [vmem:[#allocation9 + $0x14] sm:$0xf]
    %v365 = vld [vmem:[#allocation9 + $0x18] sm:$0xff]
    %v366 = vld [vmem:[#allocation9 + $0x20] sm:$0xf]
    %v367 = vld [vmem:[#allocation9 + $0x24] sm:$0xff]
    %v368 = vld [vmem:[#allocation9 + $0x2c] sm:$0xf]
    %v369 = vld [vmem:[#allocation9 + $0x30] sm:$0xff]
    %v370 = vld [vmem:[#allocation9 + $0x38] sm:$0xf]
    %v371 = vld [vmem:[#allocation9 + $0x3c] sm:$0xff]
    %v372 = vld [vmem:[#allocation9 + $0x44] sm:$0xf]
    %v373 = vld [vmem:[#allocation9 + $0x48] sm:$0xff]
    %v374 = vld [vmem:[#allocation9 + $0x50] sm:$0xf]
    %v375 = vld [vmem:[#allocation9 + $0x54] sm:$0xff]
    %v376 = vld [vmem:[#allocation9 + $0x5c] sm:$0xf]
    %v377 = vld [vmem:[#allocation9 + $0x60] sm:$0xff]
    %v378 = vld [vmem:[#allocation9 + $0x68] sm:$0xf]
    %v379 = vld [vmem:[#allocation9 + $0x6c] sm:$0xff]
    %v380 = vld [vmem:[#allocation9 + $0x74] sm:$0xf]
    %v381 = vld [vmem:[#allocation9 + $0x78] sm:$0xff]
    %v382 = vld [vmem:[#allocation9 + $0x80] sm:$0xf]
    %v383 = vld [vmem:[#allocation9 + $0x84] sm:$0xff]
    %v384 = vld [vmem:[#allocation9 + $0x8c] sm:$0xf]
    %v385 = vld [vmem:[#allocation9 + $0x90] sm:$0xff]
    %v386 = vld [vmem:[#allocation9 + $0x98] sm:$0xf]
    %v387 = vld [vmem:[#allocation9 + $0x9c] sm:$0xff]
    %v388 = vld [vmem:[#allocation9 + $0xa4] sm:$0xf]
    %v389 = vld [vmem:[#allocation9 + $0xa8] sm:$0xff]
    %v390 = vld [vmem:[#allocation9 + $0xb0] sm:$0xf]
    %v391 = vld [vmem:[#allocation9 + $0xb4] sm:$0xff]
    %v392 = vld [vmem:[#allocation9 + $0xbc] sm:$0xf]
    %v425 = vunpack.c.l.b16 %v361
    %v426 = vunpack.c.h.b16 %v361
    %v427 = vunpack.c.l.b16 %v362
    %v428 = vunpack.c.l.b16 %v363
    %v429 = vunpack.c.h.b16 %v363
    %v430 = vunpack.c.l.b16 %v364
    %v431 = vunpack.c.l.b16 %v365
    %v432 = vunpack.c.h.b16 %v365
    %v433 = vunpack.c.l.b16 %v366
    %v434 = vunpack.c.l.b16 %v367
    %v435 = vunpack.c.h.b16 %v367
    %v436 = vunpack.c.l.b16 %v368
    %v437 = vunpack.c.l.b16 %v369
    %v438 = vunpack.c.h.b16 %v369
    %v439 = vunpack.c.l.b16 %v370
    %v440 = vunpack.c.l.b16 %v371
    %v441 = vunpack.c.h.b16 %v371
    %v442 = vunpack.c.l.b16 %v372
    %v443 = vunpack.c.l.b16 %v373
    %v444 = vunpack.c.h.b16 %v373
    %v445 = vunpack.c.l.b16 %v374
    %v446 = vunpack.c.l.b16 %v375
    %v447 = vunpack.c.h.b16 %v375
    %v448 = vunpack.c.l.b16 %v376
    %v449 = vunpack.c.l.b16 %v377
    %v450 = vunpack.c.h.b16 %v377
    %v451 = vunpack.c.l.b16 %v378
    %v452 = vunpack.c.l.b16 %v379
    %v453 = vunpack.c.h.b16 %v379
    %v454 = vunpack.c.l.b16 %v380
    %v455 = vunpack.c.l.b16 %v381
    %v456 = vunpack.c.h.b16 %v381
    %v457 = vunpack.c.l.b16 %v382
    %v458 = vunpack.c.l.b16 %v383
    %v459 = vunpack.c.h.b16 %v383
    %v460 = vunpack.c.l.b16 %v384
    %v461 = vunpack.c.l.b16 %v385
    %v462 = vunpack.c.h.b16 %v385
    %v463 = vunpack.c.l.b16 %v386
    %v464 = vunpack.c.l.b16 %v387
    %v465 = vunpack.c.h.b16 %v387
    %v466 = vunpack.c.l.b16 %v388
    %v467 = vunpack.c.l.b16 %v389
    %v468 = vunpack.c.h.b16 %v389
    %v469 = vunpack.c.l.b16 %v390
    %v470 = vunpack.c.l.b16 %v391
    %v471 = vunpack.c.h.b16 %v391
    %v472 = vunpack.c.l.b16 %v392
    %v473 = vpack.c.b16 %v428, %v425
    %v474 = vpack.c.b16 %v429, %v426
    %v475 = vpack.c.b16 %v430, %v427
    %v476 = vpack.c.b16 %v434, %v431
    %v477 = vpack.c.b16 %v435, %v432
    %v478 = vpack.c.b16 %v436, %v433
    %v479 = vpack.c.b16 %v440, %v437
    %v480 = vpack.c.b16 %v441, %v438
    %v481 = vpack.c.b16 %v442, %v439
    %v482 = vpack.c.b16 %v446, %v443
    %v483 = vpack.c.b16 %v447, %v444
    %v484 = vpack.c.b16 %v448, %v445
    %v485 = vpack.c.b16 %v452, %v449
    %v486 = vpack.c.b16 %v453, %v450
    %v487 = vpack.c.b16 %v454, %v451
    %v488 = vpack.c.b16 %v458, %v455
    %v489 = vpack.c.b16 %v459, %v456
    %v490 = vpack.c.b16 %v460, %v457
    %v491 = vpack.c.b16 %v464, %v461
    %v492 = vpack.c.b16 %v465, %v462
    %v493 = vpack.c.b16 %v466, %v463
    %v494 = vpack.c.b16 %v470, %v467
    %v495 = vpack.c.b16 %v471, %v468
    %v496 = vpack.c.b16 %v472, %v469
    %521 = vmatprep.subr.bf16.mxu0 %v474
    %522 = vmatpush1.bf16.msra.mxu0 %v473
    %523 = vmatprep.subr.bf16.mxu0 %v477
    %524 = vmatpush1.bf16.msra.mxu0 %v476
    %525 = vmatprep.subr.bf16.mxu0 %v480
    %526 = vmatpush1.bf16.msra.mxu0 %v479
    %527 = vmatprep.subr.bf16.mxu0 %v483
    %528 = vmatpush1.bf16.msra.mxu0 %v482
    %529 = vmatprep.subr.bf16.mxu0 %v486
    %530 = vmatpush1.bf16.msra.mxu0 %v485
    %531 = vmatprep.subr.bf16.mxu0 %v489
    %532 = vmatpush1.bf16.msra.mxu0 %v488
    %533 = vmatprep.subr.bf16.mxu0 %v492
    %534 = vmatpush1.bf16.msra.mxu0 %v491
    %535 = vmatprep.subr.bf16.mxu0 %v495
    %536 = vmatpush1.bf16.msra.mxu0 %v494
    %537 = vmatprep.subr.bf16.mxu0 0
    %538 = vmatpush1.bf16.msra.mxu0 0
    %539 = vmatprep.subr.bf16.mxu0 0
    %540 = vmatpush1.bf16.msra.mxu0 0
    %541 = vmatprep.subr.bf16.mxu0 0
    %542 = vmatpush1.bf16.msra.mxu0 0
    %543 = vmatprep.subr.bf16.mxu0 0
    %544 = vmatpush1.bf16.msra.mxu0 0
    %545 = vmatprep.subr.bf16.mxu0 0
    %546 = vmatpush1.bf16.msra.mxu0 0
    %547 = vmatprep.subr.bf16.mxu0 0
    %548 = vmatpush1.bf16.msra.mxu0 0
    %549 = vmatprep.subr.bf16.mxu0 0
    %550 = vmatpush1.bf16.msra.mxu0 0
    %551 = vmatprep.subr.bf16.mxu0 0
    %552 = vmatpush1.bf16.msra.mxu0 0
    %553 = vmatprep.mubr.bf16.mxu0 0
    %554 = vmatmul.mubr.bf16.gmra.mrb[0].mxu0 %v359
    %v555 = vpop.f32.mrb[0].mxu0
    %v556 = vadd.f32 0.0, %v555
    %v557 = vpop.f32.mrb[0].mxu0
    %v558 = vadd.f32 0.0, %v557
    %v559 = vpop.f32.mrb[0].mxu0
    %v560 = vadd.f32 0.0, %v559
    %v561 = vpop.f32.mrb[0].mxu0
    %v562 = vadd.f32 0.0, %v561
    %563 = vmatprep.mubr.bf16.mxu0 0
    %564 = vmatmul.mubr.bf16.gmra.mrb[0].mxu0 %v360
    %v565 = vpop.f32.mrb[0].mxu0
    %v566 = vadd.f32 0.0, %v565
    %v567 = vpop.f32.mrb[0].mxu0
    %v568 = vadd.f32 0.0, %v567
    %v569 = vpop.f32.mrb[0].mxu0
    %v570 = vadd.f32 0.0, %v569
    %v571 = vpop.f32.mrb[0].mxu0
    %v572 = vadd.f32 0.0, %v571
    %573 = vdwg.mxu0
    %574 = vmatprep.subr.bf16.mxu0 0
    %575 = vmatpush1.bf16.msra.mxu0 %v475
    %576 = vmatprep.subr.bf16.mxu0 0
    %577 = vmatpush1.bf16.msra.mxu0 %v478
    %578 = vmatprep.subr.bf16.mxu0 0
    %579 = vmatpush1.bf16.msra.mxu0 %v481
    %580 = vmatprep.subr.bf16.mxu0 0
    %581 = vmatpush1.bf16.msra.mxu0 %v484
    %582 = vmatprep.subr.bf16.mxu0 0
    %583 = vmatpush1.bf16.msra.mxu0 %v487
    %584 = vmatprep.subr.bf16.mxu0 0
    %585 = vmatpush1.bf16.msra.mxu0 %v490
    %586 = vmatprep.subr.bf16.mxu0 0
    %587 = vmatpush1.bf16.msra.mxu0 %v493
    %588 = vmatprep.subr.bf16.mxu0 0
    %589 = vmatpush1.bf16.msra.mxu0 %v496
    %590 = vmatprep.subr.bf16.mxu0 0
    %591 = vmatpush1.bf16.msra.mxu0 0
    %592 = vmatprep.subr.bf16.mxu0 0
    %593 = vmatpush1.bf16.msra.mxu0 0
    %594 = vmatprep.subr.bf16.mxu0 0
    %595 = vmatpush1.bf16.msra.mxu0 0
    %596 = vmatprep.subr.bf16.mxu0 0
    %597 = vmatpush1.bf16.msra.mxu0 0
    %598 = vmatprep.subr.bf16.mxu0 0
    %599 = vmatpush1.bf16.msra.mxu0 0
    %600 = vmatprep.subr.bf16.mxu0 0
    %601 = vmatpush1.bf16.msra.mxu0 0
    %602 = vmatprep.subr.bf16.mxu0 0
    %603 = vmatpush1.bf16.msra.mxu0 0
    %604 = vmatprep.subr.bf16.mxu0 0
    %605 = vmatpush1.bf16.msra.mxu0 0
    %606 = vmatprep.mubr.bf16.mxu0 0
    %607 = vmatmul.mubr.bf16.gmra.mrb[0].mxu0 %v359
    %v608 = vpop.f32.mrb[0].mxu0
    %v609 = vadd.f32 0.0, %v608
    %v610 = vpop.f32.mrb[0].mxu0
    %v611 = vpop.f32.mrb[0].mxu0
    %v612 = vadd.f32 0.0, %v611
    %v613 = vpop.f32.mrb[0].mxu0
    %614 = vmatprep.mubr.bf16.mxu0 0
    %615 = vmatmul.mubr.bf16.gmra.mrb[0].mxu0 %v360
    %v616 = vpop.f32.mrb[0].mxu0
    %v617 = vadd.f32 0.0, %v616
    %v618 = vpop.f32.mrb[0].mxu0
    %v619 = vpop.f32.mrb[0].mxu0
    %v620 = vadd.f32 0.0, %v619
    %v621 = vpop.f32.mrb[0].mxu0
    %622 = vdwg.mxu0
    %623 = vst [vmem:[#allocation16] sm:$0xff] %v556
    %624 = vst [vmem:[#allocation16 + $0x8] sm:$0xff] %v558
    %625 = vst [vmem:[#allocation16 + $0x10] sm:$0xff] %v609
    %626 = vst [vmem:[#allocation16 + $0x18] sm:$0xff] %v560
    %627 = vst [vmem:[#allocation16 + $0x20] sm:$0xff] %v562
    %628 = vst [vmem:[#allocation16 + $0x28] sm:$0xff] %v612
    %629 = vst [vmem:[#allocation16 + $0x30] sm:$0xff] %v566
    %630 = vst [vmem:[#allocation16 + $0x38] sm:$0xff] %v568
    %631 = vst [vmem:[#allocation16 + $0x40] sm:$0xff] %v617
    %632 = vst [vmem:[#allocation16 + $0x48] sm:$0xff] %v570
    %633 = vst [vmem:[#allocation16 + $0x50] sm:$0xff] %v572
    %634 = vst [vmem:[#allocation16 + $0x58] sm:$0xff] %v620
    %v635 = vadd.f32 %v556, %v560
    %v636 = vadd.f32 %v635, %v566
    %v637 = vadd.f32 %v636, %v570
    %v638 = vrot.slane %v637, 4
    %v639 = vadd.f32 %v637, %v638
    %v640 = vrot.slane %v639, 2
    %v641 = vadd.f32 %v639, %v640
    %v642 = vrot.slane %v641, 1
    %v643 = vadd.f32 %v641, %v642
    %v644 = vadd.f32 %v558, %v562
    %v645 = vadd.f32 %v644, %v568
    %v646 = vadd.f32 %v645, %v572
    %v647 = vrot.slane %v646, 4
    %v648 = vadd.f32 %v646, %v647
    %v649 = vrot.slane %v648, 2
    %v650 = vadd.f32 %v648, %v649
    %v651 = vrot.slane %v650, 1
    %v652 = vadd.f32 %v650, %v651
    %v653 = vadd.f32 %v609, %v612
    %v654 = vadd.f32 %v653, %v617
    %v655 = vadd.f32 %v654, %v620
    %v656 = vrot.slane %v655, 4
    %v657 = vadd.f32 %v655, %v656
    %v658 = vrot.slane %v657, 2
    %v659 = vadd.f32 %v657, %v658
    %v660 = vrot.slane %v659, 1
    %v661 = vadd.f32 %v659, %v660
    %v662 = vld [vmem:[#allocation13] sm:$0xff]
    %v663 = vld [vmem:[#allocation13 + $0x8] sm:$0xf]
    %v664 = vld [vmem:[#allocation13 + $0xc] sm:$0xff]
    %v665 = vld [vmem:[#allocation13 + $0x14] sm:$0xf]
    %v666 = vld [vmem:[#allocation13 + $0x18] sm:$0xff]
    %v667 = vld [vmem:[#allocation13 + $0x20] sm:$0xf]
    %v668 = vld [vmem:[#allocation13 + $0x24] sm:$0xff]
    %v669 = vld [vmem:[#allocation13 + $0x2c] sm:$0xf]
    %v670 = vld [vmem:[#allocation13 + $0x30] sm:$0xff]
    %v671 = vld [vmem:[#allocation13 + $0x38] sm:$0xf]
    %v672 = vld [vmem:[#allocation13 + $0x3c] sm:$0xff]
    %v673 = vld [vmem:[#allocation13 + $0x44] sm:$0xf]
    %v674 = vld [vmem:[#allocation13 + $0x48] sm:$0xff]
    %v675 = vld [vmem:[#allocation13 + $0x50] sm:$0xf]
    %v676 = vld [vmem:[#allocation13 + $0x54] sm:$0xff]
    %v677 = vld [vmem:[#allocation13 + $0x5c] sm:$0xf]
    %v678 = vld [vmem:[#allocation13 + $0x60] sm:$0xff]
    %v679 = vld [vmem:[#allocation13 + $0x68] sm:$0xf]
    %v680 = vld [vmem:[#allocation13 + $0x6c] sm:$0xff]
    %v681 = vld [vmem:[#allocation13 + $0x74] sm:$0xf]
    %v682 = vld [vmem:[#allocation13 + $0x78] sm:$0xff]
    %v683 = vld [vmem:[#allocation13 + $0x80] sm:$0xf]
    %v684 = vld [vmem:[#allocation13 + $0x84] sm:$0xff]
    %v685 = vld [vmem:[#allocation13 + $0x8c] sm:$0xf]
    %v686 = vld [vmem:[#allocation13 + $0x90] sm:$0xff]
    %v687 = vld [vmem:[#allocation13 + $0x98] sm:$0xf]
    %v688 = vld [vmem:[#allocation13 + $0x9c] sm:$0xff]
    %v689 = vld [vmem:[#allocation13 + $0xa4] sm:$0xf]
    %v690 = vld [vmem:[#allocation13 + $0xa8] sm:$0xff]
    %v691 = vld [vmem:[#allocation13 + $0xb0] sm:$0xf]
    %v692 = vld [vmem:[#allocation13 + $0xb4] sm:$0xff]
    %v693 = vld [vmem:[#allocation13 + $0xbc] sm:$0xf]
    %v694 = vld [vmem:[#allocation13 + $0xc0] sm:$0xff]
    %v695 = vld [vmem:[#allocation13 + $0xc8] sm:$0xf]
    %v696 = vld [vmem:[#allocation13 + $0xcc] sm:$0xff]
    %v697 = vld [vmem:[#allocation13 + $0xd4] sm:$0xf]
    %v698 = vld [vmem:[#allocation13 + $0xd8] sm:$0xff]
    %v699 = vld [vmem:[#allocation13 + $0xe0] sm:$0xf]
    %v700 = vld [vmem:[#allocation13 + $0xe4] sm:$0xff]
    %v701 = vld [vmem:[#allocation13 + $0xec] sm:$0xf]
    %v702 = vld [vmem:[#allocation13 + $0xf0] sm:$0xff]
    %v703 = vld [vmem:[#allocation13 + $0xf8] sm:$0xf]
    %v704 = vld [vmem:[#allocation13 + $0xfc] sm:$0xff]
    %v705 = vld [vmem:[#allocation13 + $0x104] sm:$0xf]
    %v706 = vld [vmem:[#allocation13 + $0x108] sm:$0xff]
    %v707 = vld [vmem:[#allocation13 + $0x110] sm:$0xf]
    %v708 = vld [vmem:[#allocation13 + $0x114] sm:$0xff]
    %v709 = vld [vmem:[#allocation13 + $0x11c] sm:$0xf]
    %v710 = vld [vmem:[#allocation13 + $0x120] sm:$0xff]
    %v711 = vld [vmem:[#allocation13 + $0x128] sm:$0xf]
    %v712 = vld [vmem:[#allocation13 + $0x12c] sm:$0xff]
    %v713 = vld [vmem:[#allocation13 + $0x134] sm:$0xf]
    %v714 = vld [vmem:[#allocation13 + $0x138] sm:$0xff]
    %v715 = vld [vmem:[#allocation13 + $0x140] sm:$0xf]
    %v716 = vld [vmem:[#allocation13 + $0x144] sm:$0xff]
    %v717 = vld [vmem:[#allocation13 + $0x14c] sm:$0xf]
    %v718 = vld [vmem:[#allocation13 + $0x150] sm:$0xff]
    %v719 = vld [vmem:[#allocation13 + $0x158] sm:$0xf]
    %v720 = vld [vmem:[#allocation13 + $0x15c] sm:$0xff]
    %v721 = vld [vmem:[#allocation13 + $0x164] sm:$0xf]
    %v722 = vld [vmem:[#allocation13 + $0x168] sm:$0xff]
    %v723 = vld [vmem:[#allocation13 + $0x170] sm:$0xf]
    %v724 = vld [vmem:[#allocation13 + $0x174] sm:$0xff]
    %v725 = vld [vmem:[#allocation13 + $0x17c] sm:$0xf]
    %v726 = vld [vmem:[#allocation13 + $0x180] sm:$0xff]
    %v727 = vld [vmem:[#allocation13 + $0x188] sm:$0xf]
    %v728 = vld [vmem:[#allocation13 + $0x18c] sm:$0xff]
    %v729 = vld [vmem:[#allocation13 + $0x194] sm:$0xf]
    %v730 = vld [vmem:[#allocation13 + $0x198] sm:$0xff]
    %v731 = vld [vmem:[#allocation13 + $0x1a0] sm:$0xf]
    %v732 = vld [vmem:[#allocation13 + $0x1a4] sm:$0xff]
    %v733 = vld [vmem:[#allocation13 + $0x1ac] sm:$0xf]
    %v734 = vld [vmem:[#allocation13 + $0x1b0] sm:$0xff]
    %v735 = vld [vmem:[#allocation13 + $0x1b8] sm:$0xf]
    %v736 = vld [vmem:[#allocation13 + $0x1bc] sm:$0xff]
    %v737 = vld [vmem:[#allocation13 + $0x1c4] sm:$0xf]
    %v738 = vld [vmem:[#allocation13 + $0x1c8] sm:$0xff]
    %v739 = vld [vmem:[#allocation13 + $0x1d0] sm:$0xf]
    %v740 = vld [vmem:[#allocation13 + $0x1d4] sm:$0xff]
    %v741 = vld [vmem:[#allocation13 + $0x1dc] sm:$0xf]
    %v742 = vld [vmem:[#allocation13 + $0x1e0] sm:$0xff]
    %v743 = vld [vmem:[#allocation13 + $0x1e8] sm:$0xf]
    %v744 = vld [vmem:[#allocation13 + $0x1ec] sm:$0xff]
    %v745 = vld [vmem:[#allocation13 + $0x1f4] sm:$0xf]
    %v746 = vld [vmem:[#allocation13 + $0x1f8] sm:$0xff]
    %v747 = vld [vmem:[#allocation13 + $0x200] sm:$0xf]
    %v748 = vld [vmem:[#allocation13 + $0x204] sm:$0xff]
    %v749 = vld [vmem:[#allocation13 + $0x20c] sm:$0xf]
    %v750 = vld [vmem:[#allocation13 + $0x210] sm:$0xff]
    %v751 = vld [vmem:[#allocation13 + $0x218] sm:$0xf]
    %v752 = vld [vmem:[#allocation13 + $0x21c] sm:$0xff]
    %v753 = vld [vmem:[#allocation13 + $0x224] sm:$0xf]
    %v754 = vld [vmem:[#allocation13 + $0x228] sm:$0xff]
    %v755 = vld [vmem:[#allocation13 + $0x230] sm:$0xf]
    %v756 = vld [vmem:[#allocation13 + $0x234] sm:$0xff]
    %v757 = vld [vmem:[#allocation13 + $0x23c] sm:$0xf]
    %v854 = vunpack.c.l.b16 %v662
    %v855 = vunpack.c.h.b16 %v662
    %v856 = vunpack.c.l.b16 %v663
    %v857 = vunpack.c.l.b16 %v664
    %v858 = vunpack.c.h.b16 %v664
    %v859 = vunpack.c.l.b16 %v665
    %v860 = vunpack.c.l.b16 %v666
    %v861 = vunpack.c.h.b16 %v666
    %v862 = vunpack.c.l.b16 %v667
    %v863 = vunpack.c.l.b16 %v668
    %v864 = vunpack.c.h.b16 %v668
    %v865 = vunpack.c.l.b16 %v669
    %v866 = vunpack.c.l.b16 %v670
    %v867 = vunpack.c.h.b16 %v670
    %v868 = vunpack.c.l.b16 %v671
    %v869 = vunpack.c.l.b16 %v672
    %v870 = vunpack.c.h.b16 %v672
    %v871 = vunpack.c.l.b16 %v673
    %v872 = vunpack.c.l.b16 %v674
    %v873 = vunpack.c.h.b16 %v674
    %v874 = vunpack.c.l.b16 %v675
    %v875 = vunpack.c.l.b16 %v676
    %v876 = vunpack.c.h.b16 %v676
    %v877 = vunpack.c.l.b16 %v677
    %v878 = vunpack.c.l.b16 %v678
    %v879 = vunpack.c.h.b16 %v678
    %v880 = vunpack.c.l.b16 %v679
    %v881 = vunpack.c.l.b16 %v680
    %v882 = vunpack.c.h.b16 %v680
    %v883 = vunpack.c.l.b16 %v681
    %v884 = vunpack.c.l.b16 %v682
    %v885 = vunpack.c.h.b16 %v682
    %v886 = vunpack.c.l.b16 %v683
    %v887 = vunpack.c.l.b16 %v684
    %v888 = vunpack.c.h.b16 %v684
    %v889 = vunpack.c.l.b16 %v685
    %v890 = vunpack.c.l.b16 %v686
    %v891 = vunpack.c.h.b16 %v686
    %v892 = vunpack.c.l.b16 %v687
    %v893 = vunpack.c.l.b16 %v688
    %v894 = vunpack.c.h.b16 %v688
    %v895 = vunpack.c.l.b16 %v689
    %v896 = vunpack.c.l.b16 %v690
    %v897 = vunpack.c.h.b16 %v690
    %v898 = vunpack.c.l.b16 %v691
    %v899 = vunpack.c.l.b16 %v692
    %v900 = vunpack.c.h.b16 %v692
    %v901 = vunpack.c.l.b16 %v693
    %v902 = vunpack.c.l.b16 %v694
    %v903 = vunpack.c.h.b16 %v694
    %v904 = vunpack.c.l.b16 %v695
    %v905 = vunpack.c.l.b16 %v696
    %v906 = vunpack.c.h.b16 %v696
    %v907 = vunpack.c.l.b16 %v697
    %v908 = vunpack.c.l.b16 %v698
    %v909 = vunpack.c.h.b16 %v698
    %v910 = vunpack.c.l.b16 %v699
    %v911 = vunpack.c.l.b16 %v700
    %v912 = vunpack.c.h.b16 %v700
    %v913 = vunpack.c.l.b16 %v701
    %v914 = vunpack.c.l.b16 %v702
    %v915 = vunpack.c.h.b16 %v702
    %v916 = vunpack.c.l.b16 %v703
    %v917 = vunpack.c.l.b16 %v704
    %v918 = vunpack.c.h.b16 %v704
    %v919 = vunpack.c.l.b16 %v705
    %v920 = vunpack.c.l.b16 %v706
    %v921 = vunpack.c.h.b16 %v706
    %v922 = vunpack.c.l.b16 %v707
    %v923 = vunpack.c.l.b16 %v708
    %v924 = vunpack.c.h.b16 %v708
    %v925 = vunpack.c.l.b16 %v709
    %v926 = vunpack.c.l.b16 %v710
    %v927 = vunpack.c.h.b16 %v710
    %v928 = vunpack.c.l.b16 %v711
    %v929 = vunpack.c.l.b16 %v712
    %v930 = vunpack.c.h.b16 %v712
    %v931 = vunpack.c.l.b16 %v713
    %v932 = vunpack.c.l.b16 %v714
    %v933 = vunpack.c.h.b16 %v714
    %v934 = vunpack.c.l.b16 %v715
    %v935 = vunpack.c.l.b16 %v716
    %v936 = vunpack.c.h.b16 %v716
    %v937 = vunpack.c.l.b16 %v717
    %v938 = vunpack.c.l.b16 %v718
    %v939 = vunpack.c.h.b16 %v718
    %v940 = vunpack.c.l.b16 %v719
    %v941 = vunpack.c.l.b16 %v720
    %v942 = vunpack.c.h.b16 %v720
    %v943 = vunpack.c.l.b16 %v721
    %v944 = vunpack.c.l.b16 %v722
    %v945 = vunpack.c.h.b16 %v722
    %v946 = vunpack.c.l.b16 %v723
    %v947 = vunpack.c.l.b16 %v724
    %v948 = vunpack.c.h.b16 %v724
    %v949 = vunpack.c.l.b16 %v725
    %v950 = vunpack.c.l.b16 %v726
    %v951 = vunpack.c.h.b16 %v726
    %v952 = vunpack.c.l.b16 %v727
    %v953 = vunpack.c.l.b16 %v728
    %v954 = vunpack.c.h.b16 %v728
    %v955 = vunpack.c.l.b16 %v729
    %v956 = vunpack.c.l.b16 %v730
    %v957 = vunpack.c.h.b16 %v730
    %v958 = vunpack.c.l.b16 %v731
    %v959 = vunpack.c.l.b16 %v732
    %v960 = vunpack.c.h.b16 %v732
    %v961 = vunpack.c.l.b16 %v733
    %v962 = vunpack.c.l.b16 %v734
    %v963 = vunpack.c.h.b16 %v734
    %v964 = vunpack.c.l.b16 %v735
    %v965 = vunpack.c.l.b16 %v736
    %v966 = vunpack.c.h.b16 %v736
    %v967 = vunpack.c.l.b16 %v737
    %v968 = vunpack.c.l.b16 %v738
    %v969 = vunpack.c.h.b16 %v738
    %v970 = vunpack.c.l.b16 %v739
    %v971 = vunpack.c.l.b16 %v740
    %v972 = vunpack.c.h.b16 %v740
    %v973 = vunpack.c.l.b16 %v741
    %v974 = vunpack.c.l.b16 %v742
    %v975 = vunpack.c.h.b16 %v742
    %v976 = vunpack.c.l.b16 %v743
    %v977 = vunpack.c.l.b16 %v744
    %v978 = vunpack.c.h.b16 %v744
    %v979 = vunpack.c.l.b16 %v745
    %v980 = vunpack.c.l.b16 %v746
    %v981 = vunpack.c.h.b16 %v746
    %v982 = vunpack.c.l.b16 %v747
    %v983 = vunpack.c.l.b16 %v748
    %v984 = vunpack.c.h.b16 %v748
    %v985 = vunpack.c.l.b16 %v749
    %v986 = vunpack.c.l.b16 %v750
    %v987 = vunpack.c.h.b16 %v750
    %v988 = vunpack.c.l.b16 %v751
    %v989 = vunpack.c.l.b16 %v752
    %v990 = vunpack.c.h.b16 %v752
    %v991 = vunpack.c.l.b16 %v753
    %v992 = vunpack.c.l.b16 %v754
    %v993 = vunpack.c.h.b16 %v754
    %v994 = vunpack.c.l.b16 %v755
    %v995 = vunpack.c.l.b16 %v756
    %v996 = vunpack.c.h.b16 %v756
    %v997 = vunpack.c.l.b16 %v757
    %v998 = vpack.c.b16 %v857, %v854
    %v999 = vpack.c.b16 %v858, %v855
    %v1000 = vpack.c.b16 %v859, %v856
    %v1001 = vpack.c.b16 %v863, %v860
    %v1002 = vpack.c.b16 %v864, %v861
    %v1003 = vpack.c.b16 %v865, %v862
    %v1004 = vpack.c.b16 %v869, %v866
    %v1005 = vpack.c.b16 %v870, %v867
    %v1006 = vpack.c.b16 %v871, %v868
    %v1007 = vpack.c.b16 %v875, %v872
    %v1008 = vpack.c.b16 %v876, %v873
    %v1009 = vpack.c.b16 %v877, %v874
    %v1010 = vpack.c.b16 %v881, %v878
    %v1011 = vpack.c.b16 %v882, %v879
    %v1012 = vpack.c.b16 %v883, %v880
    %v1013 = vpack.c.b16 %v887, %v884
    %v1014 = vpack.c.b16 %v888, %v885
    %v1015 = vpack.c.b16 %v889, %v886
    %v1016 = vpack.c.b16 %v893, %v890
    %v1017 = vpack.c.b16 %v894, %v891
    %v1018 = vpack.c.b16 %v895, %v892
    %v1019 = vpack.c.b16 %v899, %v896
    %v1020 = vpack.c.b16 %v900, %v897
    %v1021 = vpack.c.b16 %v901, %v898
    %v1022 = vpack.c.b16 %v905, %v902
    %v1023 = vpack.c.b16 %v906, %v903
    %v1024 = vpack.c.b16 %v907, %v904
    %v1025 = vpack.c.b16 %v911, %v908
    %v1026 = vpack.c.b16 %v912, %v909
    %v1027 = vpack.c.b16 %v913, %v910
    %v1028 = vpack.c.b16 %v917, %v914
    %v1029 = vpack.c.b16 %v918, %v915
    %v1030 = vpack.c.b16 %v919, %v916
    %v1031 = vpack.c.b16 %v923, %v920
    %v1032 = vpack.c.b16 %v924, %v921
    %v1033 = vpack.c.b16 %v925, %v922
    %v1034 = vpack.c.b16 %v929, %v926
    %v1035 = vpack.c.b16 %v930, %v927
    %v1036 = vpack.c.b16 %v931, %v928
    %v1037 = vpack.c.b16 %v935, %v932
    %v1038 = vpack.c.b16 %v936, %v933
    %v1039 = vpack.c.b16 %v937, %v934
    %v1040 = vpack.c.b16 %v941, %v938
    %v1041 = vpack.c.b16 %v942, %v939
    %v1042 = vpack.c.b16 %v943, %v940
    %v1043 = vpack.c.b16 %v947, %v944
    %v1044 = vpack.c.b16 %v948, %v945
    %v1045 = vpack.c.b16 %v949, %v946
    %v1046 = vpack.c.b16 %v953, %v950
    %v1047 = vpack.c.b16 %v954, %v951
    %v1048 = vpack.c.b16 %v955, %v952
    %v1049 = vpack.c.b16 %v959, %v956
    %v1050 = vpack.c.b16 %v960, %v957
    %v1051 = vpack.c.b16 %v961, %v958
    %v1052 = vpack.c.b16 %v965, %v962
    %v1053 = vpack.c.b16 %v966, %v963
    %v1054 = vpack.c.b16 %v967, %v964
    %v1055 = vpack.c.b16 %v971, %v968
    %v1056 = vpack.c.b16 %v972, %v969
    %v1057 = vpack.c.b16 %v973, %v970
    %v1058 = vpack.c.b16 %v977, %v974
    %v1059 = vpack.c.b16 %v978, %v975
    %v1060 = vpack.c.b16 %v979, %v976
    %v1061 = vpack.c.b16 %v983, %v980
    %v1062 = vpack.c.b16 %v984, %v981
    %v1063 = vpack.c.b16 %v985, %v982
    %v1064 = vpack.c.b16 %v989, %v986
    %v1065 = vpack.c.b16 %v990, %v987
    %v1066 = vpack.c.b16 %v991, %v988
    %v1067 = vpack.c.b16 %v995, %v992
    %v1068 = vpack.c.b16 %v996, %v993
    %v1069 = vpack.c.b16 %v997, %v994
    %1142 = vmatprep.subr.bf16.mxu0 %v999
    %1143 = vmatpush1.bf16.msra.mxu0 %v998
    %1144 = vmatprep.subr.bf16.mxu0 %v1002
    %1145 = vmatpush1.bf16.msra.mxu0 %v1001
    %1146 = vmatprep.subr.bf16.mxu0 %v1005
    %1147 = vmatpush1.bf16.msra.mxu0 %v1004
    %1148 = vmatprep.subr.bf16.mxu0 %v1008
    %1149 = vmatpush1.bf16.msra.mxu0 %v1007
    %1150 = vmatprep.subr.bf16.mxu0 %v1011
    %1151 = vmatpush1.bf16.msra.mxu0 %v1010
    %1152 = vmatprep.subr.bf16.mxu0 %v1014
    %1153 = vmatpush1.bf16.msra.mxu0 %v1013
    %1154 = vmatprep.subr.bf16.mxu0 %v1017
    %1155 = vmatpush1.bf16.msra.mxu0 %v1016
    %1156 = vmatprep.subr.bf16.mxu0 %v1020
    %1157 = vmatpush1.bf16.msra.mxu0 %v1019
    %1158 = vmatprep.subr.bf16.mxu0 %v1023
    %1159 = vmatpush1.bf16.msra.mxu0 %v1022
    %1160 = vmatprep.subr.bf16.mxu0 %v1026
    %1161 = vmatpush1.bf16.msra.mxu0 %v1025
    %1162 = vmatprep.subr.bf16.mxu0 %v1029
    %1163 = vmatpush1.bf16.msra.mxu0 %v1028
    %1164 = vmatprep.subr.bf16.mxu0 %v1032
    %1165 = vmatpush1.bf16.msra.mxu0 %v1031
    %1166 = vmatprep.subr.bf16.mxu0 %v1035
    %1167 = vmatpush1.bf16.msra.mxu0 %v1034
    %1168 = vmatprep.subr.bf16.mxu0 %v1038
    %1169 = vmatpush1.bf16.msra.mxu0 %v1037
    %1170 = vmatprep.subr.bf16.mxu0 %v1041
    %1171 = vmatpush1.bf16.msra.mxu0 %v1040
    %1172 = vmatprep.subr.bf16.mxu0 %v1044
    %1173 = vmatpush1.bf16.msra.mxu0 %v1043
    %1174 = vmatprep.mubr.f32.mxu0 %v652
    %1175 = vmatmul.mubr.f32.gmra.mrb[0].mxu0 %v643
    %v1176 = vpop.f32.mrb[0].mxu0
    %v1177 = vadd.f32 0.0, %v1176
    %v1178 = vpop.f32.mrb[0].mxu0
    %v1179 = vadd.f32 0.0, %v1178
    %1180 = vdwg.mxu0
    %1181 = vmatprep.subr.bf16.mxu0 %v1047
    %1182 = vmatpush1.bf16.msra.mxu0 %v1046
    %1183 = vmatprep.subr.bf16.mxu0 %v1050
    %1184 = vmatpush1.bf16.msra.mxu0 %v1049
    %1185 = vmatprep.subr.bf16.mxu0 %v1053
    %1186 = vmatpush1.bf16.msra.mxu0 %v1052
    %1187 = vmatprep.subr.bf16.mxu0 %v1056
    %1188 = vmatpush1.bf16.msra.mxu0 %v1055
    %1189 = vmatprep.subr.bf16.mxu0 %v1059
    %1190 = vmatpush1.bf16.msra.mxu0 %v1058
    %1191 = vmatprep.subr.bf16.mxu0 %v1062
    %1192 = vmatpush1.bf16.msra.mxu0 %v1061
    %1193 = vmatprep.subr.bf16.mxu0 %v1065
    %1194 = vmatpush1.bf16.msra.mxu0 %v1064
    %1195 = vmatprep.subr.bf16.mxu0 %v1068
    %1196 = vmatpush1.bf16.msra.mxu0 %v1067
    %1197 = vmatprep.subr.bf16.mxu0 0
    %1198 = vmatpush1.bf16.msra.mxu0 0
    %1199 = vmatprep.subr.bf16.mxu0 0
    %1200 = vmatpush1.bf16.msra.mxu0 0
    %1201 = vmatprep.subr.bf16.mxu0 0
    %1202 = vmatpush1.bf16.msra.mxu0 0
    %1203 = vmatprep.subr.bf16.mxu0 0
    %1204 = vmatpush1.bf16.msra.mxu0 0
    %1205 = vmatprep.subr.bf16.mxu0 0
    %1206 = vmatpush1.bf16.msra.mxu0 0
    %1207 = vmatprep.subr.bf16.mxu0 0
    %1208 = vmatpush1.bf16.msra.mxu0 0
    %1209 = vmatprep.subr.bf16.mxu0 0
    %1210 = vmatpush1.bf16.msra.mxu0 0
    %1211 = vmatprep.subr.bf16.mxu0 0
    %1212 = vmatpush1.bf16.msra.mxu0 0
    %1213 = vmatprep.mubr.f32.mxu0 0.0
    %1214 = vmatmul.mubr.f32.gmra.mrb[0].mxu0 %v661
    %v1215 = vpop.f32.mrb[0].mxu0
    %v1216 = vadd.f32 %v1177, %v1215
    %v1217 = vpop.f32.mrb[0].mxu0
    %v1218 = vadd.f32 %v1179, %v1217
    %1219 = vdwg.mxu0
    %1220 = vmatprep.subr.bf16.mxu0 0
    %1221 = vmatpush1.bf16.msra.mxu0 %v1000
    %1222 = vmatprep.subr.bf16.mxu0 0
    %1223 = vmatpush1.bf16.msra.mxu0 %v1003
    %1224 = vmatprep.subr.bf16.mxu0 0
    %1225 = vmatpush1.bf16.msra.mxu0 %v1006
    %1226 = vmatprep.subr.bf16.mxu0 0
    %1227 = vmatpush1.bf16.msra.mxu0 %v1009
    %1228 = vmatprep.subr.bf16.mxu0 0
    %1229 = vmatpush1.bf16.msra.mxu0 %v1012
    %1230 = vmatprep.subr.bf16.mxu0 0
    %1231 = vmatpush1.bf16.msra.mxu0 %v1015
    %1232 = vmatprep.subr.bf16.mxu0 0
    %1233 = vmatpush1.bf16.msra.mxu0 %v1018
    %1234 = vmatprep.subr.bf16.mxu0 0
    %1235 = vmatpush1.bf16.msra.mxu0 %v1021
    %1236 = vmatprep.subr.bf16.mxu0 0
    %1237 = vmatpush1.bf16.msra.mxu0 %v1024
    %1238 = vmatprep.subr.bf16.mxu0 0
    %1239 = vmatpush1.bf16.msra.mxu0 %v1027
    %1240 = vmatprep.subr.bf16.mxu0 0
    %1241 = vmatpush1.bf16.msra.mxu0 %v1030
    %1242 = vmatprep.subr.bf16.mxu0 0
    %1243 = vmatpush1.bf16.msra.mxu0 %v1033
    %1244 = vmatprep.subr.bf16.mxu0 0
    %1245 = vmatpush1.bf16.msra.mxu0 %v1036
    %1246 = vmatprep.subr.bf16.mxu0 0
    %1247 = vmatpush1.bf16.msra.mxu0 %v1039
    %1248 = vmatprep.subr.bf16.mxu0 0
    %1249 = vmatpush1.bf16.msra.mxu0 %v1042
    %1250 = vmatprep.subr.bf16.mxu0 0
    %1251 = vmatpush1.bf16.msra.mxu0 %v1045
    %1252 = vmatprep.mubr.f32.mxu0 %v652
    %1253 = vmatmul.mubr.f32.gmra.mrb[0].mxu0 %v643
    %v1254 = vpop.f32.mrb[0].mxu0
    %v1255 = vadd.f32 0.0, %v1254
    %v1256 = vpop.f32.mrb[0].mxu0
    %1257 = vdwg.mxu0
    %1258 = vmatprep.subr.bf16.mxu0 0
    %1259 = vmatpush1.bf16.msra.mxu0 %v1048
    %1260 = vmatprep.subr.bf16.mxu0 0
    %1261 = vmatpush1.bf16.msra.mxu0 %v1051
    %1262 = vmatprep.subr.bf16.mxu0 0
    %1263 = vmatpush1.bf16.msra.mxu0 %v1054
    %1264 = vmatprep.subr.bf16.mxu0 0
    %1265 = vmatpush1.bf16.msra.mxu0 %v1057
    %1266 = vmatprep.subr.bf16.mxu0 0
    %1267 = vmatpush1.bf16.msra.mxu0 %v1060
    %1268 = vmatprep.subr.bf16.mxu0 0
    %1269 = vmatpush1.bf16.msra.mxu0 %v1063
    %1270 = vmatprep.subr.bf16.mxu0 0
    %1271 = vmatpush1.bf16.msra.mxu0 %v1066
    %1272 = vmatprep.subr.bf16.mxu0 0
    %1273 = vmatpush1.bf16.msra.mxu0 %v1069
    %1274 = vmatprep.subr.bf16.mxu0 0
    %1275 = vmatpush1.bf16.msra.mxu0 0
    %1276 = vmatprep.subr.bf16.mxu0 0
    %1277 = vmatpush1.bf16.msra.mxu0 0
    %1278 = vmatprep.subr.bf16.mxu0 0
    %1279 = vmatpush1.bf16.msra.mxu0 0
    %1280 = vmatprep.subr.bf16.mxu0 0
    %1281 = vmatpush1.bf16.msra.mxu0 0
    %1282 = vmatprep.subr.bf16.mxu0 0
    %1283 = vmatpush1.bf16.msra.mxu0 0
    %1284 = vmatprep.subr.bf16.mxu0 0
    %1285 = vmatpush1.bf16.msra.mxu0 0
    %1286 = vmatprep.subr.bf16.mxu0 0
    %1287 = vmatpush1.bf16.msra.mxu0 0
    %1288 = vmatprep.subr.bf16.mxu0 0
    %1289 = vmatpush1.bf16.msra.mxu0 0
    %1290 = vmatprep.mubr.f32.mxu0 0.0
    %1291 = vmatmul.mubr.f32.gmra.mrb[0].mxu0 %v661
    %v1292 = vpop.f32.mrb[0].mxu0
    %v1293 = vadd.f32 %v1255, %v1292
    %v1294 = vpop.f32.mrb[0].mxu0
    %1295 = vdwg.mxu0
    %v1296 = vmul.f32 %v1216, 0.001953125
    %v1297 = vmul.f32 %v1218, 0.001953125
    %v1298 = vmul.f32 %v1293, 0.001953125
    %v1299 = vlaneseq
    %v1300 = vshrl.u32 %v1299, 7
    %v1301 = vsub.s32 0, %v1300
    %v1302 = vrot.slane %v1296, %v1301
    %v1303 = vlaneseq
    %v1304 = vshrl.u32 %v1303, 7
    %v1305 = vsub.s32 0, %v1304
    %v1306 = vrot.slane %v1297, %v1305
    %v1307 = vlaneseq
    %v1308 = vshrl.u32 %v1307, 7
    %v1309 = vsub.s32 0, %v1308
    %v1310 = vrot.slane %v1298, %v1309
    %v1311 = vsub.f32 %v556, %v1302
    %v1312 = vsub.f32 %v558, %v1306
    %v1313 = vsub.f32 %v609, %v1310
    %v1314 = vsub.f32 %v560, %v1302
    %v1315 = vsub.f32 %v562, %v1306
    %v1316 = vsub.f32 %v612, %v1310
    %v1317 = vsub.f32 %v566, %v1302
    %v1318 = vsub.f32 %v568, %v1306
    %v1319 = vsub.f32 %v617, %v1310
    %v1320 = vsub.f32 %v570, %v1302
    %v1321 = vsub.f32 %v572, %v1306
    %v1322 = vsub.f32 %v620, %v1310
    %v1323 = vmul.f32 %v1311, %v1311
    %v1324 = vmul.f32 %v1312, %v1312
    %v1325 = vmul.f32 %v1313, %v1313
    %v1326 = vmul.f32 %v1314, %v1314
    %v1327 = vmul.f32 %v1315, %v1315
    %v1328 = vmul.f32 %v1316, %v1316
    %v1329 = vmul.f32 %v1317, %v1317
    %v1330 = vmul.f32 %v1318, %v1318
    %v1331 = vmul.f32 %v1319, %v1319
    %v1332 = vmul.f32 %v1320, %v1320
    %v1333 = vmul.f32 %v1321, %v1321
    %v1334 = vmul.f32 %v1322, %v1322
    %v1335 = vadd.f32 %v1323, %v1326
    %v1336 = vadd.f32 %v1335, %v1329
    %v1337 = vadd.f32 %v1336, %v1332
    %v1338 = vrot.slane %v1337, 4
    %v1339 = vadd.f32 %v1337, %v1338
    %v1340 = vrot.slane %v1339, 2
    %v1341 = vadd.f32 %v1339, %v1340
    %v1342 = vrot.slane %v1341, 1
    %v1343 = vadd.f32 %v1341, %v1342
    %v1344 = vadd.f32 %v1324, %v1327
    %v1345 = vadd.f32 %v1344, %v1330
    %v1346 = vadd.f32 %v1345, %v1333
    %v1347 = vrot.slane %v1346, 4
    %v1348 = vadd.f32 %v1346, %v1347
    %v1349 = vrot.slane %v1348, 2
    %v1350 = vadd.f32 %v1348, %v1349
    %v1351 = vrot.slane %v1350, 1
    %v1352 = vadd.f32 %v1350, %v1351
    %v1353 = vadd.f32 %v1325, %v1328
    %v1354 = vadd.f32 %v1353, %v1331
    %v1355 = vadd.f32 %v1354, %v1334
    %v1356 = vrot.slane %v1355, 4
    %v1357 = vadd.f32 %v1355, %v1356
    %v1358 = vrot.slane %v1357, 2
    %v1359 = vadd.f32 %v1357, %v1358
    %v1360 = vrot.slane %v1359, 1
    %v1361 = vadd.f32 %v1359, %v1360
    %1362 = vmatprep.subr.bf16.mxu0 %v999
    %1363 = vmatpush1.bf16.msra.mxu0 %v998
    %1364 = vmatprep.subr.bf16.mxu0 %v1002
    %1365 = vmatpush1.bf16.msra.mxu0 %v1001
    %1366 = vmatprep.subr.bf16.mxu0 %v1005
    %1367 = vmatpush1.bf16.msra.mxu0 %v1004
    %1368 = vmatprep.subr.bf16.mxu0 %v1008
    %1369 = vmatpush1.bf16.msra.mxu0 %v1007
    %1370 = vmatprep.subr.bf16.mxu0 %v1011
    %1371 = vmatpush1.bf16.msra.mxu0 %v1010
    %1372 = vmatprep.subr.bf16.mxu0 %v1014
    %1373 = vmatpush1.bf16.msra.mxu0 %v1013
    %1374 = vmatprep.subr.bf16.mxu0 %v1017
    %1375 = vmatpush1.bf16.msra.mxu0 %v1016
    %1376 = vmatprep.subr.bf16.mxu0 %v1020
    %1377 = vmatpush1.bf16.msra.mxu0 %v1019
    %1378 = vmatprep.subr.bf16.mxu0 %v1023
    %1379 = vmatpush1.bf16.msra.mxu0 %v1022
    %1380 = vmatprep.subr.bf16.mxu0 %v1026
    %1381 = vmatpush1.bf16.msra.mxu0 %v1025
    %1382 = vmatprep.subr.bf16.mxu0 %v1029
    %1383 = vmatpush1.bf16.msra.mxu0 %v1028
    %1384 = vmatprep.subr.bf16.mxu0 %v1032
    %1385 = vmatpush1.bf16.msra.mxu0 %v1031
    %1386 = vmatprep.subr.bf16.mxu0 %v1035
    %1387 = vmatpush1.bf16.msra.mxu0 %v1034
    %1388 = vmatprep.subr.bf16.mxu0 %v1038
    %1389 = vmatpush1.bf16.msra.mxu0 %v1037
    %1390 = vmatprep.subr.bf16.mxu0 %v1041
    %1391 = vmatpush1.bf16.msra.mxu0 %v1040
    %1392 = vmatprep.subr.bf16.mxu0 %v1044
    %1393 = vmatpush1.bf16.msra.mxu0 %v1043
    %1394 = vmatprep.mubr.f32.mxu0 %v1352
    %1395 = vmatmul.mubr.f32.gmra.mrb[0].mxu0 %v1343
    %v1396 = vpop.f32.mrb[0].mxu0
    %v1397 = vadd.f32 0.0, %v1396
    %v1398 = vpop.f32.mrb[0].mxu0
    %v1399 = vadd.f32 0.0, %v1398
    %1400 = vdwg.mxu0
    %1401 = vmatprep.subr.bf16.mxu0 %v1047
    %1402 = vmatpush1.bf16.msra.mxu0 %v1046
    %1403 = vmatprep.subr.bf16.mxu0 %v1050
    %1404 = vmatpush1.bf16.msra.mxu0 %v1049
    %1405 = vmatprep.subr.bf16.mxu0 %v1053
    %1406 = vmatpush1.bf16.msra.mxu0 %v1052
    %1407 = vmatprep.subr.bf16.mxu0 %v1056
    %1408 = vmatpush1.bf16.msra.mxu0 %v1055
    %1409 = vmatprep.subr.bf16.mxu0 %v1059
    %1410 = vmatpush1.bf16.msra.mxu0 %v1058
    %1411 = vmatprep.subr.bf16.mxu0 %v1062
    %1412 = vmatpush1.bf16.msra.mxu0 %v1061
    %1413 = vmatprep.subr.bf16.mxu0 %v1065
    %1414 = vmatpush1.bf16.msra.mxu0 %v1064
    %1415 = vmatprep.subr.bf16.mxu0 %v1068
    %1416 = vmatpush1.bf16.msra.mxu0 %v1067
    %1417 = vmatprep.subr.bf16.mxu0 0
    %1418 = vmatpush1.bf16.msra.mxu0 0
    %1419 = vmatprep.subr.bf16.mxu0 0
    %1420 = vmatpush1.bf16.msra.mxu0 0
    %1421 = vmatprep.subr.bf16.mxu0 0
    %1422 = vmatpush1.bf16.msra.mxu0 0
    %1423 = vmatprep.subr.bf16.mxu0 0
    %1424 = vmatpush1.bf16.msra.mxu0 0
    %1425 = vmatprep.subr.bf16.mxu0 0
    %1426 = vmatpush1.bf16.msra.mxu0 0
    %1427 = vmatprep.subr.bf16.mxu0 0
    %1428 = vmatpush1.bf16.msra.mxu0 0
    %1429 = vmatprep.subr.bf16.mxu0 0
    %1430 = vmatpush1.bf16.msra.mxu0 0
    %1431 = vmatprep.subr.bf16.mxu0 0
    %1432 = vmatpush1.bf16.msra.mxu0 0
    %1433 = vmatprep.mubr.f32.mxu0 0.0
    %1434 = vmatmul.mubr.f32.gmra.mrb[0].mxu0 %v1361
    %v1435 = vpop.f32.mrb[0].mxu0
    %v1436 = vadd.f32 %v1397, %v1435
    %v1437 = vpop.f32.mrb[0].mxu0
    %v1438 = vadd.f32 %v1399, %v1437
    %1439 = vdwg.mxu0
    %1440 = vmatprep.subr.bf16.mxu0 0
    %1441 = vmatpush1.bf16.msra.mxu0 %v1000
    %1442 = vmatprep.subr.bf16.mxu0 0
    %1443 = vmatpush1.bf16.msra.mxu0 %v1003
    %1444 = vmatprep.subr.bf16.mxu0 0
    %1445 = vmatpush1.bf16.msra.mxu0 %v1006
    %1446 = vmatprep.subr.bf16.mxu0 0
    %1447 = vmatpush1.bf16.msra.mxu0 %v1009
    %1448 = vmatprep.subr.bf16.mxu0 0
    %1449 = vmatpush1.bf16.msra.mxu0 %v1012
    %1450 = vmatprep.subr.bf16.mxu0 0
    %1451 = vmatpush1.bf16.msra.mxu0 %v1015
    %1452 = vmatprep.subr.bf16.mxu0 0
    %1453 = vmatpush1.bf16.msra.mxu0 %v1018
    %1454 = vmatprep.subr.bf16.mxu0 0
    %1455 = vmatpush1.bf16.msra.mxu0 %v1021
    %1456 = vmatprep.subr.bf16.mxu0 0
    %1457 = vmatpush1.bf16.msra.mxu0 %v1024
    %1458 = vmatprep.subr.bf16.mxu0 0
    %1459 = vmatpush1.bf16.msra.mxu0 %v1027
    %1460 = vmatprep.subr.bf16.mxu0 0
    %1461 = vmatpush1.bf16.msra.mxu0 %v1030
    %1462 = vmatprep.subr.bf16.mxu0 0
    %1463 = vmatpush1.bf16.msra.mxu0 %v1033
    %1464 = vmatprep.subr.bf16.mxu0 0
    %1465 = vmatpush1.bf16.msra.mxu0 %v1036
    %1466 = vmatprep.subr.bf16.mxu0 0
    %1467 = vmatpush1.bf16.msra.mxu0 %v1039
    %1468 = vmatprep.subr.bf16.mxu0 0
    %1469 = vmatpush1.bf16.msra.mxu0 %v1042
    %1470 = vmatprep.subr.bf16.mxu0 0
    %1471 = vmatpush1.bf16.msra.mxu0 %v1045
    %1472 = vmatprep.mubr.f32.mxu0 %v1352
    %1473 = vmatmul.mubr.f32.gmra.mrb[0].mxu0 %v1343
    %v1474 = vpop.f32.mrb[0].mxu0
    %v1475 = vadd.f32 0.0, %v1474
    %v1476 = vpop.f32.mrb[0].mxu0
    %1477 = vdwg.mxu0
    %1478 = vmatprep.subr.bf16.mxu0 0
    %1479 = vmatpush1.bf16.msra.mxu0 %v1048
    %1480 = vmatprep.subr.bf16.mxu0 0
    %1481 = vmatpush1.bf16.msra.mxu0 %v1051
    %1482 = vmatprep.subr.bf16.mxu0 0
    %1483 = vmatpush1.bf16.msra.mxu0 %v1054
    %1484 = vmatprep.subr.bf16.mxu0 0
    %1485 = vmatpush1.bf16.msra.mxu0 %v1057
    %1486 = vmatprep.subr.bf16.mxu0 0
    %1487 = vmatpush1.bf16.msra.mxu0 %v1060
    %1488 = vmatprep.subr.bf16.mxu0 0
    %1489 = vmatpush1.bf16.msra.mxu0 %v1063
    %1490 = vmatprep.subr.bf16.mxu0 0
    %1491 = vmatpush1.bf16.msra.mxu0 %v1066
    %1492 = vmatprep.subr.bf16.mxu0 0
    %1493 = vmatpush1.bf16.msra.mxu0 %v1069
    %1494 = vmatprep.subr.bf16.mxu0 0
    %1495 = vmatpush1.bf16.msra.mxu0 0
    %1496 = vmatprep.subr.bf16.mxu0 0
    %1497 = vmatpush1.bf16.msra.mxu0 0
    %1498 = vmatprep.subr.bf16.mxu0 0
    %1499 = vmatpush1.bf16.msra.mxu0 0
    %1500 = vmatprep.subr.bf16.mxu0 0
    %1501 = vmatpush1.bf16.msra.mxu0 0
    %1502 = vmatprep.subr.bf16.mxu0 0
    %1503 = vmatpush1.bf16.msra.mxu0 0
    %1504 = vmatprep.subr.bf16.mxu0 0
    %1505 = vmatpush1.bf16.msra.mxu0 0
    %1506 = vmatprep.subr.bf16.mxu0 0
    %1507 = vmatpush1.bf16.msra.mxu0 0
    %1508 = vmatprep.subr.bf16.mxu0 0
    %1509 = vmatpush1.bf16.msra.mxu0 0
    %1510 = vmatprep.mubr.f32.mxu0 0.0
    %1511 = vmatmul.mubr.f32.gmra.mrb[0].mxu0 %v1361
    %v1512 = vpop.f32.mrb[0].mxu0
    %v1513 = vadd.f32 %v1475, %v1512
    %v1514 = vpop.f32.mrb[0].mxu0
    %1515 = vdwg.mxu0
    %v1516 = vmul.f32 %v1436, 0.001953125
    %v1517 = vmul.f32 %v1438, 0.001953125
    %v1518 = vmul.f32 %v1513, 0.001953125
    %v1519 = vld [vmem:[#allocation10] sm:$0x7]
    %v1520 = vadd.f32 %v1516, 1e-05
    %v1521 = vadd.f32 %v1517, 1e-05
    %v1522 = vadd.f32 %v1518, 1e-05
    %v1523 = vrsqrt.pop %v1520
    %v1524 = vrsqrt.pop %v1521
    %v1525 = vrsqrt.pop %v1522
    %v1529 = vcombine.low %v1523, %v1524
    %v1531 = vunpack.c.l.s4 1966171168
    %v1532 = vunpack.c.0.s8 %v1531
    %v1533 = vlaneseq
    %v1534 = vshrl.u32 %v1533, 7
    %v1535 = vsub.s32 %v1532, %v1534
    %v1536 = vrot.slane %v1529, %v1535
    %v1538 = vunpack.c.l.s4 1966171168
    %v1539 = vunpack.c.0.s8 %v1538
    %v1540 = vlaneseq
    %v1541 = vshrl.u32 %v1540, 7
    %v1542 = vsub.s32 %v1539, %v1541
    %v1543 = vrot.slane %v1525, %v1542
    %v1544 = vcombine.low %v1536, %v1543
    %v1546 = vunpack.c.l.s4 1966171168
    %v1547 = vunpack.c.0.s8 %v1546
    %v1548 = vlaneseq
    %v1549 = vshrl.u32 %v1548, 7
    %v1550 = vsub.s32 %v1547, %v1549
    %v1551 = vrot.slane %v1544, %v1550
    %v1553 = vmul.f32 %v1519, %v1551
    %v1555 = vlaneseq
    %v1556 = vshrl.u32 %v1555, 7
    %v1557 = vsub.s32 0, %v1556
    %v1558 = vrot.slane %v1553, %v1557
    %v1559 = vlaneseq
    %v1560 = vshrl.u32 %v1559, 7
    %v1561 = vsub.s32 1, %v1560
    %v1562 = vrot.slane %v1553, %v1561
    %v1563 = vlaneseq
    %v1564 = vshrl.u32 %v1563, 7
    %v1565 = vsub.s32 2, %v1564
    %v1566 = vrot.slane %v1553, %v1565
    %v1570 = vmul.f32 %v1311, %v1558
    %v1571 = vmul.f32 %v1312, %v1562
    %v1572 = vmul.f32 %v1313, %v1566
    %v1573 = vmul.f32 %v1314, %v1558
    %v1574 = vmul.f32 %v1315, %v1562
    %v1575 = vmul.f32 %v1316, %v1566
    %v1576 = vmul.f32 %v1317, %v1558
    %v1577 = vmul.f32 %v1318, %v1562
    %v1578 = vmul.f32 %v1319, %v1566
    %v1579 = vmul.f32 %v1320, %v1558
    %v1580 = vmul.f32 %v1321, %v1562
    %v1581 = vmul.f32 %v1322, %v1566
    %v1582 = vld [vmem:[#allocation12] sm:$0x7]
    %v1584 = vlaneseq
    %v1585 = vshrl.u32 %v1584, 7
    %v1586 = vsub.s32 0, %v1585
    %v1587 = vrot.slane %v1582, %v1586
    %v1588 = vlaneseq
    %v1589 = vshrl.u32 %v1588, 7
    %v1590 = vsub.s32 1, %v1589
    %v1591 = vrot.slane %v1582, %v1590
    %v1592 = vlaneseq
    %v1593 = vshrl.u32 %v1592, 7
    %v1594 = vsub.s32 2, %v1593
    %v1595 = vrot.slane %v1582, %v1594
    %v1599 = vadd.f32 %v1570, %v1587
    %v1600 = vadd.f32 %v1571, %v1591
    %v1601 = vadd.f32 %v1572, %v1595
    %v1602 = vadd.f32 %v1573, %v1587
    %v1603 = vadd.f32 %v1574, %v1591
    %v1604 = vadd.f32 %v1575, %v1595
    %v1605 = vadd.f32 %v1576, %v1587
    %v1606 = vadd.f32 %v1577, %v1591
    %v1607 = vadd.f32 %v1578, %v1595
    %v1608 = vadd.f32 %v1579, %v1587
    %v1609 = vadd.f32 %v1580, %v1591
    %v1610 = vadd.f32 %v1581, %v1595
    %v1611 = vmax.f32 %v1599, 0.0
    %v1612 = vmax.f32 %v1600, 0.0
    %v1613 = vmax.f32 %v1601, 0.0
    %v1614 = vmax.f32 %v1602, 0.0
    %v1615 = vmax.f32 %v1603, 0.0
    %v1616 = vmax.f32 %v1604, 0.0
    %v1617 = vmax.f32 %v1605, 0.0
    %v1618 = vmax.f32 %v1606, 0.0
    %v1619 = vmax.f32 %v1607, 0.0
    %v1620 = vmax.f32 %v1608, 0.0
    %v1621 = vmax.f32 %v1609, 0.0
    %v1622 = vmax.f32 %v1610, 0.0
    %v1623 = vpack.c.bf16 %v1614, %v1611
    %v1624 = vpack.c.bf16 %v1615, %v1612
    %v1625 = vpack.c.bf16 %v1616, %v1613
    %v1626 = vpack.c.bf16 %v1620, %v1617
    %v1627 = vpack.c.bf16 %v1621, %v1618
    %v1628 = vpack.c.bf16 %v1622, %v1619
    %v1629 = vpack.c.bf16 %v155, %v154
    %v1630 = vpack.c.bf16 %v157, %v156
    %v1631 = vld [vmem:[%s8] sm:$0xf]
    %v1632 = vld [vmem:[%s8 + $0x4] sm:$0xf]
    %v1633 = vld [vmem:[%s8 + $0x8] sm:$0xf]
    %v1634 = vld [vmem:[%s8 + $0xc] sm:$0xf]
    %v1639 = vunpack.c.l.b16 %v1631
    %v1640 = vunpack.c.l.b16 %v1632
    %v1641 = vunpack.c.l.b16 %v1633
    %v1642 = vunpack.c.l.b16 %v1634
    %v1643 = vpack.c.b16 %v1640, %v1639
    %v1644 = vpack.c.b16 %v1642, %v1641
    %vm1645 = vcmask 261120
    %v1647 = vsel %vm1645, %v1643, 0
    %v1650 = vsel %vm1645, %v1644, 0
    %1652 = vmatprep.subr.bf16.mxu0 %v1624
    %1653 = vmatpush1.bf16.msra.mxu0 %v1623
    %1654 = vmatprep.subr.bf16.mxu0 %v1627
    %1655 = vmatpush1.bf16.msra.mxu0 %v1626
    %1656 = vmatprep.subr.bf16.mxu0 0
    %1657 = vmatpush1.bf16.msra.mxu0 0
    %1658 = vmatprep.subr.bf16.mxu0 0
    %1659 = vmatpush1.bf16.msra.mxu0 0
    %1660 = vmatprep.subr.bf16.mxu0 0
    %1661 = vmatpush1.bf16.msra.mxu0 0
    %1662 = vmatprep.subr.bf16.mxu0 0
    %1663 = vmatpush1.bf16.msra.mxu0 0
    %1664 = vmatprep.subr.bf16.mxu0 0
    %1665 = vmatpush1.bf16.msra.mxu0 0
    %1666 = vmatprep.subr.bf16.mxu0 0
    %1667 = vmatpush1.bf16.msra.mxu0 0
    %1668 = vmatprep.subr.bf16.mxu0 0
    %1669 = vmatpush1.bf16.msra.mxu0 0
    %1670 = vmatprep.subr.bf16.mxu0 0
    %1671 = vmatpush1.bf16.msra.mxu0 0
    %1672 = vmatprep.subr.bf16.mxu0 0
    %1673 = vmatpush1.bf16.msra.mxu0 0
    %1674 = vmatprep.subr.bf16.mxu0 0
    %1675 = vmatpush1.bf16.msra.mxu0 0
    %1676 = vmatprep.subr.bf16.mxu0 0
    %1677 = vmatpush1.bf16.msra.mxu0 0
    %1678 = vmatprep.subr.bf16.mxu0 0
    %1679 = vmatpush1.bf16.msra.mxu0 0
    %1680 = vmatprep.subr.bf16.mxu0 0
    %1681 = vmatpush1.bf16.msra.mxu0 0
    %1682 = vmatprep.subr.bf16.mxu0 0
    %1683 = vmatpush1.bf16.msra.mxu0 0
    %1684 = vmatprep.mubr.bf16.mxu0 0
    %1685 = vmatmul.mubr.bf16.gmra.mrb[0].mxu0 %v1647
    %v1686 = vpop.f32.mrb[0].mxu0
    %v1687 = vadd.f32 0.0, %v1686
    %v1688 = vpop.f32.mrb[0].mxu0
    %v1689 = vadd.f32 0.0, %v1688
    %v1690 = vpop.f32.mrb[0].mxu0
    %v1691 = vadd.f32 0.0, %v1690
    %v1692 = vpop.f32.mrb[0].mxu0
    %v1693 = vadd.f32 0.0, %v1692
    %1694 = vmatprep.mubr.bf16.mxu0 0
    %1695 = vmatmul.mubr.bf16.gmra.mrb[0].mxu0 %v1650
    %v1696 = vpop.f32.mrb[0].mxu0
    %v1697 = vadd.f32 0.0, %v1696
    %v1698 = vpop.f32.mrb[0].mxu0
    %v1699 = vadd.f32 0.0, %v1698
    %v1700 = vpop.f32.mrb[0].mxu0
    %v1701 = vadd.f32 0.0, %v1700
    %v1702 = vpop.f32.mrb[0].mxu0
    %v1703 = vadd.f32 0.0, %v1702
    %1704 = vdwg.mxu0
    %1705 = vmatprep.subr.bf16.mxu0 0
    %1706 = vmatpush1.bf16.msra.mxu0 %v1625
    %1707 = vmatprep.subr.bf16.mxu0 0
    %1708 = vmatpush1.bf16.msra.mxu0 %v1628
    %1709 = vmatprep.subr.bf16.mxu0 0
    %1710 = vmatpush1.bf16.msra.mxu0 0
    %1711 = vmatprep.subr.bf16.mxu0 0
    %1712 = vmatpush1.bf16.msra.mxu0 0
    %1713 = vmatprep.subr.bf16.mxu0 0
    %1714 = vmatpush1.bf16.msra.mxu0 0
    %1715 = vmatprep.subr.bf16.mxu0 0
    %1716 = vmatpush1.bf16.msra.mxu0 0
    %1717 = vmatprep.subr.bf16.mxu0 0
    %1718 = vmatpush1.bf16.msra.mxu0 0
    %1719 = vmatprep.subr.bf16.mxu0 0
    %1720 = vmatpush1.bf16.msra.mxu0 0
    %1721 = vmatprep.subr.bf16.mxu0 0
    %1722 = vmatpush1.bf16.msra.mxu0 0
    %1723 = vmatprep.subr.bf16.mxu0 0
    %1724 = vmatpush1.bf16.msra.mxu0 0
    %1725 = vmatprep.subr.bf16.mxu0 0
    %1726 = vmatpush1.bf16.msra.mxu0 0
    %1727 = vmatprep.subr.bf16.mxu0 0
    %1728 = vmatpush1.bf16.msra.mxu0 0
    %1729 = vmatprep.subr.bf16.mxu0 0
    %1730 = vmatpush1.bf16.msra.mxu0 0
    %1731 = vmatprep.subr.bf16.mxu0 0
    %1732 = vmatpush1.bf16.msra.mxu0 0
    %1733 = vmatprep.subr.bf16.mxu0 0
    %1734 = vmatpush1.bf16.msra.mxu0 0
    %1735 = vmatprep.subr.bf16.mxu0 0
    %1736 = vmatpush1.bf16.msra.mxu0 0
    %1737 = vmatprep.mubr.bf16.mxu0 0
    %1738 = vmatmul.mubr.bf16.gmra.mrb[0].mxu0 %v1647
    %v1739 = vpop.f32.mrb[0].mxu0
    %v1740 = vadd.f32 0.0, %v1739
    %v1741 = vpop.f32.mrb[0].mxu0
    %v1742 = vpop.f32.mrb[0].mxu0
    %v1743 = vadd.f32 0.0, %v1742
    %v1744 = vpop.f32.mrb[0].mxu0
    %1745 = vmatprep.mubr.bf16.mxu0 0
    %1746 = vmatmul.mubr.bf16.gmra.mrb[0].mxu0 %v1650
    %v1747 = vpop.f32.mrb[0].mxu0
    %v1748 = vadd.f32 0.0, %v1747
    %v1749 = vpop.f32.mrb[0].mxu0
    %v1750 = vpop.f32.mrb[0].mxu0
    %v1751 = vadd.f32 0.0, %v1750
    %v1752 = vpop.f32.mrb[0].mxu0
    %1753 = vdwg.mxu0
    %v1754 = vpack.c.bf16 %v1691, %v1687
    %v1755 = vpack.c.bf16 %v1693, %v1689
    %v1756 = vpack.c.bf16 %v1743, %v1740
    %v1757 = vpack.c.bf16 %v1701, %v1697
    %v1758 = vpack.c.bf16 %v1703, %v1699
    %v1759 = vpack.c.bf16 %v1751, %v1748
    %v1760 = vld [vmem:[%s9] sm:$0xf]
    %v1761 = vld [vmem:[%s9 + $0x4] sm:$0xf]
    %v1762 = vld [vmem:[%s9 + $0x8] sm:$0xf]
    %v1763 = vld [vmem:[%s9 + $0xc] sm:$0xf]
    %v1768 = vunpack.c.l.b16 %v1760
    %v1769 = vunpack.c.l.b16 %v1761
    %v1770 = vunpack.c.l.b16 %v1762
    %v1771 = vunpack.c.l.b16 %v1763
    %v1772 = vpack.c.b16 %v1769, %v1768
    %v1773 = vpack.c.b16 %v1771, %v1770
    %v1775 = vsel %vm1645, %v1772, 0
    %v1778 = vsel %vm1645, %v1773, 0
    %1780 = vmatprep.subr.bf16.mxu0 %v1624
    %1781 = vmatpush1.bf16.msra.mxu0 %v1623
    %1782 = vmatprep.subr.bf16.mxu0 %v1627
    %1783 = vmatpush1.bf16.msra.mxu0 %v1626
    %1784 = vmatprep.subr.bf16.mxu0 0
    %1785 = vmatpush1.bf16.msra.mxu0 0
    %1786 = vmatprep.subr.bf16.mxu0 0
    %1787 = vmatpush1.bf16.msra.mxu0 0
    %1788 = vmatprep.subr.bf16.mxu0 0
    %1789 = vmatpush1.bf16.msra.mxu0 0
    %1790 = vmatprep.subr.bf16.mxu0 0
    %1791 = vmatpush1.bf16.msra.mxu0 0
    %1792 = vmatprep.subr.bf16.mxu0 0
    %1793 = vmatpush1.bf16.msra.mxu0 0
    %1794 = vmatprep.subr.bf16.mxu0 0
    %1795 = vmatpush1.bf16.msra.mxu0 0
    %1796 = vmatprep.subr.bf16.mxu0 0
    %1797 = vmatpush1.bf16.msra.mxu0 0
    %1798 = vmatprep.subr.bf16.mxu0 0
    %1799 = vmatpush1.bf16.msra.mxu0 0
    %1800 = vmatprep.subr.bf16.mxu0 0
    %1801 = vmatpush1.bf16.msra.mxu0 0
    %1802 = vmatprep.subr.bf16.mxu0 0
    %1803 = vmatpush1.bf16.msra.mxu0 0
    %1804 = vmatprep.subr.bf16.mxu0 0
    %1805 = vmatpush1.bf16.msra.mxu0 0
    %1806 = vmatprep.subr.bf16.mxu0 0
    %1807 = vmatpush1.bf16.msra.mxu0 0
    %1808 = vmatprep.subr.bf16.mxu0 0
    %1809 = vmatpush1.bf16.msra.mxu0 0
    %1810 = vmatprep.subr.bf16.mxu0 0
    %1811 = vmatpush1.bf16.msra.mxu0 0
    %1812 = vmatprep.mubr.bf16.mxu0 0
    %1813 = vmatmul.mubr.bf16.gmra.mrb[0].mxu0 %v1775
    %v1814 = vpop.f32.mrb[0].mxu0
    %v1815 = vadd.f32 0.0, %v1814
    %v1816 = vpop.f32.mrb[0].mxu0
    %v1817 = vadd.f32 0.0, %v1816
    %v1818 = vpop.f32.mrb[0].mxu0
    %v1819 = vadd.f32 0.0, %v1818
    %v1820 = vpop.f32.mrb[0].mxu0
    %v1821 = vadd.f32 0.0, %v1820
    %1822 = vmatprep.mubr.bf16.mxu0 0
    %1823 = vmatmul.mubr.bf16.gmra.mrb[0].mxu0 %v1778
    %v1824 = vpop.f32.mrb[0].mxu0
    %v1825 = vadd.f32 0.0, %v1824
    %v1826 = vpop.f32.mrb[0].mxu0
    %v1827 = vadd.f32 0.0, %v1826
    %v1828 = vpop.f32.mrb[0].mxu0
    %v1829 = vadd.f32 0.0, %v1828
    %v1830 = vpop.f32.mrb[0].mxu0
    %v1831 = vadd.f32 0.0, %v1830
    %1832 = vdwg.mxu0
    %1833 = vmatprep.subr.bf16.mxu0 0
    %1834 = vmatpush1.bf16.msra.mxu0 %v1625
    %1835 = vmatprep.subr.bf16.mxu0 0
    %1836 = vmatpush1.bf16.msra.mxu0 %v1628
    %1837 = vmatprep.subr.bf16.mxu0 0
    %1838 = vmatpush1.bf16.msra.mxu0 0
    %1839 = vmatprep.subr.bf16.mxu0 0
    %1840 = vmatpush1.bf16.msra.mxu0 0
    %1841 = vmatprep.subr.bf16.mxu0 0
    %1842 = vmatpush1.bf16.msra.mxu0 0
    %1843 = vmatprep.subr.bf16.mxu0 0
    %1844 = vmatpush1.bf16.msra.mxu0 0
    %1845 = vmatprep.subr.bf16.mxu0 0
    %1846 = vmatpush1.bf16.msra.mxu0 0
    %1847 = vmatprep.subr.bf16.mxu0 0
    %1848 = vmatpush1.bf16.msra.mxu0 0
    %1849 = vmatprep.subr.bf16.mxu0 0
    %1850 = vmatpush1.bf16.msra.mxu0 0
    %1851 = vmatprep.subr.bf16.mxu0 0
    %1852 = vmatpush1.bf16.msra.mxu0 0
    %1853 = vmatprep.subr.bf16.mxu0 0
    %1854 = vmatpush1.bf16.msra.mxu0 0
    %1855 = vmatprep.subr.bf16.mxu0 0
    %1856 = vmatpush1.bf16.msra.mxu0 0
    %1857 = vmatprep.subr.bf16.mxu0 0
    %1858 = vmatpush1.bf16.msra.mxu0 0
    %1859 = vmatprep.subr.bf16.mxu0 0
    %1860 = vmatpush1.bf16.msra.mxu0 0
    %1861 = vmatprep.subr.bf16.mxu0 0
    %1862 = vmatpush1.bf16.msra.mxu0 0
    %1863 = vmatprep.subr.bf16.mxu0 0
    %1864 = vmatpush1.bf16.msra.mxu0 0
    %1865 = vmatprep.mubr.bf16.mxu0 0
    %1866 = vmatmul.mubr.bf16.gmra.mrb[0].mxu0 %v1775
    %v1867 = vpop.f32.mrb[0].mxu0
    %v1868 = vadd.f32 0.0, %v1867
    %v1869 = vpop.f32.mrb[0].mxu0
    %v1870 = vpop.f32.mrb[0].mxu0
    %v1871 = vadd.f32 0.0, %v1870
    %v1872 = vpop.f32.mrb[0].mxu0
    %1873 = vmatprep.mubr.bf16.mxu0 0
    %1874 = vmatmul.mubr.bf16.gmra.mrb[0].mxu0 %v1778
    %v1875 = vpop.f32.mrb[0].mxu0
    %v1876 = vadd.f32 0.0, %v1875
    %v1877 = vpop.f32.mrb[0].mxu0
    %v1878 = vpop.f32.mrb[0].mxu0
    %v1879 = vadd.f32 0.0, %v1878
    %v1880 = vpop.f32.mrb[0].mxu0
    %1881 = vdwg.mxu0
    %v1882 = vpack.c.bf16 %v1819, %v1815
    %v1883 = vpack.c.bf16 %v1821, %v1817
    %v1884 = vpack.c.bf16 %v1871, %v1868
    %v1885 = vpack.c.bf16 %v1829, %v1825
    %v1886 = vpack.c.bf16 %v1831, %v1827
    %v1887 = vpack.c.bf16 %v1879, %v1876
    %s1888 = smul.u32 4, 160
    %s1889 = smul.u32 %s1888, 3
    %s1890 = sshll.u32 %s1889, 4
    %1891 = dma.done [#allocation3], %s1890
    %v1892 = vld [vmem:[#allocation2] sm:$0xff]
    %v1893 = vld [vmem:[#allocation2 + $0x8] sm:$0xff]
    %v1894 = vld [vmem:[#allocation2 + $0x10] sm:$0xff]
    %v1895 = vld [vmem:[#allocation2 + $0x18] sm:$0xff]
    %v1896 = vld [vmem:[#allocation2 + $0x20] sm:$0xff]
    %v1897 = vld [vmem:[#allocation2 + $0x28] sm:$0xff]
    %v1898 = vld [vmem:[#allocation2 + $0x30] sm:$0xff]
    %v1899 = vld [vmem:[#allocation2 + $0x38] sm:$0xff]
    %v1900 = vld [vmem:[#allocation2 + $0x40] sm:$0xff]
    %v1901 = vld [vmem:[#allocation2 + $0x48] sm:$0xff]
    %v1902 = vld [vmem:[#allocation2 + $0x50] sm:$0xff]
    %v1903 = vld [vmem:[#allocation2 + $0x58] sm:$0xff]
    %v1904 = vld [vmem:[#allocation2 + $0x60] sm:$0xff]
    %v1905 = vld [vmem:[#allocation2 + $0x68] sm:$0xff]
    %v1906 = vld [vmem:[#allocation2 + $0x70] sm:$0xff]
    %v1907 = vld [vmem:[#allocation2 + $0x78] sm:$0xff]
    %v1908 = vld [vmem:[#allocation2 + $0x80] sm:$0xff]
    %v1909 = vld [vmem:[#allocation2 + $0x88] sm:$0xff]
    %v1910 = vld [vmem:[#allocation2 + $0x90] sm:$0xff]
    %v1911 = vld [vmem:[#allocation2 + $0x98] sm:$0xff]
    %v1912 = vld [vmem:[#allocation2 + $0xa0] sm:$0xff]
    %v1913 = vld [vmem:[#allocation2 + $0xa8] sm:$0xff]
    %v1914 = vld [vmem:[#allocation2 + $0xb0] sm:$0xff]
    %v1915 = vld [vmem:[#allocation2 + $0xb8] sm:$0xff]
    %v1916 = vld [vmem:[#allocation2 + $0xc0] sm:$0xff]
    %v1917 = vld [vmem:[#allocation2 + $0xc8] sm:$0xff]
    %v1918 = vld [vmem:[#allocation2 + $0xd0] sm:$0xff]
    %v1919 = vld [vmem:[#allocation2 + $0xd8] sm:$0xff]
    %v1920 = vld [vmem:[#allocation2 + $0xe0] sm:$0xff]
    %v1921 = vld [vmem:[#allocation2 + $0xe8] sm:$0xff]
    %v1922 = vld [vmem:[#allocation2 + $0xf0] sm:$0xff]
    %v1923 = vld [vmem:[#allocation2 + $0xf8] sm:$0xff]
    %v1924 = vld [vmem:[#allocation2 + $0x100] sm:$0xff]
    %v1925 = vld [vmem:[#allocation2 + $0x108] sm:$0xff]
    %v1926 = vld [vmem:[#allocation2 + $0x110] sm:$0xff]
    %v1927 = vld [vmem:[#allocation2 + $0x118] sm:$0xff]
    %v1928 = vld [vmem:[#allocation2 + $0x120] sm:$0xff]
    %v1929 = vld [vmem:[#allocation2 + $0x128] sm:$0xff]
    %v1930 = vld [vmem:[#allocation2 + $0x130] sm:$0xff]
    %v1931 = vld [vmem:[#allocation2 + $0x138] sm:$0xff]
    %v1932 = vld [vmem:[#allocation2 + $0x140] sm:$0xff]
    %v1933 = vld [vmem:[#allocation2 + $0x148] sm:$0xff]
    %v1934 = vld [vmem:[#allocation2 + $0x150] sm:$0xff]
    %v1935 = vld [vmem:[#allocation2 + $0x158] sm:$0xff]
    %v1936 = vld [vmem:[#allocation2 + $0x160] sm:$0xff]
    %v1937 = vld [vmem:[#allocation2 + $0x168] sm:$0xff]
    %v1938 = vld [vmem:[#allocation2 + $0x170] sm:$0xff]
    %v1939 = vld [vmem:[#allocation2 + $0x178] sm:$0xff]
    %v1940 = vld [vmem:[#allocation2 + $0x180] sm:$0xff]
    %v1941 = vld [vmem:[#allocation2 + $0x188] sm:$0xff]
    %v1942 = vld [vmem:[#allocation2 + $0x190] sm:$0xff]
    %v1943 = vld [vmem:[#allocation2 + $0x198] sm:$0xff]
    %v1944 = vld [vmem:[#allocation2 + $0x1a0] sm:$0xff]
    %v1945 = vld [vmem:[#allocation2 + $0x1a8] sm:$0xff]
    %v1946 = vld [vmem:[#allocation2 + $0x1b0] sm:$0xff]
    %v1947 = vld [vmem:[#allocation2 + $0x1b8] sm:$0xff]
    %v1948 = vld [vmem:[#allocation2 + $0x1c0] sm:$0xff]
    %v1949 = vld [vmem:[#allocation2 + $0x1c8] sm:$0xff]
    %v1950 = vld [vmem:[#allocation2 + $0x1d0] sm:$0xff]
    %v1951 = vld [vmem:[#allocation2 + $0x1d8] sm:$0xff]
    %v1952 = vld [vmem:[#allocation2 + $0x1e0] sm:$0xff]
    %v1953 = vld [vmem:[#allocation2 + $0x1e8] sm:$0xff]
    %v1954 = vld [vmem:[#allocation2 + $0x1f0] sm:$0xff]
    %v1955 = vld [vmem:[#allocation2 + $0x1f8] sm:$0xff]
    %v1956 = vld [vmem:[#allocation2 + $0x200] sm:$0xff]
    %v1957 = vld [vmem:[#allocation2 + $0x208] sm:$0xff]
    %v1958 = vld [vmem:[#allocation2 + $0x210] sm:$0xff]
    %v1959 = vld [vmem:[#allocation2 + $0x218] sm:$0xff]
    %v1960 = vld [vmem:[#allocation2 + $0x220] sm:$0xff]
    %v1961 = vld [vmem:[#allocation2 + $0x228] sm:$0xff]
    %v1962 = vld [vmem:[#allocation2 + $0x230] sm:$0xff]
    %v1963 = vld [vmem:[#allocation2 + $0x238] sm:$0xff]
    %v1964 = vld [vmem:[#allocation2 + $0x240] sm:$0xff]
    %v1965 = vld [vmem:[#allocation2 + $0x248] sm:$0xff]
    %v1966 = vld [vmem:[#allocation2 + $0x250] sm:$0xff]
    %v1967 = vld [vmem:[#allocation2 + $0x258] sm:$0xff]
    %v1968 = vld [vmem:[#allocation2 + $0x260] sm:$0xff]
    %v1969 = vld [vmem:[#allocation2 + $0x268] sm:$0xff]
    %v1970 = vld [vmem:[#allocation2 + $0x270] sm:$0xff]
    %v1971 = vld [vmem:[#allocation2 + $0x278] sm:$0xff]
    %v1972 = vld [vmem:[#allocation2 + $0x280] sm:$0xff]
    %v1973 = vld [vmem:[#allocation2 + $0x288] sm:$0xff]
    %v1974 = vld [vmem:[#allocation2 + $0x290] sm:$0xff]
    %v1975 = vld [vmem:[#allocation2 + $0x298] sm:$0xff]
    %v1976 = vld [vmem:[#allocation2 + $0x2a0] sm:$0xff]
    %v1977 = vld [vmem:[#allocation2 + $0x2a8] sm:$0xff]
    %v1978 = vld [vmem:[#allocation2 + $0x2b0] sm:$0xff]
    %v1979 = vld [vmem:[#allocation2 + $0x2b8] sm:$0xff]
    %v1980 = vld [vmem:[#allocation2 + $0x2c0] sm:$0xff]
    %v1981 = vld [vmem:[#allocation2 + $0x2c8] sm:$0xff]
    %v1982 = vld [vmem:[#allocation2 + $0x2d0] sm:$0xff]
    %v1983 = vld [vmem:[#allocation2 + $0x2d8] sm:$0xff]
    %v1984 = vld [vmem:[#allocation2 + $0x2e0] sm:$0xff]
    %v1985 = vld [vmem:[#allocation2 + $0x2e8] sm:$0xff]
    %v1986 = vld [vmem:[#allocation2 + $0x2f0] sm:$0xff]
    %v1987 = vld [vmem:[#allocation2 + $0x2f8] sm:$0xff]
    %v1988 = vld [vmem:[#allocation2 + $0x300] sm:$0xff]
    %v1989 = vld [vmem:[#allocation2 + $0x308] sm:$0xff]
    %v1990 = vld [vmem:[#allocation2 + $0x310] sm:$0xff]
    %v1991 = vld [vmem:[#allocation2 + $0x318] sm:$0xff]
    %v1992 = vld [vmem:[#allocation2 + $0x320] sm:$0xff]
    %v1993 = vld [vmem:[#allocation2 + $0x328] sm:$0xff]
    %v1994 = vld [vmem:[#allocation2 + $0x330] sm:$0xff]
    %v1995 = vld [vmem:[#allocation2 + $0x338] sm:$0xff]
    %v1996 = vld [vmem:[#allocation2 + $0x340] sm:$0xff]
    %v1997 = vld [vmem:[#allocation2 + $0x348] sm:$0xff]
    %v1998 = vld [vmem:[#allocation2 + $0x350] sm:$0xff]
    %v1999 = vld [vmem:[#allocation2 + $0x358] sm:$0xff]
    %v2000 = vld [vmem:[#allocation2 + $0x360] sm:$0xff]
    %v2001 = vld [vmem:[#allocation2 + $0x368] sm:$0xff]
    %v2002 = vld [vmem:[#allocation2 + $0x370] sm:$0xff]
    %v2003 = vld [vmem:[#allocation2 + $0x378] sm:$0xff]
    %v2004 = vld [vmem:[#allocation2 + $0x380] sm:$0xff]
    %v2005 = vld [vmem:[#allocation2 + $0x388] sm:$0xff]
    %v2006 = vld [vmem:[#allocation2 + $0x390] sm:$0xff]
    %v2007 = vld [vmem:[#allocation2 + $0x398] sm:$0xff]
    %v2008 = vld [vmem:[#allocation2 + $0x3a0] sm:$0xff]
    %v2009 = vld [vmem:[#allocation2 + $0x3a8] sm:$0xff]
    %v2010 = vld [vmem:[#allocation2 + $0x3b0] sm:$0xff]
    %v2011 = vld [vmem:[#allocation2 + $0x3b8] sm:$0xff]
    %v2012 = vld [vmem:[#allocation2 + $0x3c0] sm:$0xff]
    %v2013 = vld [vmem:[#allocation2 + $0x3c8] sm:$0xff]
    %v2014 = vld [vmem:[#allocation2 + $0x3d0] sm:$0xff]
    %v2015 = vld [vmem:[#allocation2 + $0x3d8] sm:$0xff]
    %v2016 = vld [vmem:[#allocation2 + $0x3e0] sm:$0xff]
    %v2017 = vld [vmem:[#allocation2 + $0x3e8] sm:$0xff]
    %v2018 = vld [vmem:[#allocation2 + $0x3f0] sm:$0xff]
    %v2019 = vld [vmem:[#allocation2 + $0x3f8] sm:$0xff]
    %v2020 = vld [vmem:[#allocation2 + $0x400] sm:$0xff]
    %v2021 = vld [vmem:[#allocation2 + $0x408] sm:$0xff]
    %v2022 = vld [vmem:[#allocation2 + $0x410] sm:$0xff]
    %v2023 = vld [vmem:[#allocation2 + $0x418] sm:$0xff]
    %v2024 = vld [vmem:[#allocation2 + $0x420] sm:$0xff]
    %v2025 = vld [vmem:[#allocation2 + $0x428] sm:$0xff]
    %v2026 = vld [vmem:[#allocation2 + $0x430] sm:$0xff]
    %v2027 = vld [vmem:[#allocation2 + $0x438] sm:$0xff]
    %v2028 = vld [vmem:[#allocation2 + $0x440] sm:$0xff]
    %v2029 = vld [vmem:[#allocation2 + $0x448] sm:$0xff]
    %v2030 = vld [vmem:[#allocation2 + $0x450] sm:$0xff]
    %v2031 = vld [vmem:[#allocation2 + $0x458] sm:$0xff]
    %v2032 = vld [vmem:[#allocation2 + $0x460] sm:$0xff]
    %v2033 = vld [vmem:[#allocation2 + $0x468] sm:$0xff]
    %v2034 = vld [vmem:[#allocation2 + $0x470] sm:$0xff]
    %v2035 = vld [vmem:[#allocation2 + $0x478] sm:$0xff]
    %2036 = vmatprep.subr.bf16.mxu0 %v1965
    %2037 = vmatpush1.bf16.msra.mxu0 %v1964
    %2038 = vmatprep.subr.bf16.mxu0 %v1968
    %2039 = vmatpush1.bf16.msra.mxu0 %v1967
    %2040 = vmatprep.subr.bf16.mxu0 %v1971
    %2041 = vmatpush1.bf16.msra.mxu0 %v1970
    %2042 = vmatprep.subr.bf16.mxu0 %v1974
    %2043 = vmatpush1.bf16.msra.mxu0 %v1973
    %2044 = vmatprep.subr.bf16.mxu0 %v1977
    %2045 = vmatpush1.bf16.msra.mxu0 %v1976
    %2046 = vmatprep.subr.bf16.mxu0 %v1980
    %2047 = vmatpush1.bf16.msra.mxu0 %v1979
    %2048 = vmatprep.subr.bf16.mxu0 %v1983
    %2049 = vmatpush1.bf16.msra.mxu0 %v1982
    %2050 = vmatprep.subr.bf16.mxu0 %v1986
    %2051 = vmatpush1.bf16.msra.mxu0 %v1985
    %2052 = vmatprep.subr.bf16.mxu0 %v1989
    %2053 = vmatpush1.bf16.msra.mxu0 %v1988
    %2054 = vmatprep.subr.bf16.mxu0 %v1992
    %2055 = vmatpush1.bf16.msra.mxu0 %v1991
    %2056 = vmatprep.subr.bf16.mxu0 %v1995
    %2057 = vmatpush1.bf16.msra.mxu0 %v1994
    %2058 = vmatprep.subr.bf16.mxu0 %v1998
    %2059 = vmatpush1.bf16.msra.mxu0 %v1997
    %2060 = vmatprep.subr.bf16.mxu0 %v2001
    %2061 = vmatpush1.bf16.msra.mxu0 %v2000
    %2062 = vmatprep.subr.bf16.mxu0 %v2004
    %2063 = vmatpush1.bf16.msra.mxu0 %v2003
    %2064 = vmatprep.subr.bf16.mxu0 %v2007
    %2065 = vmatpush1.bf16.msra.mxu0 %v2006
    %2066 = vmatprep.subr.bf16.mxu0 %v2010
    %2067 = vmatpush1.bf16.msra.mxu0 %v2009
    %2068 = vmatprep.mubr.bf16.mxu0 %v1624
    %2069 = vmatmul.mubr.bf16.gmra.mrb[0].mxu0 %v1623
    %v2070 = vpop.f32.mrb[0].mxu0
    %v2071 = vadd.f32 0.0, %v2070
    %v2072 = vpop.f32.mrb[0].mxu0
    %v2073 = vadd.f32 0.0, %v2072
    %v2074 = vpop.f32.mrb[0].mxu0
    %v2075 = vadd.f32 0.0, %v2074
    %v2076 = vpop.f32.mrb[0].mxu0
    %v2077 = vadd.f32 0.0, %v2076
    %2078 = vmatprep.mubr.bf16.mxu0 %v1627
    %2079 = vmatmul.mubr.bf16.gmra.mrb[0].mxu0 %v1626
    %v2080 = vpop.f32.mrb[0].mxu0
    %v2081 = vadd.f32 0.0, %v2080
    %v2082 = vpop.f32.mrb[0].mxu0
    %v2083 = vadd.f32 0.0, %v2082
    %v2084 = vpop.f32.mrb[0].mxu0
    %v2085 = vadd.f32 0.0, %v2084
    %v2086 = vpop.f32.mrb[0].mxu0
    %v2087 = vadd.f32 0.0, %v2086
    %2088 = vdwg.mxu0
    %2089 = vmatprep.subr.bf16.mxu0 %v2013
    %2090 = vmatpush1.bf16.msra.mxu0 %v2012
    %2091 = vmatprep.subr.bf16.mxu0 %v2016
    %2092 = vmatpush1.bf16.msra.mxu0 %v2015
    %2093 = vmatprep.subr.bf16.mxu0 %v2019
    %2094 = vmatpush1.bf16.msra.mxu0 %v2018
    %2095 = vmatprep.subr.bf16.mxu0 %v2022
    %2096 = vmatpush1.bf16.msra.mxu0 %v2021
    %2097 = vmatprep.subr.bf16.mxu0 %v2025
    %2098 = vmatpush1.bf16.msra.mxu0 %v2024
    %2099 = vmatprep.subr.bf16.mxu0 %v2028
    %2100 = vmatpush1.bf16.msra.mxu0 %v2027
    %2101 = vmatprep.subr.bf16.mxu0 %v2031
    %2102 = vmatpush1.bf16.msra.mxu0 %v2030
    %2103 = vmatprep.subr.bf16.mxu0 %v2034
    %2104 = vmatpush1.bf16.msra.mxu0 %v2033
    %2105 = vmatprep.subr.bf16.mxu0 0
    %2106 = vmatpush1.bf16.msra.mxu0 0
    %2107 = vmatprep.subr.bf16.mxu0 0
    %2108 = vmatpush1.bf16.msra.mxu0 0
    %2109 = vmatprep.subr.bf16.mxu0 0
    %2110 = vmatpush1.bf16.msra.mxu0 0
    %2111 = vmatprep.subr.bf16.mxu0 0
    %2112 = vmatpush1.bf16.msra.mxu0 0
    %2113 = vmatprep.subr.bf16.mxu0 0
    %2114 = vmatpush1.bf16.msra.mxu0 0
    %2115 = vmatprep.subr.bf16.mxu0 0
    %2116 = vmatpush1.bf16.msra.mxu0 0
    %2117 = vmatprep.subr.bf16.mxu0 0
    %2118 = vmatpush1.bf16.msra.mxu0 0
    %2119 = vmatprep.subr.bf16.mxu0 0
    %2120 = vmatpush1.bf16.msra.mxu0 0
    %2121 = vmatprep.mubr.bf16.mxu0 0
    %2122 = vmatmul.mubr.bf16.gmra.mrb[0].mxu0 %v1625
    %v2123 = vpop.f32.mrb[0].mxu0
    %v2124 = vadd.f32 %v2071, %v2123
    %v2125 = vpop.f32.mrb[0].mxu0
    %v2126 = vadd.f32 %v2073, %v2125
    %v2127 = vpop.f32.mrb[0].mxu0
    %v2128 = vadd.f32 %v2075, %v2127
    %v2129 = vpop.f32.mrb[0].mxu0
    %v2130 = vadd.f32 %v2077, %v2129
    %2131 = vmatprep.mubr.bf16.mxu0 0
    %2132 = vmatmul.mubr.bf16.gmra.mrb[0].mxu0 %v1628
    %v2133 = vpop.f32.mrb[0].mxu0
    %v2134 = vadd.f32 %v2081, %v2133
    %v2135 = vpop.f32.mrb[0].mxu0
    %v2136 = vadd.f32 %v2083, %v2135
    %v2137 = vpop.f32.mrb[0].mxu0
    %v2138 = vadd.f32 %v2085, %v2137
    %v2139 = vpop.f32.mrb[0].mxu0
    %v2140 = vadd.f32 %v2087, %v2139
    %2141 = vdwg.mxu0
    %2142 = vmatprep.subr.bf16.mxu0 0
    %2143 = vmatpush1.bf16.msra.mxu0 %v1966
    %2144 = vmatprep.subr.bf16.mxu0 0
    %2145 = vmatpush1.bf16.msra.mxu0 %v1969
    %2146 = vmatprep.subr.bf16.mxu0 0
    %2147 = vmatpush1.bf16.msra.mxu0 %v1972
    %2148 = vmatprep.subr.bf16.mxu0 0
    %2149 = vmatpush1.bf16.msra.mxu0 %v1975
    %2150 = vmatprep.subr.bf16.mxu0 0
    %2151 = vmatpush1.bf16.msra.mxu0 %v1978
    %2152 = vmatprep.subr.bf16.mxu0 0
    %2153 = vmatpush1.bf16.msra.mxu0 %v1981
    %2154 = vmatprep.subr.bf16.mxu0 0
    %2155 = vmatpush1.bf16.msra.mxu0 %v1984
    %2156 = vmatprep.subr.bf16.mxu0 0
    %2157 = vmatpush1.bf16.msra.mxu0 %v1987
    %2158 = vmatprep.subr.bf16.mxu0 0
    %2159 = vmatpush1.bf16.msra.mxu0 %v1990
    %2160 = vmatprep.subr.bf16.mxu0 0
    %2161 = vmatpush1.bf16.msra.mxu0 %v1993
    %2162 = vmatprep.subr.bf16.mxu0 0
    %2163 = vmatpush1.bf16.msra.mxu0 %v1996
    %2164 = vmatprep.subr.bf16.mxu0 0
    %2165 = vmatpush1.bf16.msra.mxu0 %v1999
    %2166 = vmatprep.subr.bf16.mxu0 0
    %2167 = vmatpush1.bf16.msra.mxu0 %v2002
    %2168 = vmatprep.subr.bf16.mxu0 0
    %2169 = vmatpush1.bf16.msra.mxu0 %v2005
    %2170 = vmatprep.subr.bf16.mxu0 0
    %2171 = vmatpush1.bf16.msra.mxu0 %v2008
    %2172 = vmatprep.subr.bf16.mxu0 0
    %2173 = vmatpush1.bf16.msra.mxu0 %v2011
    %2174 = vmatprep.mubr.bf16.mxu0 %v1624
    %2175 = vmatmul.mubr.bf16.gmra.mrb[0].mxu0 %v1623
    %v2176 = vpop.f32.mrb[0].mxu0
    %v2177 = vadd.f32 0.0, %v2176
    %v2178 = vpop.f32.mrb[0].mxu0
    %v2179 = vpop.f32.mrb[0].mxu0
    %v2180 = vadd.f32 0.0, %v2179
    %v2181 = vpop.f32.mrb[0].mxu0
    %2182 = vmatprep.mubr.bf16.mxu0 %v1627
    %2183 = vmatmul.mubr.bf16.gmra.mrb[0].mxu0 %v1626
    %v2184 = vpop.f32.mrb[0].mxu0
    %v2185 = vadd.f32 0.0, %v2184
    %v2186 = vpop.f32.mrb[0].mxu0
    %v2187 = vpop.f32.mrb[0].mxu0
    %v2188 = vadd.f32 0.0, %v2187
    %v2189 = vpop.f32.mrb[0].mxu0
    %2190 = vdwg.mxu0
    %2191 = vmatprep.subr.bf16.mxu0 0
    %2192 = vmatpush1.bf16.msra.mxu0 %v2014
    %2193 = vmatprep.subr.bf16.mxu0 0
    %2194 = vmatpush1.bf16.msra.mxu0 %v2017
    %2195 = vmatprep.subr.bf16.mxu0 0
    %2196 = vmatpush1.bf16.msra.mxu0 %v2020
    %2197 = vmatprep.subr.bf16.mxu0 0
    %2198 = vmatpush1.bf16.msra.mxu0 %v2023
    %2199 = vmatprep.subr.bf16.mxu0 0
    %2200 = vmatpush1.bf16.msra.mxu0 %v2026
    %2201 = vmatprep.subr.bf16.mxu0 0
    %2202 = vmatpush1.bf16.msra.mxu0 %v2029
    %2203 = vmatprep.subr.bf16.mxu0 0
    %2204 = vmatpush1.bf16.msra.mxu0 %v2032
    %2205 = vmatprep.subr.bf16.mxu0 0
    %2206 = vmatpush1.bf16.msra.mxu0 %v2035
    %2207 = vmatprep.subr.bf16.mxu0 0
    %2208 = vmatpush1.bf16.msra.mxu0 0
    %2209 = vmatprep.subr.bf16.mxu0 0
    %2210 = vmatpush1.bf16.msra.mxu0 0
    %2211 = vmatprep.subr.bf16.mxu0 0
    %2212 = vmatpush1.bf16.msra.mxu0 0
    %2213 = vmatprep.subr.bf16.mxu0 0
    %2214 = vmatpush1.bf16.msra.mxu0 0
    %2215 = vmatprep.subr.bf16.mxu0 0
    %2216 = vmatpush1.bf16.msra.mxu0 0
    %2217 = vmatprep.subr.bf16.mxu0 0
    %2218 = vmatpush1.bf16.msra.mxu0 0
    %2219 = vmatprep.subr.bf16.mxu0 0
    %2220 = vmatpush1.bf16.msra.mxu0 0
    %2221 = vmatprep.subr.bf16.mxu0 0
    %2222 = vmatpush1.bf16.msra.mxu0 0
    %2223 = vmatprep.mubr.bf16.mxu0 0
    %2224 = vmatmul.mubr.bf16.gmra.mrb[0].mxu0 %v1625
    %v2225 = vpop.f32.mrb[0].mxu0
    %v2226 = vadd.f32 %v2177, %v2225
    %v2227 = vpop.f32.mrb[0].mxu0
    %v2228 = vpop.f32.mrb[0].mxu0
    %v2229 = vadd.f32 %v2180, %v2228
    %v2230 = vpop.f32.mrb[0].mxu0
    %2231 = vmatprep.mubr.bf16.mxu0 0
    %2232 = vmatmul.mubr.bf16.gmra.mrb[0].mxu0 %v1628
    %v2233 = vpop.f32.mrb[0].mxu0
    %v2234 = vadd.f32 %v2185, %v2233
    %v2235 = vpop.f32.mrb[0].mxu0
    %v2236 = vpop.f32.mrb[0].mxu0
    %v2237 = vadd.f32 %v2188, %v2236
    %v2238 = vpop.f32.mrb[0].mxu0
    %2239 = vdwg.mxu0
    %2240 = vmatprep.subr.bf16.mxu0 %v1893
    %2241 = vmatpush1.bf16.msra.mxu0 %v1892
    %2242 = vmatprep.subr.bf16.mxu0 %v1896
    %2243 = vmatpush1.bf16.msra.mxu0 %v1895
    %2244 = vmatprep.subr.bf16.mxu0 %v1899
    %2245 = vmatpush1.bf16.msra.mxu0 %v1898
    %2246 = vmatprep.subr.bf16.mxu0 %v1902
    %2247 = vmatpush1.bf16.msra.mxu0 %v1901
    %2248 = vmatprep.subr.bf16.mxu0 %v1905
    %2249 = vmatpush1.bf16.msra.mxu0 %v1904
    %2250 = vmatprep.subr.bf16.mxu0 %v1908
    %2251 = vmatpush1.bf16.msra.mxu0 %v1907
    %2252 = vmatprep.subr.bf16.mxu0 %v1911
    %2253 = vmatpush1.bf16.msra.mxu0 %v1910
    %2254 = vmatprep.subr.bf16.mxu0 %v1914
    %2255 = vmatpush1.bf16.msra.mxu0 %v1913
    %2256 = vmatprep.subr.bf16.mxu0 %v1917
    %2257 = vmatpush1.bf16.msra.mxu0 %v1916
    %2258 = vmatprep.subr.bf16.mxu0 %v1920
    %2259 = vmatpush1.bf16.msra.mxu0 %v1919
    %2260 = vmatprep.subr.bf16.mxu0 %v1923
    %2261 = vmatpush1.bf16.msra.mxu0 %v1922
    %2262 = vmatprep.subr.bf16.mxu0 %v1926
    %2263 = vmatpush1.bf16.msra.mxu0 %v1925
    %2264 = vmatprep.subr.bf16.mxu0 %v1929
    %2265 = vmatpush1.bf16.msra.mxu0 %v1928
    %2266 = vmatprep.subr.bf16.mxu0 %v1932
    %2267 = vmatpush1.bf16.msra.mxu0 %v1931
    %2268 = vmatprep.subr.bf16.mxu0 %v1935
    %2269 = vmatpush1.bf16.msra.mxu0 %v1934
    %2270 = vmatprep.subr.bf16.mxu0 %v1938
    %2271 = vmatpush1.bf16.msra.mxu0 %v1937
    %2272 = vmatprep.mubr.bf16.mxu0 %v1755
    %2273 = vmatmul.mubr.bf16.gmra.mrb[0].mxu0 %v1754
    %v2274 = vpop.f32.mrb[0].mxu0
    %v2275 = vadd.f32 %v2124, %v2274
    %v2276 = vpop.f32.mrb[0].mxu0
    %v2277 = vadd.f32 %v2126, %v2276
    %v2278 = vpop.f32.mrb[0].mxu0
    %v2279 = vadd.f32 %v2128, %v2278
    %v2280 = vpop.f32.mrb[0].mxu0
    %v2281 = vadd.f32 %v2130, %v2280
    %2282 = vmatprep.mubr.bf16.mxu0 %v1758
    %2283 = vmatmul.mubr.bf16.gmra.mrb[0].mxu0 %v1757
    %v2284 = vpop.f32.mrb[0].mxu0
    %v2285 = vadd.f32 %v2134, %v2284
    %v2286 = vpop.f32.mrb[0].mxu0
    %v2287 = vadd.f32 %v2136, %v2286
    %v2288 = vpop.f32.mrb[0].mxu0
    %v2289 = vadd.f32 %v2138, %v2288
    %v2290 = vpop.f32.mrb[0].mxu0
    %v2291 = vadd.f32 %v2140, %v2290
    %2292 = vdwg.mxu0
    %2293 = vmatprep.subr.bf16.mxu0 %v1941
    %2294 = vmatpush1.bf16.msra.mxu0 %v1940
    %2295 = vmatprep.subr.bf16.mxu0 %v1944
    %2296 = vmatpush1.bf16.msra.mxu0 %v1943
    %2297 = vmatprep.subr.bf16.mxu0 %v1947
    %2298 = vmatpush1.bf16.msra.mxu0 %v1946
    %2299 = vmatprep.subr.bf16.mxu0 %v1950
    %2300 = vmatpush1.bf16.msra.mxu0 %v1949
    %2301 = vmatprep.subr.bf16.mxu0 %v1953
    %2302 = vmatpush1.bf16.msra.mxu0 %v1952
    %2303 = vmatprep.subr.bf16.mxu0 %v1956
    %2304 = vmatpush1.bf16.msra.mxu0 %v1955
    %2305 = vmatprep.subr.bf16.mxu0 %v1959
    %2306 = vmatpush1.bf16.msra.mxu0 %v1958
    %2307 = vmatprep.subr.bf16.mxu0 %v1962
    %2308 = vmatpush1.bf16.msra.mxu0 %v1961
    %2309 = vmatprep.subr.bf16.mxu0 0
    %2310 = vmatpush1.bf16.msra.mxu0 0
    %2311 = vmatprep.subr.bf16.mxu0 0
    %2312 = vmatpush1.bf16.msra.mxu0 0
    %2313 = vmatprep.subr.bf16.mxu0 0
    %2314 = vmatpush1.bf16.msra.mxu0 0
    %2315 = vmatprep.subr.bf16.mxu0 0
    %2316 = vmatpush1.bf16.msra.mxu0 0
    %2317 = vmatprep.subr.bf16.mxu0 0
    %2318 = vmatpush1.bf16.msra.mxu0 0
    %2319 = vmatprep.subr.bf16.mxu0 0
    %2320 = vmatpush1.bf16.msra.mxu0 0
    %2321 = vmatprep.subr.bf16.mxu0 0
    %2322 = vmatpush1.bf16.msra.mxu0 0
    %2323 = vmatprep.subr.bf16.mxu0 0
    %2324 = vmatpush1.bf16.msra.mxu0 0
    %2325 = vmatprep.mubr.bf16.mxu0 0
    %2326 = vmatmul.mubr.bf16.gmra.mrb[0].mxu0 %v1756
    %v2327 = vpop.f32.mrb[0].mxu0
    %v2328 = vadd.f32 %v2275, %v2327
    %v2329 = vpop.f32.mrb[0].mxu0
    %v2330 = vadd.f32 %v2277, %v2329
    %v2331 = vpop.f32.mrb[0].mxu0
    %v2332 = vadd.f32 %v2279, %v2331
    %v2333 = vpop.f32.mrb[0].mxu0
    %v2334 = vadd.f32 %v2281, %v2333
    %2335 = vmatprep.mubr.bf16.mxu0 0
    %2336 = vmatmul.mubr.bf16.gmra.mrb[0].mxu0 %v1759
    %v2337 = vpop.f32.mrb[0].mxu0
    %v2338 = vadd.f32 %v2285, %v2337
    %v2339 = vpop.f32.mrb[0].mxu0
    %v2340 = vadd.f32 %v2287, %v2339
    %v2341 = vpop.f32.mrb[0].mxu0
    %v2342 = vadd.f32 %v2289, %v2341
    %v2343 = vpop.f32.mrb[0].mxu0
    %v2344 = vadd.f32 %v2291, %v2343
    %2345 = vdwg.mxu0
    %2346 = vmatprep.subr.bf16.mxu0 0
    %2347 = vmatpush1.bf16.msra.mxu0 %v1894
    %2348 = vmatprep.subr.bf16.mxu0 0
    %2349 = vmatpush1.bf16.msra.mxu0 %v1897
    %2350 = vmatprep.subr.bf16.mxu0 0
    %2351 = vmatpush1.bf16.msra.mxu0 %v1900
    %2352 = vmatprep.subr.bf16.mxu0 0
    %2353 = vmatpush1.bf16.msra.mxu0 %v1903
    %2354 = vmatprep.subr.bf16.mxu0 0
    %2355 = vmatpush1.bf16.msra.mxu0 %v1906
    %2356 = vmatprep.subr.bf16.mxu0 0
    %2357 = vmatpush1.bf16.msra.mxu0 %v1909
    %2358 = vmatprep.subr.bf16.mxu0 0
    %2359 = vmatpush1.bf16.msra.mxu0 %v1912
    %2360 = vmatprep.subr.bf16.mxu0 0
    %2361 = vmatpush1.bf16.msra.mxu0 %v1915
    %2362 = vmatprep.subr.bf16.mxu0 0
    %2363 = vmatpush1.bf16.msra.mxu0 %v1918
    %2364 = vmatprep.subr.bf16.mxu0 0
    %2365 = vmatpush1.bf16.msra.mxu0 %v1921
    %2366 = vmatprep.subr.bf16.mxu0 0
    %2367 = vmatpush1.bf16.msra.mxu0 %v1924
    %2368 = vmatprep.subr.bf16.mxu0 0
    %2369 = vmatpush1.bf16.msra.mxu0 %v1927
    %2370 = vmatprep.subr.bf16.mxu0 0
    %2371 = vmatpush1.bf16.msra.mxu0 %v1930
    %2372 = vmatprep.subr.bf16.mxu0 0
    %2373 = vmatpush1.bf16.msra.mxu0 %v1933
    %2374 = vmatprep.subr.bf16.mxu0 0
    %2375 = vmatpush1.bf16.msra.mxu0 %v1936
    %2376 = vmatprep.subr.bf16.mxu0 0
    %2377 = vmatpush1.bf16.msra.mxu0 %v1939
    %2378 = vmatprep.mubr.bf16.mxu0 %v1755
    %2379 = vmatmul.mubr.bf16.gmra.mrb[0].mxu0 %v1754
    %v2380 = vpop.f32.mrb[0].mxu0
    %v2381 = vadd.f32 %v2226, %v2380
    %v2382 = vpop.f32.mrb[0].mxu0
    %v2383 = vpop.f32.mrb[0].mxu0
    %v2384 = vadd.f32 %v2229, %v2383
    %v2385 = vpop.f32.mrb[0].mxu0
    %2386 = vmatprep.mubr.bf16.mxu0 %v1758
    %2387 = vmatmul.mubr.bf16.gmra.mrb[0].mxu0 %v1757
    %v2388 = vpop.f32.mrb[0].mxu0
    %v2389 = vadd.f32 %v2234, %v2388
    %v2390 = vpop.f32.mrb[0].mxu0
    %v2391 = vpop.f32.mrb[0].mxu0
    %v2392 = vadd.f32 %v2237, %v2391
    %v2393 = vpop.f32.mrb[0].mxu0
    %2394 = vdwg.mxu0
    %2395 = vmatprep.subr.bf16.mxu0 0
    %2396 = vmatpush1.bf16.msra.mxu0 %v1942
    %2397 = vmatprep.subr.bf16.mxu0 0
    %2398 = vmatpush1.bf16.msra.mxu0 %v1945
    %2399 = vmatprep.subr.bf16.mxu0 0
    %2400 = vmatpush1.bf16.msra.mxu0 %v1948
    %2401 = vmatprep.subr.bf16.mxu0 0
    %2402 = vmatpush1.bf16.msra.mxu0 %v1951
    %2403 = vmatprep.subr.bf16.mxu0 0
    %2404 = vmatpush1.bf16.msra.mxu0 %v1954
    %2405 = vmatprep.subr.bf16.mxu0 0
    %2406 = vmatpush1.bf16.msra.mxu0 %v1957
    %2407 = vmatprep.subr.bf16.mxu0 0
    %2408 = vmatpush1.bf16.msra.mxu0 %v1960
    %2409 = vmatprep.subr.bf16.mxu0 0
    %2410 = vmatpush1.bf16.msra.mxu0 %v1963
    %2411 = vmatprep.subr.bf16.mxu0 0
    %2412 = vmatpush1.bf16.msra.mxu0 0
    %2413 = vmatprep.subr.bf16.mxu0 0
    %2414 = vmatpush1.bf16.msra.mxu0 0
    %2415 = vmatprep.subr.bf16.mxu0 0
    %2416 = vmatpush1.bf16.msra.mxu0 0
    %2417 = vmatprep.subr.bf16.mxu0 0
    %2418 = vmatpush1.bf16.msra.mxu0 0
    %2419 = vmatprep.subr.bf16.mxu0 0
    %2420 = vmatpush1.bf16.msra.mxu0 0
    %2421 = vmatprep.subr.bf16.mxu0 0
    %2422 = vmatpush1.bf16.msra.mxu0 0
    %2423 = vmatprep.subr.bf16.mxu0 0
    %2424 = vmatpush1.bf16.msra.mxu0 0
    %2425 = vmatprep.subr.bf16.mxu0 0
    %2426 = vmatpush1.bf16.msra.mxu0 0
    %2427 = vmatprep.mubr.bf16.mxu0 0
    %2428 = vmatmul.mubr.bf16.gmra.mrb[0].mxu0 %v1756
    %v2429 = vpop.f32.mrb[0].mxu0
    %v2430 = vadd.f32 %v2381, %v2429
    %v2431 = vpop.f32.mrb[0].mxu0
    %v2432 = vpop.f32.mrb[0].mxu0
    %v2433 = vadd.f32 %v2384, %v2432
    %v2434 = vpop.f32.mrb[0].mxu0
    %2435 = vmatprep.mubr.bf16.mxu0 0
    %2436 = vmatmul.mubr.bf16.gmra.mrb[0].mxu0 %v1759
    %v2437 = vpop.f32.mrb[0].mxu0
    %v2438 = vadd.f32 %v2389, %v2437
    %v2439 = vpop.f32.mrb[0].mxu0
    %v2440 = vpop.f32.mrb[0].mxu0
    %v2441 = vadd.f32 %v2392, %v2440
    %v2442 = vpop.f32.mrb[0].mxu0
    %2443 = vdwg.mxu0
    %v2444 = vld [vmem:[#allocation2 + $0x480] sm:$0xff]
    %v2445 = vld [vmem:[#allocation2 + $0x488] sm:$0xff]
    %v2446 = vld [vmem:[#allocation2 + $0x490] sm:$0xff]
    %v2447 = vld [vmem:[#allocation2 + $0x498] sm:$0xff]
    %v2448 = vld [vmem:[#allocation2 + $0x4a0] sm:$0xff]
    %v2449 = vld [vmem:[#allocation2 + $0x4a8] sm:$0xff]
    %v2450 = vld [vmem:[#allocation2 + $0x4b0] sm:$0xff]
    %v2451 = vld [vmem:[#allocation2 + $0x4b8] sm:$0xff]
    %v2452 = vld [vmem:[#allocation2 + $0x4c0] sm:$0xff]
    %v2453 = vld [vmem:[#allocation2 + $0x4c8] sm:$0xff]
    %v2454 = vld [vmem:[#allocation2 + $0x4d0] sm:$0xff]
    %v2455 = vld [vmem:[#allocation2 + $0x4d8] sm:$0xff]
    %v2456 = vld [vmem:[#allocation2 + $0x4e0] sm:$0xff]
    %v2457 = vld [vmem:[#allocation2 + $0x4e8] sm:$0xff]
    %v2458 = vld [vmem:[#allocation2 + $0x4f0] sm:$0xff]
    %v2459 = vld [vmem:[#allocation2 + $0x4f8] sm:$0xff]
    %v2460 = vld [vmem:[#allocation2 + $0x500] sm:$0xff]
    %v2461 = vld [vmem:[#allocation2 + $0x508] sm:$0xff]
    %v2462 = vld [vmem:[#allocation2 + $0x510] sm:$0xff]
    %v2463 = vld [vmem:[#allocation2 + $0x518] sm:$0xff]
    %v2464 = vld [vmem:[#allocation2 + $0x520] sm:$0xff]
    %v2465 = vld [vmem:[#allocation2 + $0x528] sm:$0xff]
    %v2466 = vld [vmem:[#allocation2 + $0x530] sm:$0xff]
    %v2467 = vld [vmem:[#allocation2 + $0x538] sm:$0xff]
    %v2468 = vld [vmem:[#allocation2 + $0x540] sm:$0xff]
    %v2469 = vld [vmem:[#allocation2 + $0x548] sm:$0xff]
    %v2470 = vld [vmem:[#allocation2 + $0x550] sm:$0xff]
    %v2471 = vld [vmem:[#allocation2 + $0x558] sm:$0xff]
    %v2472 = vld [vmem:[#allocation2 + $0x560] sm:$0xff]
    %v2473 = vld [vmem:[#allocation2 + $0x568] sm:$0xff]
    %v2474 = vld [vmem:[#allocation2 + $0x570] sm:$0xff]
    %v2475 = vld [vmem:[#allocation2 + $0x578] sm:$0xff]
    %v2476 = vld [vmem:[#allocation2 + $0x580] sm:$0xff]
    %v2477 = vld [vmem:[#allocation2 + $0x588] sm:$0xff]
    %v2478 = vld [vmem:[#allocation2 + $0x590] sm:$0xff]
    %v2479 = vld [vmem:[#allocation2 + $0x598] sm:$0xff]
    %v2480 = vld [vmem:[#allocation2 + $0x5a0] sm:$0xff]
    %v2481 = vld [vmem:[#allocation2 + $0x5a8] sm:$0xff]
    %v2482 = vld [vmem:[#allocation2 + $0x5b0] sm:$0xff]
    %v2483 = vld [vmem:[#allocation2 + $0x5b8] sm:$0xff]
    %v2484 = vld [vmem:[#allocation2 + $0x5c0] sm:$0xff]
    %v2485 = vld [vmem:[#allocation2 + $0x5c8] sm:$0xff]
    %v2486 = vld [vmem:[#allocation2 + $0x5d0] sm:$0xff]
    %v2487 = vld [vmem:[#allocation2 + $0x5d8] sm:$0xff]
    %v2488 = vld [vmem:[#allocation2 + $0x5e0] sm:$0xff]
    %v2489 = vld [vmem:[#allocation2 + $0x5e8] sm:$0xff]
    %v2490 = vld [vmem:[#allocation2 + $0x5f0] sm:$0xff]
    %v2491 = vld [vmem:[#allocation2 + $0x5f8] sm:$0xff]
    %v2492 = vld [vmem:[#allocation2 + $0x600] sm:$0xff]
    %v2493 = vld [vmem:[#allocation2 + $0x608] sm:$0xff]
    %v2494 = vld [vmem:[#allocation2 + $0x610] sm:$0xff]
    %v2495 = vld [vmem:[#allocation2 + $0x618] sm:$0xff]
    %v2496 = vld [vmem:[#allocation2 + $0x620] sm:$0xff]
    %v2497 = vld [vmem:[#allocation2 + $0x628] sm:$0xff]
    %v2498 = vld [vmem:[#allocation2 + $0x630] sm:$0xff]
    %v2499 = vld [vmem:[#allocation2 + $0x638] sm:$0xff]
    %v2500 = vld [vmem:[#allocation2 + $0x640] sm:$0xff]
    %v2501 = vld [vmem:[#allocation2 + $0x648] sm:$0xff]
    %v2502 = vld [vmem:[#allocation2 + $0x650] sm:$0xff]
    %v2503 = vld [vmem:[#allocation2 + $0x658] sm:$0xff]
    %v2504 = vld [vmem:[#allocation2 + $0x660] sm:$0xff]
    %v2505 = vld [vmem:[#allocation2 + $0x668] sm:$0xff]
    %v2506 = vld [vmem:[#allocation2 + $0x670] sm:$0xff]
    %v2507 = vld [vmem:[#allocation2 + $0x678] sm:$0xff]
    %v2508 = vld [vmem:[#allocation2 + $0x680] sm:$0xff]
    %v2509 = vld [vmem:[#allocation2 + $0x688] sm:$0xff]
    %v2510 = vld [vmem:[#allocation2 + $0x690] sm:$0xff]
    %v2511 = vld [vmem:[#allocation2 + $0x698] sm:$0xff]
    %v2512 = vld [vmem:[#allocation2 + $0x6a0] sm:$0xff]
    %v2513 = vld [vmem:[#allocation2 + $0x6a8] sm:$0xff]
    %v2514 = vld [vmem:[#allocation2 + $0x6b0] sm:$0xff]
    %v2515 = vld [vmem:[#allocation2 + $0x6b8] sm:$0xff]
    %2516 = vmatprep.subr.bf16.mxu0 %v2445
    %2517 = vmatpush1.bf16.msra.mxu0 %v2444
    %2518 = vmatprep.subr.bf16.mxu0 %v2448
    %2519 = vmatpush1.bf16.msra.mxu0 %v2447
    %2520 = vmatprep.subr.bf16.mxu0 %v2451
    %2521 = vmatpush1.bf16.msra.mxu0 %v2450
    %2522 = vmatprep.subr.bf16.mxu0 %v2454
    %2523 = vmatpush1.bf16.msra.mxu0 %v2453
    %2524 = vmatprep.subr.bf16.mxu0 %v2457
    %2525 = vmatpush1.bf16.msra.mxu0 %v2456
    %2526 = vmatprep.subr.bf16.mxu0 %v2460
    %2527 = vmatpush1.bf16.msra.mxu0 %v2459
    %2528 = vmatprep.subr.bf16.mxu0 %v2463
    %2529 = vmatpush1.bf16.msra.mxu0 %v2462
    %2530 = vmatprep.subr.bf16.mxu0 %v2466
    %2531 = vmatpush1.bf16.msra.mxu0 %v2465
    %2532 = vmatprep.subr.bf16.mxu0 %v2469
    %2533 = vmatpush1.bf16.msra.mxu0 %v2468
    %2534 = vmatprep.subr.bf16.mxu0 %v2472
    %2535 = vmatpush1.bf16.msra.mxu0 %v2471
    %2536 = vmatprep.subr.bf16.mxu0 %v2475
    %2537 = vmatpush1.bf16.msra.mxu0 %v2474
    %2538 = vmatprep.subr.bf16.mxu0 %v2478
    %2539 = vmatpush1.bf16.msra.mxu0 %v2477
    %2540 = vmatprep.subr.bf16.mxu0 %v2481
    %2541 = vmatpush1.bf16.msra.mxu0 %v2480
    %2542 = vmatprep.subr.bf16.mxu0 %v2484
    %2543 = vmatpush1.bf16.msra.mxu0 %v2483
    %2544 = vmatprep.subr.bf16.mxu0 %v2487
    %2545 = vmatpush1.bf16.msra.mxu0 %v2486
    %2546 = vmatprep.subr.bf16.mxu0 %v2490
    %2547 = vmatpush1.bf16.msra.mxu0 %v2489
    %2548 = vmatprep.mubr.bf16.mxu0 %v1883
    %2549 = vmatmul.mubr.bf16.gmra.mrb[0].mxu0 %v1882
    %v2550 = vpop.f32.mrb[0].mxu0
    %v2551 = vadd.f32 0.0, %v2550
    %v2552 = vpop.f32.mrb[0].mxu0
    %v2553 = vadd.f32 0.0, %v2552
    %v2554 = vpop.f32.mrb[0].mxu0
    %v2555 = vadd.f32 0.0, %v2554
    %v2556 = vpop.f32.mrb[0].mxu0
    %v2557 = vadd.f32 0.0, %v2556
    %2558 = vmatprep.mubr.bf16.mxu0 %v1886
    %2559 = vmatmul.mubr.bf16.gmra.mrb[0].mxu0 %v1885
    %v2560 = vpop.f32.mrb[0].mxu0
    %v2561 = vadd.f32 0.0, %v2560
    %v2562 = vpop.f32.mrb[0].mxu0
    %v2563 = vadd.f32 0.0, %v2562
    %v2564 = vpop.f32.mrb[0].mxu0
    %v2565 = vadd.f32 0.0, %v2564
    %v2566 = vpop.f32.mrb[0].mxu0
    %v2567 = vadd.f32 0.0, %v2566
    %2568 = vdwg.mxu0
    %2569 = vmatprep.subr.bf16.mxu0 %v2493
    %2570 = vmatpush1.bf16.msra.mxu0 %v2492
    %2571 = vmatprep.subr.bf16.mxu0 %v2496
    %2572 = vmatpush1.bf16.msra.mxu0 %v2495
    %2573 = vmatprep.subr.bf16.mxu0 %v2499
    %2574 = vmatpush1.bf16.msra.mxu0 %v2498
    %2575 = vmatprep.subr.bf16.mxu0 %v2502
    %2576 = vmatpush1.bf16.msra.mxu0 %v2501
    %2577 = vmatprep.subr.bf16.mxu0 %v2505
    %2578 = vmatpush1.bf16.msra.mxu0 %v2504
    %2579 = vmatprep.subr.bf16.mxu0 %v2508
    %2580 = vmatpush1.bf16.msra.mxu0 %v2507
    %2581 = vmatprep.subr.bf16.mxu0 %v2511
    %2582 = vmatpush1.bf16.msra.mxu0 %v2510
    %2583 = vmatprep.subr.bf16.mxu0 %v2514
    %2584 = vmatpush1.bf16.msra.mxu0 %v2513
    %2585 = vmatprep.subr.bf16.mxu0 0
    %2586 = vmatpush1.bf16.msra.mxu0 0
    %2587 = vmatprep.subr.bf16.mxu0 0
    %2588 = vmatpush1.bf16.msra.mxu0 0
    %2589 = vmatprep.subr.bf16.mxu0 0
    %2590 = vmatpush1.bf16.msra.mxu0 0
    %2591 = vmatprep.subr.bf16.mxu0 0
    %2592 = vmatpush1.bf16.msra.mxu0 0
    %2593 = vmatprep.subr.bf16.mxu0 0
    %2594 = vmatpush1.bf16.msra.mxu0 0
    %2595 = vmatprep.subr.bf16.mxu0 0
    %2596 = vmatpush1.bf16.msra.mxu0 0
    %2597 = vmatprep.subr.bf16.mxu0 0
    %2598 = vmatpush1.bf16.msra.mxu0 0
    %2599 = vmatprep.subr.bf16.mxu0 0
    %2600 = vmatpush1.bf16.msra.mxu0 0
    %2601 = vmatprep.mubr.bf16.mxu0 0
    %2602 = vmatmul.mubr.bf16.gmra.mrb[0].mxu0 %v1884
    %v2603 = vpop.f32.mrb[0].mxu0
    %v2604 = vadd.f32 %v2551, %v2603
    %v2605 = vpop.f32.mrb[0].mxu0
    %v2606 = vadd.f32 %v2553, %v2605
    %v2607 = vpop.f32.mrb[0].mxu0
    %v2608 = vadd.f32 %v2555, %v2607
    %v2609 = vpop.f32.mrb[0].mxu0
    %v2610 = vadd.f32 %v2557, %v2609
    %2611 = vmatprep.mubr.bf16.mxu0 0
    %2612 = vmatmul.mubr.bf16.gmra.mrb[0].mxu0 %v1887
    %v2613 = vpop.f32.mrb[0].mxu0
    %v2614 = vadd.f32 %v2561, %v2613
    %v2615 = vpop.f32.mrb[0].mxu0
    %v2616 = vadd.f32 %v2563, %v2615
    %v2617 = vpop.f32.mrb[0].mxu0
    %v2618 = vadd.f32 %v2565, %v2617
    %v2619 = vpop.f32.mrb[0].mxu0
    %v2620 = vadd.f32 %v2567, %v2619
    %2621 = vdwg.mxu0
    %2622 = vmatprep.subr.bf16.mxu0 0
    %2623 = vmatpush1.bf16.msra.mxu0 %v2446
    %2624 = vmatprep.subr.bf16.mxu0 0
    %2625 = vmatpush1.bf16.msra.mxu0 %v2449
    %2626 = vmatprep.subr.bf16.mxu0 0
    %2627 = vmatpush1.bf16.msra.mxu0 %v2452
    %2628 = vmatprep.subr.bf16.mxu0 0
    %2629 = vmatpush1.bf16.msra.mxu0 %v2455
    %2630 = vmatprep.subr.bf16.mxu0 0
    %2631 = vmatpush1.bf16.msra.mxu0 %v2458
    %2632 = vmatprep.subr.bf16.mxu0 0
    %2633 = vmatpush1.bf16.msra.mxu0 %v2461
    %2634 = vmatprep.subr.bf16.mxu0 0
    %2635 = vmatpush1.bf16.msra.mxu0 %v2464
    %2636 = vmatprep.subr.bf16.mxu0 0
    %2637 = vmatpush1.bf16.msra.mxu0 %v2467
    %2638 = vmatprep.subr.bf16.mxu0 0
    %2639 = vmatpush1.bf16.msra.mxu0 %v2470
    %2640 = vmatprep.subr.bf16.mxu0 0
    %2641 = vmatpush1.bf16.msra.mxu0 %v2473
    %2642 = vmatprep.subr.bf16.mxu0 0
    %2643 = vmatpush1.bf16.msra.mxu0 %v2476
    %2644 = vmatprep.subr.bf16.mxu0 0
    %2645 = vmatpush1.bf16.msra.mxu0 %v2479
    %2646 = vmatprep.subr.bf16.mxu0 0
    %2647 = vmatpush1.bf16.msra.mxu0 %v2482
    %2648 = vmatprep.subr.bf16.mxu0 0
    %2649 = vmatpush1.bf16.msra.mxu0 %v2485
    %2650 = vmatprep.subr.bf16.mxu0 0
    %2651 = vmatpush1.bf16.msra.mxu0 %v2488
    %2652 = vmatprep.subr.bf16.mxu0 0
    %2653 = vmatpush1.bf16.msra.mxu0 %v2491
    %2654 = vmatprep.mubr.bf16.mxu0 %v1883
    %2655 = vmatmul.mubr.bf16.gmra.mrb[0].mxu0 %v1882
    %v2656 = vpop.f32.mrb[0].mxu0
    %v2657 = vadd.f32 0.0, %v2656
    %v2658 = vpop.f32.mrb[0].mxu0
    %v2659 = vpop.f32.mrb[0].mxu0
    %v2660 = vadd.f32 0.0, %v2659
    %v2661 = vpop.f32.mrb[0].mxu0
    %2662 = vmatprep.mubr.bf16.mxu0 %v1886
    %2663 = vmatmul.mubr.bf16.gmra.mrb[0].mxu0 %v1885
    %v2664 = vpop.f32.mrb[0].mxu0
    %v2665 = vadd.f32 0.0, %v2664
    %v2666 = vpop.f32.mrb[0].mxu0
    %v2667 = vpop.f32.mrb[0].mxu0
    %v2668 = vadd.f32 0.0, %v2667
    %v2669 = vpop.f32.mrb[0].mxu0
    %2670 = vdwg.mxu0
    %2671 = vmatprep.subr.bf16.mxu0 0
    %2672 = vmatpush1.bf16.msra.mxu0 %v2494
    %2673 = vmatprep.subr.bf16.mxu0 0
    %2674 = vmatpush1.bf16.msra.mxu0 %v2497
    %2675 = vmatprep.subr.bf16.mxu0 0
    %2676 = vmatpush1.bf16.msra.mxu0 %v2500
    %2677 = vmatprep.subr.bf16.mxu0 0
    %2678 = vmatpush1.bf16.msra.mxu0 %v2503
    %2679 = vmatprep.subr.bf16.mxu0 0
    %2680 = vmatpush1.bf16.msra.mxu0 %v2506
    %2681 = vmatprep.subr.bf16.mxu0 0
    %2682 = vmatpush1.bf16.msra.mxu0 %v2509
    %2683 = vmatprep.subr.bf16.mxu0 0
    %2684 = vmatpush1.bf16.msra.mxu0 %v2512
    %2685 = vmatprep.subr.bf16.mxu0 0
    %2686 = vmatpush1.bf16.msra.mxu0 %v2515
    %2687 = vmatprep.subr.bf16.mxu0 0
    %2688 = vmatpush1.bf16.msra.mxu0 0
    %2689 = vmatprep.subr.bf16.mxu0 0
    %2690 = vmatpush1.bf16.msra.mxu0 0
    %2691 = vmatprep.subr.bf16.mxu0 0
    %2692 = vmatpush1.bf16.msra.mxu0 0
    %2693 = vmatprep.subr.bf16.mxu0 0
    %2694 = vmatpush1.bf16.msra.mxu0 0
    %2695 = vmatprep.subr.bf16.mxu0 0
    %2696 = vmatpush1.bf16.msra.mxu0 0
    %2697 = vmatprep.subr.bf16.mxu0 0
    %2698 = vmatpush1.bf16.msra.mxu0 0
    %2699 = vmatprep.subr.bf16.mxu0 0
    %2700 = vmatpush1.bf16.msra.mxu0 0
    %2701 = vmatprep.subr.bf16.mxu0 0
    %2702 = vmatpush1.bf16.msra.mxu0 0
    %2703 = vmatprep.mubr.bf16.mxu0 0
    %2704 = vmatmul.mubr.bf16.gmra.mrb[0].mxu0 %v1884
    %v2705 = vpop.f32.mrb[0].mxu0
    %v2706 = vadd.f32 %v2657, %v2705
    %v2707 = vpop.f32.mrb[0].mxu0
    %v2708 = vpop.f32.mrb[0].mxu0
    %v2709 = vadd.f32 %v2660, %v2708
    %v2710 = vpop.f32.mrb[0].mxu0
    %2711 = vmatprep.mubr.bf16.mxu0 0
    %2712 = vmatmul.mubr.bf16.gmra.mrb[0].mxu0 %v1887
    %v2713 = vpop.f32.mrb[0].mxu0
    %v2714 = vadd.f32 %v2665, %v2713
    %v2715 = vpop.f32.mrb[0].mxu0
    %v2716 = vpop.f32.mrb[0].mxu0
    %v2717 = vadd.f32 %v2668, %v2716
    %v2718 = vpop.f32.mrb[0].mxu0
    %2719 = vdwg.mxu0
    %v2720 = vadd.f32 %v2328, %v2604
    %v2721 = vadd.f32 %v2330, %v2606
    %v2722 = vadd.f32 %v2430, %v2706
    %v2723 = vadd.f32 %v2332, %v2608
    %v2724 = vadd.f32 %v2334, %v2610
    %v2725 = vadd.f32 %v2433, %v2709
    %v2726 = vadd.f32 %v2338, %v2614
    %v2727 = vadd.f32 %v2340, %v2616
    %v2728 = vadd.f32 %v2438, %v2714
    %v2729 = vadd.f32 %v2342, %v2618
    %v2730 = vadd.f32 %v2344, %v2620
    %v2731 = vadd.f32 %v2441, %v2717
    %v2732 = vld [vmem:[#allocation2 + $0x6c0] sm:$0xff]
    %v2733 = vld [vmem:[#allocation2 + $0x6c8] sm:$0xff]
    %v2734 = vld [vmem:[#allocation2 + $0x6d0] sm:$0xff]
    %v2735 = vld [vmem:[#allocation2 + $0x6d8] sm:$0xff]
    %v2736 = vld [vmem:[#allocation2 + $0x6e0] sm:$0xff]
    %v2737 = vld [vmem:[#allocation2 + $0x6e8] sm:$0xff]
    %v2738 = vld [vmem:[#allocation2 + $0x6f0] sm:$0xff]
    %v2739 = vld [vmem:[#allocation2 + $0x6f8] sm:$0xff]
    %v2740 = vld [vmem:[#allocation2 + $0x700] sm:$0xff]
    %v2741 = vld [vmem:[#allocation2 + $0x708] sm:$0xff]
    %v2742 = vld [vmem:[#allocation2 + $0x710] sm:$0xff]
    %v2743 = vld [vmem:[#allocation2 + $0x718] sm:$0xff]
    %v2744 = vld [vmem:[#allocation2 + $0x720] sm:$0xff]
    %v2745 = vld [vmem:[#allocation2 + $0x728] sm:$0xff]
    %v2746 = vld [vmem:[#allocation2 + $0x730] sm:$0xff]
    %v2747 = vld [vmem:[#allocation2 + $0x738] sm:$0xff]
    %v2748 = vld [vmem:[#allocation2 + $0x740] sm:$0xff]
    %v2749 = vld [vmem:[#allocation2 + $0x748] sm:$0xff]
    %v2750 = vld [vmem:[#allocation2 + $0x750] sm:$0xff]
    %v2751 = vld [vmem:[#allocation2 + $0x758] sm:$0xff]
    %v2752 = vld [vmem:[#allocation2 + $0x760] sm:$0xff]
    %v2753 = vld [vmem:[#allocation2 + $0x768] sm:$0xff]
    %v2754 = vld [vmem:[#allocation2 + $0x770] sm:$0xff]
    %v2755 = vld [vmem:[#allocation2 + $0x778] sm:$0xff]
    %2756 = vmatprep.subr.bf16.mxu0 %v2733
    %2757 = vmatpush1.bf16.msra.mxu0 %v2732
    %2758 = vmatprep.subr.bf16.mxu0 %v2736
    %2759 = vmatpush1.bf16.msra.mxu0 %v2735
    %2760 = vmatprep.subr.bf16.mxu0 %v2739
    %2761 = vmatpush1.bf16.msra.mxu0 %v2738
    %2762 = vmatprep.subr.bf16.mxu0 %v2742
    %2763 = vmatpush1.bf16.msra.mxu0 %v2741
    %2764 = vmatprep.subr.bf16.mxu0 %v2745
    %2765 = vmatpush1.bf16.msra.mxu0 %v2744
    %2766 = vmatprep.subr.bf16.mxu0 %v2748
    %2767 = vmatpush1.bf16.msra.mxu0 %v2747
    %2768 = vmatprep.subr.bf16.mxu0 %v2751
    %2769 = vmatpush1.bf16.msra.mxu0 %v2750
    %2770 = vmatprep.subr.bf16.mxu0 %v2754
    %2771 = vmatpush1.bf16.msra.mxu0 %v2753
    %2772 = vmatprep.subr.bf16.mxu0 0
    %2773 = vmatpush1.bf16.msra.mxu0 0
    %2774 = vmatprep.subr.bf16.mxu0 0
    %2775 = vmatpush1.bf16.msra.mxu0 0
    %2776 = vmatprep.subr.bf16.mxu0 0
    %2777 = vmatpush1.bf16.msra.mxu0 0
    %2778 = vmatprep.subr.bf16.mxu0 0
    %2779 = vmatpush1.bf16.msra.mxu0 0
    %2780 = vmatprep.subr.bf16.mxu0 0
    %2781 = vmatpush1.bf16.msra.mxu0 0
    %2782 = vmatprep.subr.bf16.mxu0 0
    %2783 = vmatpush1.bf16.msra.mxu0 0
    %2784 = vmatprep.subr.bf16.mxu0 0
    %2785 = vmatpush1.bf16.msra.mxu0 0
    %2786 = vmatprep.subr.bf16.mxu0 0
    %2787 = vmatpush1.bf16.msra.mxu0 0
    %2788 = vmatprep.mubr.bf16.mxu0 0
    %2789 = vmatmul.mubr.bf16.gmra.mrb[0].mxu0 %v1629
    %v2790 = vpop.f32.mrb[0].mxu0
    %v2791 = vadd.f32 0.0, %v2790
    %v2792 = vpop.f32.mrb[0].mxu0
    %v2793 = vadd.f32 0.0, %v2792
    %v2794 = vpop.f32.mrb[0].mxu0
    %v2795 = vadd.f32 0.0, %v2794
    %v2796 = vpop.f32.mrb[0].mxu0
    %v2797 = vadd.f32 0.0, %v2796
    %2798 = vmatprep.mubr.bf16.mxu0 0
    %2799 = vmatmul.mubr.bf16.gmra.mrb[0].mxu0 %v1630
    %v2800 = vpop.f32.mrb[0].mxu0
    %v2801 = vadd.f32 0.0, %v2800
    %v2802 = vpop.f32.mrb[0].mxu0
    %v2803 = vadd.f32 0.0, %v2802
    %v2804 = vpop.f32.mrb[0].mxu0
    %v2805 = vadd.f32 0.0, %v2804
    %v2806 = vpop.f32.mrb[0].mxu0
    %v2807 = vadd.f32 0.0, %v2806
    %2808 = vdwg.mxu0
    %2809 = vmatprep.subr.bf16.mxu0 0
    %2810 = vmatpush1.bf16.msra.mxu0 %v2734
    %2811 = vmatprep.subr.bf16.mxu0 0
    %2812 = vmatpush1.bf16.msra.mxu0 %v2737
    %2813 = vmatprep.subr.bf16.mxu0 0
    %2814 = vmatpush1.bf16.msra.mxu0 %v2740
    %2815 = vmatprep.subr.bf16.mxu0 0
    %2816 = vmatpush1.bf16.msra.mxu0 %v2743
    %2817 = vmatprep.subr.bf16.mxu0 0
    %2818 = vmatpush1.bf16.msra.mxu0 %v2746
    %2819 = vmatprep.subr.bf16.mxu0 0
    %2820 = vmatpush1.bf16.msra.mxu0 %v2749
    %2821 = vmatprep.subr.bf16.mxu0 0
    %2822 = vmatpush1.bf16.msra.mxu0 %v2752
    %2823 = vmatprep.subr.bf16.mxu0 0
    %2824 = vmatpush1.bf16.msra.mxu0 %v2755
    %2825 = vmatprep.subr.bf16.mxu0 0
    %2826 = vmatpush1.bf16.msra.mxu0 0
    %2827 = vmatprep.subr.bf16.mxu0 0
    %2828 = vmatpush1.bf16.msra.mxu0 0
    %2829 = vmatprep.subr.bf16.mxu0 0
    %2830 = vmatpush1.bf16.msra.mxu0 0
    %2831 = vmatprep.subr.bf16.mxu0 0
    %2832 = vmatpush1.bf16.msra.mxu0 0
    %2833 = vmatprep.subr.bf16.mxu0 0
    %2834 = vmatpush1.bf16.msra.mxu0 0
    %2835 = vmatprep.subr.bf16.mxu0 0
    %2836 = vmatpush1.bf16.msra.mxu0 0
    %2837 = vmatprep.subr.bf16.mxu0 0
    %2838 = vmatpush1.bf16.msra.mxu0 0
    %2839 = vmatprep.subr.bf16.mxu0 0
    %2840 = vmatpush1.bf16.msra.mxu0 0
    %2841 = vmatprep.mubr.bf16.mxu0 0
    %2842 = vmatmul.mubr.bf16.gmra.mrb[0].mxu0 %v1629
    %v2843 = vpop.f32.mrb[0].mxu0
    %v2844 = vadd.f32 0.0, %v2843
    %v2845 = vpop.f32.mrb[0].mxu0
    %v2846 = vpop.f32.mrb[0].mxu0
    %v2847 = vadd.f32 0.0, %v2846
    %v2848 = vpop.f32.mrb[0].mxu0
    %2849 = vmatprep.mubr.bf16.mxu0 0
    %2850 = vmatmul.mubr.bf16.gmra.mrb[0].mxu0 %v1630
    %v2851 = vpop.f32.mrb[0].mxu0
    %v2852 = vadd.f32 0.0, %v2851
    %v2853 = vpop.f32.mrb[0].mxu0
    %v2854 = vpop.f32.mrb[0].mxu0
    %v2855 = vadd.f32 0.0, %v2854
    %v2856 = vpop.f32.mrb[0].mxu0
    %2857 = vdwg.mxu0
    %v2858 = vadd.f32 %v2720, %v2791
    %v2859 = vadd.f32 %v2721, %v2793
    %v2860 = vadd.f32 %v2722, %v2844
    %v2861 = vadd.f32 %v2723, %v2795
    %v2862 = vadd.f32 %v2724, %v2797
    %v2863 = vadd.f32 %v2725, %v2847
    %v2864 = vadd.f32 %v2726, %v2801
    %v2865 = vadd.f32 %v2727, %v2803
    %v2866 = vadd.f32 %v2728, %v2852
    %v2867 = vadd.f32 %v2729, %v2805
    %v2868 = vadd.f32 %v2730, %v2807
    %v2869 = vadd.f32 %v2731, %v2855
    %2870 = vst [vmem:[#allocation15] sm:$0xff] %v2858
    %2871 = vst [vmem:[#allocation15 + $0x8] sm:$0xff] %v2859
    %2872 = vst [vmem:[#allocation15 + $0x10] sm:$0xff] %v2860
    %2873 = vst [vmem:[#allocation15 + $0x18] sm:$0xff] %v2861
    %2874 = vst [vmem:[#allocation15 + $0x20] sm:$0xff] %v2862
    %2875 = vst [vmem:[#allocation15 + $0x28] sm:$0xff] %v2863
    %2876 = vst [vmem:[#allocation15 + $0x30] sm:$0xff] %v2864
    %2877 = vst [vmem:[#allocation15 + $0x38] sm:$0xff] %v2865
    %2878 = vst [vmem:[#allocation15 + $0x40] sm:$0xff] %v2866
    %2879 = vst [vmem:[#allocation15 + $0x48] sm:$0xff] %v2867
    %2880 = vst [vmem:[#allocation15 + $0x50] sm:$0xff] %v2868
    %2881 = vst [vmem:[#allocation15 + $0x58] sm:$0xff] %v2869
    // Predicated region
    $region66: #{tpu_custom_call.1} parent=1 // pred_check
      _
    $region67: #{tpu_custom_call.1} parent=1 // pred_check_branch
      %2883 = sbr.rel (0) target = $region69
    $region68: #{tpu_custom_call.1} parent=1 // pred_region
      %s2885 = ssub.s32 1536, 1536
      %2886 = vsyncadd [#allocation6], %s2885
      %s2887 = sshll.u32 [#allocation15], 4
      %s2888 = int_to_ptr.vmem [resolvable:$true] %s2887
      %2893 = dma.vmem_to_hbm [thread:$0]  %s2888, 1536, %s11, [#allocation6], 384, 384, 24
    $region69: #{tpu_custom_call.1} parent=1 // pred_fallthru
      _
    // Predicated region
    $region70: #{tpu_custom_call.1} parent=1 // pred_check
      _
    $region71: #{tpu_custom_call.1} parent=1 // pred_check_branch
      %2895 = sbr.rel (0) target = $region73
    $region72: #{tpu_custom_call.1} parent=1 // pred_region
      %s2897 = ssub.s32 1536, 1536
      %2898 = vsyncadd [#allocation17], %s2897
      %s2899 = sshll.u32 [#allocation16], 4
      %s2900 = int_to_ptr.vmem [resolvable:$true] %s2899
      %2905 = dma.vmem_to_hbm [thread:$0]  %s2900, 1536, %s12, [#allocation17], 384, 384, 24
    $region73: #{tpu_custom_call.1} parent=1 // pred_fallthru
      _
    // Predicated region
    $region74: #{tpu_custom_call.1} parent=1 // pred_check
      _
    $region75: #{tpu_custom_call.1} parent=1 // pred_check_branch
      %2907 = sbr.rel (0) target = $region77
    $region76: #{tpu_custom_call.1} parent=1 // pred_region
      %2908 = dma.done [#allocation6], 1536
    $region77: #{tpu_custom_call.1} parent=1 // pred_fallthru
      _
    // Predicated region
    $region78: #{tpu_custom_call.1} parent=1 // pred_check
      _
    $region79: #{tpu_custom_call.1} parent=1 // pred_check_branch
      %2910 = sbr.rel (0) target = $region81
    $region80: #{tpu_custom_call.1} parent=1 // pred_region
      %2911 = dma.done [#allocation17], 1536
    $region81: #{tpu_custom_call.1} parent=1 // pred_fallthru
      _
    %2912 = vsyncpa [#allocation5], 1
    %2913 = vsyncpa [#allocation8], 1
    %2914 = vsyncpa [#allocation11], 1
    %2915 = vsyncpa [#allocation14], 1
    %2916 = vsyncpa [#allocation6], 1
    %2917 = vsyncpa [#allocation17], 1
  %2918 = vsyncmov [#allocation3]
  %s2919 = vpop.sfrf %2918
  %p2920 = scmp.eq.s32.totalorder %s2919, 0
  %p2921 = pneg %p2920
  %2923 = shalt.err (%p2921)

</llo_original>
